<compile_context>
chip_gen: v6e
topology: v6e:2x2x1
jax: 0.10.0
libtpu: 0.0.40
codegen_flags: <defaults>
</compile_context>

<pallas_src>
import functools
import math

import numpy as np
import jax
import jax.numpy as jnp
from jax import lax
from jax.experimental import pallas as pl
from jax.experimental.pallas import tpu as pltpu

# ----------------- small ModelArgs -----------------
DIM = 64
N_HEADS = 4
HEAD_DIM = DIM // N_HEADS          # 16 (even, as RoPE requires)
N_LAYERS = 2
VOCAB = 128
MULTIPLE_OF = 32
NORM_EPS = 1e-5
ROPE_THETA = 500000.0
MAX_SEQ_LEN = 32


def _ffn_hidden_dim(dim, multiple_of, ffn_dim_multiplier=None):
    hidden = int(2 * (4 * dim) / 3)
    if ffn_dim_multiplier is not None:
        hidden = int(ffn_dim_multiplier * hidden)
    return multiple_of * ((hidden + multiple_of - 1) // multiple_of)


HIDDEN = _ffn_hidden_dim(DIM, MULTIPLE_OF)   # 192


# ----------------- fully fused network kernel (grid over layers) -----------------
def _llama_kernel(
    h0_ref,          # [T, D]        token embeddings
    wqkv_ref,        # [1, D, 5D]    fused [wq, wk, wv, wq@P, wk@P] (wq pre-scaled)
    wo_ref,          # [1, D, D]
    w13_ref,         # [1, D, 2H]    fused w1/w3
    w2_ref,          # [1, H, D]
    attn_norm_ref,   # [1, 1, D]
    ffn_norm_ref,    # [1, 1, D]
    cos_ref,         # [T, D]        RoPE cos, pair-duplicated & head-tiled
    sin_ref,         # [T, D]
    seg_q_ref,       # [T, 1] int32  segment id per query token
    seg_k_ref,       # [1, T] int32  segment id per key token
    norm_ref,        # [1, D]        final RMSNorm weight
    wout_ref,        # [D, V]        output head
    logits_ref,      # [T, V]        logits (written at last layer only)
    h_scr,           # VMEM [T, D] f32 — residual stream, persists across layers
    bias_scr,        # VMEM [T, T] f32 — additive causal/segment bias
    *, eps, n_heads, head_dim,
):
    layer = pl.program_id(0)
    T, D = h0_ref.shape

    @pl.when(layer == 0)
    def _():
        h_scr[...] = h0_ref[...].astype(jnp.float32)
        row = lax.broadcasted_iota(jnp.int32, (T, T), 0)
        col = lax.broadcasted_iota(jnp.int32, (T, T), 1)
        keep = (row >= col) & (seg_q_ref[...] == seg_k_ref[...])
        bias_scr[...] = jnp.where(keep, 0.0, -1e30)

    def rms(x, w):
        return x * lax.rsqrt(jnp.mean(x * x, axis=-1, keepdims=True) + eps) * w

    h = h_scr[...]

    # ---------- attention block ----------
    xn = rms(h, attn_norm_ref[0])
    qkv = jnp.dot(xn, wqkv_ref[0], preferred_element_type=jnp.float32)   # [T, 5D]

    # in-kernel interleaved RoPE (pair-swap columns came out of the same matmul)
    cos = cos_ref[...]
    sin = sin_ref[...]
    q = qkv[:, :D] * cos + qkv[:, 3 * D:4 * D] * sin        # already / sqrt(Dh)
    k = qkv[:, D:2 * D] * cos + qkv[:, 4 * D:5 * D] * sin
    v = qkv[:, 2 * D:3 * D]

    # head-batched attention (no per-head Python loop / 16-lane matmuls)
    qh = q.reshape(T, n_heads, head_dim)
    kh = k.reshape(T, n_heads, head_dim)
    vh = v.reshape(T, n_heads, head_dim)
    s = jnp.einsum("qhd,khd->hqk", qh, kh,
                   preferred_element_type=jnp.float32)       # [H, T, T]
    s = s + bias_scr[...]                                    # resident bias
    m = jnp.max(s, axis=-1, keepdims=True)
    p = jnp.exp(s - m)
    denom = jnp.sum(p, axis=-1, keepdims=True)
    p = p * pl.reciprocal(denom, approx=True)
    o = jnp.einsum("hqk,khd->qhd", p, vh,
                   preferred_element_type=jnp.float32)       # [T, H, Dh]
    h = h + jnp.dot(o.reshape(T, D), wo_ref[0],
                    preferred_element_type=jnp.float32)

    # ---------- SwiGLU FFN block ----------
    hn = rms(h, ffn_norm_ref[0])
    y13 = jnp.dot(hn, w13_ref[0], preferred_element_type=jnp.float32)    # [T, 2H]
    hid = w2_ref.shape[1]
    y1 = y13[:, :hid]
    y3 = y13[:, hid:]
    h = h + jnp.dot((y1 * jax.nn.sigmoid(y1)) * y3, w2_ref[0],
                    preferred_element_type=jnp.float32)

    h_scr[...] = h

    # ---------- fused final RMSNorm + output head ----------
    @pl.when(layer == pl.num_programs(0) - 1)
    def _():
        hn_final = rms(h, norm_ref[...])
        logits_ref[...] = jnp.dot(hn_final, wout_ref[...],
                                  preferred_element_type=jnp.float32
                                  ).astype(logits_ref.dtype)


# ----------------- host-side weight prep (RoPE/scale folded into wqkv) -----------------
def _build_wqkv_ext(wqkv, head_dim):
    """wqkv: [L, D, 3D] -> [L, D, 5D] = [wq/sqrt(Dh), wk, wv, (wq/sqrt(Dh))@P, wk@P]."""
    L, D, _ = wqkv.shape
    scale = 1.0 / math.sqrt(head_dim)
    wq = wqkv[:, :, :D] * scale
    wk = wqkv[:, :, D:2 * D]
    wv = wqkv[:, :, 2 * D:]
    # pair-swap matrix: (x @ P)[2k] = -x[2k+1], (x @ P)[2k+1] = x[2k]
    P = np.zeros((D, D), np.float32)
    for i in range(D // 2):
        P[2 * i, 2 * i + 1] = 1.0
        P[2 * i + 1, 2 * i] = -1.0
    P = jnp.asarray(P)
    return jnp.concatenate([wq, wk, wv, wq @ P, wk @ P], axis=2)


# ----------------- forward (Pallas) -----------------
def llama_forward(params, tokens, cos_full, sin_full, seg_ids):
    T = tokens.shape[0]
    D = DIM
    L = params["wqkv"].shape[0]
    wqkv_ext = _build_wqkv_ext(params["wqkv"], HEAD_DIM)
    h0 = jnp.take(params["tok_emb"], tokens, axis=0)          # embedding gather (glue)
    seg_q = seg_ids.reshape(T, 1).astype(jnp.int32)
    seg_k = seg_ids.reshape(1, T).astype(jnp.int32)

    logits = pl.pallas_call(
        functools.partial(_llama_kernel, eps=NORM_EPS,
                          n_heads=N_HEADS, head_dim=HEAD_DIM),
        out_shape=jax.ShapeDtypeStruct((T, VOCAB), jnp.float32),
        grid=(L,),
        in_specs=[
            pl.BlockSpec((T, D), lambda l: (0, 0)),                 # h0
            pl.BlockSpec((1, D, 5 * D), lambda l: (l, 0, 0)),       # wqkv_ext
            pl.BlockSpec((1, D, D), lambda l: (l, 0, 0)),           # wo
            pl.BlockSpec((1, D, 2 * HIDDEN), lambda l: (l, 0, 0)),  # w13
            pl.BlockSpec((1, HIDDEN, D), lambda l: (l, 0, 0)),      # w2
            pl.BlockSpec((1, 1, D), lambda l: (l, 0, 0)),           # attn_norm
            pl.BlockSpec((1, 1, D), lambda l: (l, 0, 0)),           # ffn_norm
            pl.BlockSpec((T, D), lambda l: (0, 0)),                 # cos
            pl.BlockSpec((T, D), lambda l: (0, 0)),                 # sin
            pl.BlockSpec((T, 1), lambda l: (0, 0)),                 # seg_q
            pl.BlockSpec((1, T), lambda l: (0, 0)),                 # seg_k
            pl.BlockSpec((1, D), lambda l: (0, 0)),                 # final norm
            pl.BlockSpec((D, VOCAB), lambda l: (0, 0)),             # output head
        ],
        out_specs=pl.BlockSpec((T, VOCAB), lambda l: (0, 0)),       # lane-dense 128
        scratch_shapes=[pltpu.VMEM((T, D), jnp.float32),            # residual stream
                        pltpu.VMEM((T, T), jnp.float32)],           # attn bias
        compiler_params=pltpu.CompilerParams(
            dimension_semantics=("arbitrary",)),   # sequential: residual carried in VMEM
    )(h0, wqkv_ext, params["wo"], params["w13"], params["w2"],
      params["attn_norm"], params["ffn_norm"],
      cos_full, sin_full, seg_q, seg_k, params["norm"], params["output"])
    return logits  # all_gather over TP group of size 1 == identity


# ----------------- RoPE tables (host-side precompute) -----------------
def precompute_freqs_cos_sin(dim, end, theta):
    freqs = 1.0 / theta ** (np.arange(0, dim, 2)[: dim // 2].astype(np.float32) / dim)
    t = np.arange(end, dtype=np.float32)
    f = np.outer(t, freqs)
    return np.cos(f), np.sin(f)          # each [end, dim//2]


# ----------------- parameters -----------------
def init_params(key):
    def w(k, shape, scale=0.02):
        return scale * jax.random.normal(k, shape, dtype=jnp.float32)

    keys = iter(jax.random.split(key, 4 + N_LAYERS * 10))
    tok_emb = w(next(keys), (VOCAB, DIM))
    output = w(next(keys), (DIM, VOCAB))
    norm = 1.0 + 0.1 * jax.random.normal(next(keys), (1, DIM), dtype=jnp.float32)

    wqkv, wo, w13, w2, attn_norm, ffn_norm = [], [], [], [], [], []
    for _ in range(N_LAYERS):
        wq = w(next(keys), (DIM, N_HEADS * HEAD_DIM))
        wk = w(next(keys), (DIM, N_HEADS * HEAD_DIM))
        wv = w(next(keys), (DIM, N_HEADS * HEAD_DIM))
        wqkv.append(jnp.concatenate([wq, wk, wv], axis=1))          # [D, 3D]
        wo.append(w(next(keys), (N_HEADS * HEAD_DIM, DIM)))
        w1 = w(next(keys), (DIM, HIDDEN))
        w3 = w(next(keys), (DIM, HIDDEN))
        w13.append(jnp.concatenate([w1, w3], axis=1))               # [D, 2H]
        w2.append(w(next(keys), (HIDDEN, DIM)))
        attn_norm.append(1.0 + 0.1 * jax.random.normal(next(keys), (1, DIM), jnp.float32))
        ffn_norm.append(1.0 + 0.1 * jax.random.normal(next(keys), (1, DIM), jnp.float32))

    return {
        "tok_emb": tok_emb, "output": output, "norm": norm,
        "wqkv": jnp.stack(wqkv), "wo": jnp.stack(wo),
        "w13": jnp.stack(w13), "w2": jnp.stack(w2),
        "attn_norm": jnp.stack(attn_norm), "ffn_norm": jnp.stack(ffn_norm),
    }


# ----------------- pure-JAX reference (for verification) -----------------
def _apply_rope_ref(x, cos, sin):
    """x: [T, H, Dh]; cos/sin: [T, Dh//2] (interleaved-pair RoPE)."""
    T, H, Dh = x.shape
    xr = x.astype(jnp.float32).reshape(T, H, Dh // 2, 2)
    xe, xo = xr[..., 0], xr[..., 1]
    c = cos[:, None, :]
    s = sin[:, None, :]
    oe = xe * c - xo * s
    oo = xe * s + xo * c
    return jnp.stack([oe, oo], axis=-1).reshape(T, H, Dh)


def ref_forward(params, tokens, cos_half, sin_half, seg_ids):
    def rms(x, w):
        xf = x.astype(jnp.float32)
        return xf * lax.rsqrt(jnp.mean(xf * xf, -1, keepdims=True) + NORM_EPS) * w

    T = tokens.shape[0]
    D = DIM
    h = jnp.take(params["tok_emb"], tokens, axis=0)
    scale = 1.0 / math.sqrt(HEAD_DIM)
    idx = jnp.arange(T)
    mask = (seg_ids[:, None] == seg_ids[None, :]) & (idx[:, None] >= idx[None, :])
    for li in range(N_LAYERS):
        xn = rms(h, params["attn_norm"][li])
        qkv = xn @ params["wqkv"][li]
        xq = _apply_rope_ref(qkv[:, :D].reshape(T, N_HEADS, HEAD_DIM), cos_half, sin_half)
        xk = _apply_rope_ref(qkv[:, D:2 * D].reshape(T, N_HEADS, HEAD_DIM), cos_half, sin_half)
        xv = qkv[:, 2 * D:].reshape(T, N_HEADS, HEAD_DIM)
        s = jnp.einsum("qhd,khd->hqk", xq, xk) * scale
        s = jnp.where(mask[None], s, -1e30)
        p = jax.nn.softmax(s, axis=-1)
        o = jnp.einsum("hqk,khd->qhd", p, xv).reshape(T, D)
        h = h + o @ params["wo"][li]
        hn = rms(h, params["ffn_norm"][li])
        y13 = hn @ params["w13"][li]
        y1, y3 = y13[:, :HIDDEN], y13[:, HIDDEN:]
        h = h + (jax.nn.silu(y1) * y3) @ params["w2"][li]
    h = rms(h, params["norm"])
    return (h @ params["output"]).astype(jnp.float32)


# ----------------- main -----------------
if __name__ == "__main__":
    key = jax.random.PRNGKey(0)
    k_params, k_tok = jax.random.split(key)
    params = init_params(k_params)

    # flattened varlen batch: two sequences of length 9 and 7 (T = 16)
    cu_seqlens = np.array([0, 9, 16], dtype=np.int32)
    lengths = cu_seqlens[1:] - cu_seqlens[:-1]
    T = int(cu_seqlens[-1])
    tokens = jax.random.randint(k_tok, (T,), 0, VOCAB, dtype=jnp.int32)

    # per-token RoPE tables (torch: cat of freqs_cis[:len] per sequence)
    cos_tab, sin_tab = precompute_freqs_cos_sin(HEAD_DIM, MAX_SEQ_LEN * 2, ROPE_THETA)
    local_pos = np.concatenate([np.arange(l) for l in lengths])
    seg_np = np.concatenate([np.full(l, i, dtype=np.int32) for i, l in enumerate(lengths)])

    cos_half = cos_tab[local_pos]                 # [T, HEAD_DIM//2]
    sin_half = sin_tab[local_pos]
    # interleaved layout for the kernel: duplicate per pair, tile over heads -> [T, DIM]
    cos_full = jnp.asarray(np.tile(np.repeat(cos_half, 2, axis=1), (1, N_HEADS)))
    sin_full = jnp.asarray(np.tile(np.repeat(sin_half, 2, axis=1), (1, N_HEADS)))

    seg_ids = jnp.asarray(seg_np)

    y = llama_forward(params, tokens, cos_full, sin_full, seg_ids)
    y = jax.block_until_ready(y)

    y_ref = jax.block_until_ready(
        ref_forward(params, tokens, jnp.asarray(cos_half), jnp.asarray(sin_half), seg_ids))
    assert y.shape == (T, VOCAB) and y.dtype == jnp.float32
    np.testing.assert_allclose(np.asarray(y), np.asarray(y_ref), rtol=2e-3, atol=2e-3)

    print("KERNEL_OK")
</pallas_src>

<mosaic_0001>
module attributes {stable_mosaic.version = 11 : i64} {
  func.func @_llama_kernel(%arg0: i32, %arg1: memref<16x64xf32, #tpu.memory_space<vmem>>, %arg2: memref<1x64x320xf32, #tpu.memory_space<vmem>>, %arg3: memref<1x64x64xf32, #tpu.memory_space<vmem>>, %arg4: memref<1x64x384xf32, #tpu.memory_space<vmem>>, %arg5: memref<1x192x64xf32, #tpu.memory_space<vmem>>, %arg6: memref<1x1x64xf32, #tpu.memory_space<vmem>>, %arg7: memref<1x1x64xf32, #tpu.memory_space<vmem>>, %arg8: memref<16x64xf32, #tpu.memory_space<vmem>>, %arg9: memref<16x64xf32, #tpu.memory_space<vmem>>, %arg10: memref<16x1xi32, #tpu.memory_space<vmem>>, %arg11: memref<1x16xi32, #tpu.memory_space<vmem>>, %arg12: memref<1x64xf32, #tpu.memory_space<vmem>>, %arg13: memref<64x128xf32, #tpu.memory_space<vmem>>, %arg14: memref<16x128xf32, #tpu.memory_space<vmem>>, %arg15: memref<16x64xf32, #tpu.memory_space<vmem>>, %arg16: memref<16x16xf32, #tpu.memory_space<vmem>>) attributes {dimension_semantics = [#tpu.dimension_semantics<arbitrary>], iteration_bounds = array<i64: 2>, scalar_prefetch = 0 : i64, scratch_operands = 2 : i64, tpu.core_type = #tpu.core_type<tc>, window_params = [{pipeline_mode = #tpu.pipeline_mode<synchronous>, transform_indices = @transform_0, window_bounds = array<i64: 16, 64>}, {transform_indices = @transform_1, window_bounds = array<i64: 1, 64, 320>}, {transform_indices = @transform_2, window_bounds = array<i64: 1, 64, 64>}, {transform_indices = @transform_3, window_bounds = array<i64: 1, 64, 384>}, {transform_indices = @transform_4, window_bounds = array<i64: 1, 192, 64>}, {transform_indices = @transform_5, window_bounds = array<i64: 1, 1, 64>}, {transform_indices = @transform_6, window_bounds = array<i64: 1, 1, 64>}, {pipeline_mode = #tpu.pipeline_mode<synchronous>, transform_indices = @transform_7, window_bounds = array<i64: 16, 64>}, {pipeline_mode = #tpu.pipeline_mode<synchronous>, transform_indices = @transform_8, window_bounds = array<i64: 16, 64>}, {pipeline_mode = #tpu.pipeline_mode<synchronous>, transform_indices = @transform_9, window_bounds = array<i64: 16, 1>}, {pipeline_mode = #tpu.pipeline_mode<synchronous>, transform_indices = @transform_10, window_bounds = array<i64: 1, 16>}, {pipeline_mode = #tpu.pipeline_mode<synchronous>, transform_indices = @transform_11, window_bounds = array<i64: 1, 64>}, {pipeline_mode = #tpu.pipeline_mode<synchronous>, transform_indices = @transform_12, window_bounds = array<i64: 64, 128>}, {pipeline_mode = #tpu.pipeline_mode<synchronous>, transform_indices = @transform_13, window_bounds = array<i64: 16, 128>}]} {
    %c0_i32 = arith.constant 0 : i32
    %0 = arith.cmpi eq, %arg0, %c0_i32 : i32
    %1 = arith.extui %0 : i1 to i32
    %c0_i32_0 = arith.constant 0 : i32
    %2 = arith.cmpi ne, %1, %c0_i32_0 : i32
    scf.if %2 {
      %c0_43 = arith.constant 0 : index
      %c0_44 = arith.constant 0 : index
      %93 = vector.load %arg1[%c0_43, %c0_44] : memref<16x64xf32, #tpu.memory_space<vmem>>, vector<16x64xf32>
      %c0_45 = arith.constant 0 : index
      %c0_46 = arith.constant 0 : index
      %94 = vector.load %arg15[%c0_45, %c0_46] : memref<16x64xf32, #tpu.memory_space<vmem>>, vector<16x64xf32>
      tpu.vector_store %arg15[%c0_45, %c0_46], %93 {strides = array<i32>} : memref<16x64xf32, #tpu.memory_space<vmem>>, vector<16x64xf32>,
      %95 = tpu.iota {dimensions = array<i32: 0>} : vector<16x16xi32>
      %96 = tpu.iota {dimensions = array<i32: 1>} : vector<16x16xi32>
      %97 = arith.cmpi sge, %95, %96 : vector<16x16xi32>
      %c0_47 = arith.constant 0 : index
      %c0_48 = arith.constant 0 : index
      %98 = vector.load %arg10[%c0_47, %c0_48] : memref<16x1xi32, #tpu.memory_space<vmem>>, vector<16x1xi32>
      %c0_49 = arith.constant 0 : index
      %c0_50 = arith.constant 0 : index
      %99 = vector.load %arg11[%c0_49, %c0_50] : memref<1x16xi32, #tpu.memory_space<vmem>>, vector<1x16xi32>
      %100 = vector.broadcast %98 : vector<16x1xi32> to vector<16x16xi32>
      %101 = vector.broadcast %99 : vector<1x16xi32> to vector<16x16xi32>
      %102 = arith.cmpi eq, %100, %101 : vector<16x16xi32>
      %103 = arith.andi %97, %102 : vector<16x16xi1>
      %cst_51 = arith.constant 0.000000e+00 : f32
      %cst_52 = arith.constant -1.000000e+30 : f32
      %104 = vector.broadcast %cst_51 : f32 to vector<16x16xf32>
      %105 = vector.broadcast %cst_52 : f32 to vector<16x16xf32>
      %106 = arith.select %103, %104, %105 : vector<16x16xi1>, vector<16x16xf32>
      %c0_53 = arith.constant 0 : index
      %c0_54 = arith.constant 0 : index
      %107 = vector.load %arg16[%c0_53, %c0_54] : memref<16x16xf32, #tpu.memory_space<vmem>>, vector<16x16xf32>
      tpu.vector_store %arg16[%c0_53, %c0_54], %106 {strides = array<i32>} : memref<16x16xf32, #tpu.memory_space<vmem>>, vector<16x16xf32>,
    } else {
    }
    %c0 = arith.constant 0 : index
    %c0_1 = arith.constant 0 : index
    %3 = vector.load %arg15[%c0, %c0_1] : memref<16x64xf32, #tpu.memory_space<vmem>>, vector<16x64xf32>
    %c0_2 = arith.constant 0 : index
    %c0_3 = arith.constant 0 : index
    %c0_4 = arith.constant 0 : index
    %4 = vector.load %arg6[%c0_2, %c0_3, %c0_4] : memref<1x1x64xf32, #tpu.memory_space<vmem>>, vector<1x1x64xf32>
    %5 = vector.shape_cast %4 : vector<1x1x64xf32> to vector<1x64xf32>
    %6 = arith.mulf %3, %3 : vector<16x64xf32>
    %cst = arith.constant dense<0.000000e+00> : vector<16xf32>
    %7 = vector.multi_reduction <add>, %6, %cst [1] : vector<16x64xf32> to vector<16xf32>
    %8 = vector.shape_cast %7 : vector<16xf32> to vector<16x1xf32>
    %cst_5 = arith.constant 6.400000e+01 : f32
    %9 = vector.broadcast %cst_5 : f32 to vector<16x1xf32>
    %10 = arith.divf %8, %9 : vector<16x1xf32>
    %cst_6 = arith.constant 9.99999974E-6 : f32
    %11 = vector.broadcast %cst_6 : f32 to vector<16x1xf32>
    %12 = arith.addf %10, %11 : vector<16x1xf32>
    %13 = math.rsqrt %12 : vector<16x1xf32>
    %14 = vector.broadcast %13 : vector<16x1xf32> to vector<16x64xf32>
    %15 = arith.mulf %3, %14 : vector<16x64xf32>
    %16 = vector.broadcast %5 : vector<1x64xf32> to vector<16x64xf32>
    %17 = arith.mulf %15, %16 : vector<16x64xf32>
    %c0_7 = arith.constant 0 : index
    %c0_8 = arith.constant 0 : index
    %c0_9 = arith.constant 0 : index
    %18 = vector.load %arg2[%c0_7, %c0_8, %c0_9] : memref<1x64x320xf32, #tpu.memory_space<vmem>>, vector<1x64x320xf32>
    %19 = vector.shape_cast %18 : vector<1x64x320xf32> to vector<64x320xf32>
    %cst_10 = arith.constant dense<0.000000e+00> : vector<16x320xf32>
    %20 = tpu.matmul %17, %19, %cst_10 {dimension_numbers = #tpu.dot_dimension_numbers<[1], [0], [0], [1], [0, 0, 1, 1], [], []>} : vector<16x64xf32>, vector<64x320xf32>, vector<16x320xf32> -> vector<16x320xf32>
    %c0_11 = arith.constant 0 : index
    %c0_12 = arith.constant 0 : index
    %21 = vector.load %arg8[%c0_11, %c0_12] : memref<16x64xf32, #tpu.memory_space<vmem>>, vector<16x64xf32>
    %c0_13 = arith.constant 0 : index
    %c0_14 = arith.constant 0 : index
    %22 = vector.load %arg9[%c0_13, %c0_14] : memref<16x64xf32, #tpu.memory_space<vmem>>, vector<16x64xf32>
    %23 = vector.extract_strided_slice %20 {offsets = [0, 0], sizes = [16, 64], strides = [1, 1]} : vector<16x320xf32> to vector<16x64xf32>
    %24 = arith.mulf %23, %21 : vector<16x64xf32>
    %25 = vector.extract_strided_slice %20 {offsets = [0, 192], sizes = [16, 64], strides = [1, 1]} : vector<16x320xf32> to vector<16x64xf32>
    %26 = arith.mulf %25, %22 : vector<16x64xf32>
    %27 = arith.addf %24, %26 : vector<16x64xf32>
    %28 = vector.extract_strided_slice %20 {offsets = [0, 64], sizes = [16, 64], strides = [1, 1]} : vector<16x320xf32> to vector<16x64xf32>
    %29 = arith.mulf %28, %21 : vector<16x64xf32>
    %30 = vector.extract_strided_slice %20 {offsets = [0, 256], sizes = [16, 64], strides = [1, 1]} : vector<16x320xf32> to vector<16x64xf32>
    %31 = arith.mulf %30, %22 : vector<16x64xf32>
    %32 = arith.addf %29, %31 : vector<16x64xf32>
    %33 = vector.extract_strided_slice %20 {offsets = [0, 128], sizes = [16, 64], strides = [1, 1]} : vector<16x320xf32> to vector<16x64xf32>
    %34 = vector.shape_cast %27 : vector<16x64xf32> to vector<16x4x16xf32>
    %35 = vector.shape_cast %32 : vector<16x64xf32> to vector<16x4x16xf32>
    %36 = vector.shape_cast %33 : vector<16x64xf32> to vector<16x4x16xf32>
    "tpu.trace_start"() <{level = 10 : i32, message = "qhd,khd->hqk"}> : () -> ()
    %cst_15 = arith.constant dense<0.000000e+00> : vector<4x16x16xf32>
    %37 = tpu.matmul %34, %35, %cst_15 {dimension_numbers = #tpu.dot_dimension_numbers<[2], [2], [0], [0], [0, 1, 0, 0, 1, 0], [1], [1]>} : vector<16x4x16xf32>, vector<16x4x16xf32>, vector<4x16x16xf32> -> vector<4x16x16xf32>
    "tpu.trace_stop"() : () -> ()
    %c0_16 = arith.constant 0 : index
    %c0_17 = arith.constant 0 : index
    %38 = vector.load %arg16[%c0_16, %c0_17] : memref<16x16xf32, #tpu.memory_space<vmem>>, vector<16x16xf32>
    %39 = vector.shape_cast %38 : vector<16x16xf32> to vector<1x16x16xf32>
    %40 = vector.broadcast %39 : vector<1x16x16xf32> to vector<4x16x16xf32>
    %41 = arith.addf %37, %40 : vector<4x16x16xf32>
    %cst_18 = arith.constant dense<0xFF800000> : vector<4x16xf32>
    %42 = vector.multi_reduction <maximumf>, %41, %cst_18 [2] : vector<4x16x16xf32> to vector<4x16xf32>
    %43 = vector.shape_cast %42 : vector<4x16xf32> to vector<4x16x1xf32>
    %44 = vector.broadcast %43 : vector<4x16x1xf32> to vector<4x16x16xf32>
    %45 = arith.subf %41, %44 : vector<4x16x16xf32>
    %46 = math.exp %45 : vector<4x16x16xf32>
    %cst_19 = arith.constant dense<0.000000e+00> : vector<4x16xf32>
    %47 = vector.multi_reduction <add>, %46, %cst_19 [2] : vector<4x16x16xf32> to vector<4x16xf32>
    %48 = vector.shape_cast %47 : vector<4x16xf32> to vector<4x16x1xf32>
    %49 = tpu.reciprocal %48 {approx = true} : vector<4x16x1xf32> -> vector<4x16x1xf32>
    %50 = vector.broadcast %49 : vector<4x16x1xf32> to vector<4x16x16xf32>
    %51 = arith.mulf %46, %50 : vector<4x16x16xf32>
    "tpu.trace_start"() <{level = 10 : i32, message = "hqk,khd->qhd"}> : () -> ()
    %cst_20 = arith.constant dense<0.000000e+00> : vector<4x16x16xf32>
    %52 = tpu.matmul %36, %51, %cst_20 {dimension_numbers = #tpu.dot_dimension_numbers<[0], [2], [2], [1], [0, 1, 0, 2, 1, 1], [1], [0]>} : vector<16x4x16xf32>, vector<4x16x16xf32>, vector<4x16x16xf32> -> vector<4x16x16xf32>
    %53 = tpu.transpose %52, [2, 0, 1] : vector<4x16x16xf32> -> vector<16x4x16xf32>
    "tpu.trace_stop"() : () -> ()
    %54 = vector.shape_cast %53 : vector<16x4x16xf32> to vector<16x64xf32>
    %c0_21 = arith.constant 0 : index
    %c0_22 = arith.constant 0 : index
    %c0_23 = arith.constant 0 : index
    %55 = vector.load %arg3[%c0_21, %c0_22, %c0_23] : memref<1x64x64xf32, #tpu.memory_space<vmem>>, vector<1x64x64xf32>
    %56 = vector.shape_cast %55 : vector<1x64x64xf32> to vector<64x64xf32>
    %cst_24 = arith.constant dense<0.000000e+00> : vector<16x64xf32>
    %57 = tpu.matmul %54, %56, %cst_24 {dimension_numbers = #tpu.dot_dimension_numbers<[1], [0], [0], [1], [0, 0, 1, 1], [], []>} : vector<16x64xf32>, vector<64x64xf32>, vector<16x64xf32> -> vector<16x64xf32>
    %58 = arith.addf %3, %57 : vector<16x64xf32>
    %c0_25 = arith.constant 0 : index
    %c0_26 = arith.constant 0 : index
    %c0_27 = arith.constant 0 : index
    %59 = vector.load %arg7[%c0_25, %c0_26, %c0_27] : memref<1x1x64xf32, #tpu.memory_space<vmem>>, vector<1x1x64xf32>
    %60 = vector.shape_cast %59 : vector<1x1x64xf32> to vector<1x64xf32>
    %61 = arith.mulf %58, %58 : vector<16x64xf32>
    %cst_28 = arith.constant dense<0.000000e+00> : vector<16xf32>
    %62 = vector.multi_reduction <add>, %61, %cst_28 [1] : vector<16x64xf32> to vector<16xf32>
    %63 = vector.shape_cast %62 : vector<16xf32> to vector<16x1xf32>
    %cst_29 = arith.constant 6.400000e+01 : f32
    %64 = vector.broadcast %cst_29 : f32 to vector<16x1xf32>
    %65 = arith.divf %63, %64 : vector<16x1xf32>
    %cst_30 = arith.constant 9.99999974E-6 : f32
    %66 = vector.broadcast %cst_30 : f32 to vector<16x1xf32>
    %67 = arith.addf %65, %66 : vector<16x1xf32>
    %68 = math.rsqrt %67 : vector<16x1xf32>
    %69 = vector.broadcast %68 : vector<16x1xf32> to vector<16x64xf32>
    %70 = arith.mulf %58, %69 : vector<16x64xf32>
    %71 = vector.broadcast %60 : vector<1x64xf32> to vector<16x64xf32>
    %72 = arith.mulf %70, %71 : vector<16x64xf32>
    %c0_31 = arith.constant 0 : index
    %c0_32 = arith.constant 0 : index
    %c0_33 = arith.constant 0 : index
    %73 = vector.load %arg4[%c0_31, %c0_32, %c0_33] : memref<1x64x384xf32, #tpu.memory_space<vmem>>, vector<1x64x384xf32>
    %74 = vector.shape_cast %73 : vector<1x64x384xf32> to vector<64x384xf32>
    %cst_34 = arith.constant dense<0.000000e+00> : vector<16x384xf32>
    %75 = tpu.matmul %72, %74, %cst_34 {dimension_numbers = #tpu.dot_dimension_numbers<[1], [0], [0], [1], [0, 0, 1, 1], [], []>} : vector<16x64xf32>, vector<64x384xf32>, vector<16x384xf32> -> vector<16x384xf32>
    %76 = vector.extract_strided_slice %75 {offsets = [0, 0], sizes = [16, 192], strides = [1, 1]} : vector<16x384xf32> to vector<16x192xf32>
    %77 = vector.extract_strided_slice %75 {offsets = [0, 192], sizes = [16, 192], strides = [1, 1]} : vector<16x384xf32> to vector<16x192xf32>
    %78 = arith.negf %76 : vector<16x192xf32>
    %79 = math.exp %78 : vector<16x192xf32>
    %cst_35 = arith.constant 1.000000e+00 : f32
    %80 = vector.broadcast %cst_35 : f32 to vector<16x192xf32>
    %81 = arith.addf %80, %79 : vector<16x192xf32>
    %82 = arith.divf %80, %81 : vector<16x192xf32>
    %83 = arith.mulf %76, %82 : vector<16x192xf32>
    %84 = arith.mulf %83, %77 : vector<16x192xf32>
    %c0_36 = arith.constant 0 : index
    %c0_37 = arith.constant 0 : index
    %c0_38 = arith.constant 0 : index
    %85 = vector.load %arg5[%c0_36, %c0_37, %c0_38] : memref<1x192x64xf32, #tpu.memory_space<vmem>>, vector<1x192x64xf32>
    %86 = vector.shape_cast %85 : vector<1x192x64xf32> to vector<192x64xf32>
    %cst_39 = arith.constant dense<0.000000e+00> : vector<16x64xf32>
    %87 = tpu.matmul %84, %86, %cst_39 {dimension_numbers = #tpu.dot_dimension_numbers<[1], [0], [0], [1], [0, 0, 1, 1], [], []>} : vector<16x192xf32>, vector<192x64xf32>, vector<16x64xf32> -> vector<16x64xf32>
    %88 = arith.addf %58, %87 : vector<16x64xf32>
    %c0_40 = arith.constant 0 : index
    %c0_41 = arith.constant 0 : index
    %89 = vector.load %arg15[%c0_40, %c0_41] : memref<16x64xf32, #tpu.memory_space<vmem>>, vector<16x64xf32>
    tpu.vector_store %arg15[%c0_40, %c0_41], %88 {strides = array<i32>} : memref<16x64xf32, #tpu.memory_space<vmem>>, vector<16x64xf32>,
    %c1_i32 = arith.constant 1 : i32
    %90 = arith.cmpi eq, %arg0, %c1_i32 : i32
    %91 = arith.extui %90 : i1 to i32
    %c0_i32_42 = arith.constant 0 : i32
    %92 = arith.cmpi ne, %91, %c0_i32_42 : i32
    scf.if %92 {
      %c0_43 = arith.constant 0 : index
      %c0_44 = arith.constant 0 : index
      %93 = vector.load %arg12[%c0_43, %c0_44] : memref<1x64xf32, #tpu.memory_space<vmem>>, vector<1x64xf32>
      %94 = arith.mulf %88, %88 : vector<16x64xf32>
      %cst_45 = arith.constant dense<0.000000e+00> : vector<16xf32>
      %95 = vector.multi_reduction <add>, %94, %cst_45 [1] : vector<16x64xf32> to vector<16xf32>
      %96 = vector.shape_cast %95 : vector<16xf32> to vector<16x1xf32>
      %cst_46 = arith.constant 6.400000e+01 : f32
      %97 = vector.broadcast %cst_46 : f32 to vector<16x1xf32>
      %98 = arith.divf %96, %97 : vector<16x1xf32>
      %cst_47 = arith.constant 9.99999974E-6 : f32
      %99 = vector.broadcast %cst_47 : f32 to vector<16x1xf32>
      %100 = arith.addf %98, %99 : vector<16x1xf32>
      %101 = math.rsqrt %100 : vector<16x1xf32>
      %102 = vector.broadcast %101 : vector<16x1xf32> to vector<16x64xf32>
      %103 = arith.mulf %88, %102 : vector<16x64xf32>
      %104 = vector.broadcast %93 : vector<1x64xf32> to vector<16x64xf32>
      %105 = arith.mulf %103, %104 : vector<16x64xf32>
      %c0_48 = arith.constant 0 : index
      %c0_49 = arith.constant 0 : index
      %106 = vector.load %arg13[%c0_48, %c0_49] : memref<64x128xf32, #tpu.memory_space<vmem>>, vector<64x128xf32>
      %cst_50 = arith.constant dense<0.000000e+00> : vector<16x128xf32>
      %107 = tpu.matmul %105, %106, %cst_50 {dimension_numbers = #tpu.dot_dimension_numbers<[1], [0], [0], [1], [0, 0, 1, 1], [], []>} : vector<16x64xf32>, vector<64x128xf32>, vector<16x128xf32> -> vector<16x128xf32>
      %c0_51 = arith.constant 0 : index
      %c0_52 = arith.constant 0 : index
      %108 = vector.load %arg14[%c0_51, %c0_52] : memref<16x128xf32, #tpu.memory_space<vmem>>, vector<16x128xf32>
      tpu.vector_store %arg14[%c0_51, %c0_52], %107 {strides = array<i32>} : memref<16x128xf32, #tpu.memory_space<vmem>>, vector<16x128xf32>,
    } else {
    }
    return
  }
  func.func @transform_0(%arg0: i32) -> (i32, i32) {
    %c0_i32 = arith.constant 0 : i32
    %c0_i32_0 = arith.constant 0 : i32
    %c0_i32_1 = arith.constant 0 : i32
    return %c0_i32, %c0_i32_0 : i32, i32
  }
  func.func @transform_1(%arg0: i32) -> (i32, i32, i32) {
    %c0_i32 = arith.constant 0 : i32
    %c0_i32_0 = arith.constant 0 : i32
    %c0_i32_1 = arith.constant 0 : i32
    return %arg0, %c0_i32, %c0_i32_0 : i32, i32, i32
  }
  func.func @transform_2(%arg0: i32) -> (i32, i32, i32) {
    %c0_i32 = arith.constant 0 : i32
    %c0_i32_0 = arith.constant 0 : i32
    %c0_i32_1 = arith.constant 0 : i32
    return %arg0, %c0_i32, %c0_i32_0 : i32, i32, i32
  }
  func.func @transform_3(%arg0: i32) -> (i32, i32, i32) {
    %c0_i32 = arith.constant 0 : i32
    %c0_i32_0 = arith.constant 0 : i32
    %c0_i32_1 = arith.constant 0 : i32
    return %arg0, %c0_i32, %c0_i32_0 : i32, i32, i32
  }
  func.func @transform_4(%arg0: i32) -> (i32, i32, i32) {
    %c0_i32 = arith.constant 0 : i32
    %c0_i32_0 = arith.constant 0 : i32
    %c0_i32_1 = arith.constant 0 : i32
    return %arg0, %c0_i32, %c0_i32_0 : i32, i32, i32
  }
  func.func @transform_5(%arg0: i32) -> (i32, i32, i32) {
    %c0_i32 = arith.constant 0 : i32
    %c0_i32_0 = arith.constant 0 : i32
    %c0_i32_1 = arith.constant 0 : i32
    return %arg0, %c0_i32, %c0_i32_0 : i32, i32, i32
  }
  func.func @transform_6(%arg0: i32) -> (i32, i32, i32) {
    %c0_i32 = arith.constant 0 : i32
    %c0_i32_0 = arith.constant 0 : i32
    %c0_i32_1 = arith.constant 0 : i32
    return %arg0, %c0_i32, %c0_i32_0 : i32, i32, i32
  }
  func.func @transform_7(%arg0: i32) -> (i32, i32) {
    %c0_i32 = arith.constant 0 : i32
    %c0_i32_0 = arith.constant 0 : i32
    %c0_i32_1 = arith.constant 0 : i32
    return %c0_i32, %c0_i32_0 : i32, i32
  }
  func.func @transform_8(%arg0: i32) -> (i32, i32) {
    %c0_i32 = arith.constant 0 : i32
    %c0_i32_0 = arith.constant 0 : i32
    %c0_i32_1 = arith.constant 0 : i32
    return %c0_i32, %c0_i32_0 : i32, i32
  }
  func.func @transform_9(%arg0: i32) -> (i32, i32) {
    %c0_i32 = arith.constant 0 : i32
    %c0_i32_0 = arith.constant 0 : i32
    %c0_i32_1 = arith.constant 0 : i32
    return %c0_i32, %c0_i32_0 : i32, i32
  }
  func.func @transform_10(%arg0: i32) -> (i32, i32) {
    %c0_i32 = arith.constant 0 : i32
    %c0_i32_0 = arith.constant 0 : i32
    %c0_i32_1 = arith.constant 0 : i32
    return %c0_i32, %c0_i32_0 : i32, i32
  }
  func.func @transform_11(%arg0: i32) -> (i32, i32) {
    %c0_i32 = arith.constant 0 : i32
    %c0_i32_0 = arith.constant 0 : i32
    %c0_i32_1 = arith.constant 0 : i32
    return %c0_i32, %c0_i32_0 : i32, i32
  }
  func.func @transform_12(%arg0: i32) -> (i32, i32) {
    %c0_i32 = arith.constant 0 : i32
    %c0_i32_0 = arith.constant 0 : i32
    %c0_i32_1 = arith.constant 0 : i32
    return %c0_i32, %c0_i32_0 : i32, i32
  }
  func.func @transform_13(%arg0: i32) -> (i32, i32) {
    %c0_i32 = arith.constant 0 : i32
    %c0_i32_0 = arith.constant 0 : i32
    %c0_i32_1 = arith.constant 0 : i32
    return %c0_i32, %c0_i32_0 : i32, i32
  }
}

</mosaic_0001>

<llo_original>
// kernel: tpu_custom_call.1
$region0: #{tpu_custom_call.1}
  #allocation0 [shape = 'u32[]', space=smem, size = 0x4, offset = 0x4, fixed_abs, tag = 'smem constant byte address 0x4 - core index']
  #allocation1 [shape = 'u32[144,128]{1,0:T(1,128)}', space=vmem, size = 0x12000, scoped, tag = 'internal scratch']
  #allocation2 [shape = 'f32[16,64]{1,0:T(8,128)}', space=vmem, size = 0x2000, scoped, tag = 'scratch operand']
  #allocation3 [shape = 'f32[16,16]{1,0:T(8,128)}', space=vmem, size = 0x2000, scoped, tag = 'scratch operand']
  %s0 = inlined_call_operand.vmem [shape: f32[16,64], index: 0, kind: input, shape index: {}]
  %s1 = inlined_call_operand.vmem [shape: f32[2,64,320], index: 1, kind: input, shape index: {}]
  %s2 = inlined_call_operand.vmem [shape: f32[2,64,64], index: 2, kind: input, shape index: {}]
  %s3 = inlined_call_operand.hbm [shape: f32[2,64,384], index: 3, kind: input, shape index: {}]
  %s4 = inlined_call_operand.vmem [shape: f32[2,192,64], index: 4, kind: input, shape index: {}]
  %s5 = inlined_call_operand.vmem [shape: f32[2,1,64], index: 5, kind: input, shape index: {}]
  %s6 = inlined_call_operand.vmem [shape: f32[2,1,64], index: 6, kind: input, shape index: {}]
  %s7 = inlined_call_operand.vmem [shape: f32[16,64], index: 7, kind: input, shape index: {}]
  %s8 = inlined_call_operand.vmem [shape: f32[16,64], index: 8, kind: input, shape index: {}]
  %s9 = inlined_call_operand.vmem [shape: s32[16,1], index: 9, kind: input, shape index: {}]
  %s10 = inlined_call_operand.vmem [shape: s32[1,16], index: 10, kind: input, shape index: {}]
  %s11 = inlined_call_operand.vmem [shape: f32[1,64], index: 11, kind: input, shape index: {}]
  %s12 = inlined_call_operand.vmem [shape: f32[64,128], index: 12, kind: input, shape index: {}]
  %s13 = inlined_call_operand.hbm [shape: f32[16,128], index: 13, kind: output, shape index: {}]
  %s14 = sld [smem:[#allocation0]]
  $region97: #{tpu_custom_call.1} parent=0
    _
  %s16 = ssub.s32 1, %s14
  %s17 = scalar_select 0, %s16, %s14
  $region1: #{tpu_custom_call.1} parent=0
    #allocation4 [shape = 'u8[196608]{0}', space=vmem, size = 0x30000, scoped, tag = 'input window, operand 3']
    #allocation5 [shape = 's32[2]{0}', space=sflag, size = 0x8, scoped, tag = 'scoped memory for tpu_custom_call.1']
    #allocation6 [shape = 's32[2]{0}', space=sflag, size = 0x8, scoped, tag = 'scoped memory for tpu_custom_call.1']
    #allocation7 [shape = 'u8[8192]{0}', space=vmem, size = 0x2000, scoped, tag = 'output window, operand 0, single buffered']
    %18 = vsyncpa [#allocation5], 0
    %s19 = scalar_lea.sflag [#allocation5], 1
    %20 = vsyncpa %s19, 0
    %21 = vsyncpa [#allocation6], 0
    loop: start=0, step=1, limit=4
    $region2: #{tpu_custom_call.1} parent=1 // loop_pre_header
      _
    $region3: #{tpu_custom_call.1} parent=1 // loop_header
      %s23 = sphi 0, %s27
      %p24 = scmp.ge.s32.totalorder %s23, 4
      %s31 = sphi 0, %s31
      %s33 = sphi 0, %s31
      %s34 = sphi 0, %s33
      %s48 = sphi 0, %s34
      %s54 = sphi 0, %s56
      %s57 = sphi 0, %s54
      %s58 = sphi 0, %s57
      %s74 = sphi 0, %s58
      %s80 = sphi 0, %s82
      %s83 = sphi 0, %s80
      %s84 = sphi 0, %s83
      %s100 = sphi 0, %s84
      %s106 = sphi 0, %s108
      %s109 = sphi 0, %s106
      %s110 = sphi 0, %s109
      %s126 = sphi 0, %s110
      %s132 = sphi 0, %s134
      %s135 = sphi 0, %s132
      %s136 = sphi 0, %s135
      %s152 = sphi 0, %s136
      %s158 = sphi 0, %s160
      %s161 = sphi 0, %s158
      %s162 = sphi 0, %s161
      %s178 = sphi 0, %s162
      %s184 = sphi 0, %s186
      %s187 = sphi 0, %s184
      %s188 = sphi 0, %s187
      %s204 = sphi 0, %s188
      %s208 = sphi 0, %s208
      %s210 = sphi 0, %s208
      %s211 = sphi 0, %s210
      %s225 = sphi 0, %s211
      %s229 = sphi 0, %s229
      %s231 = sphi 0, %s229
      %s232 = sphi 0, %s231
      %s246 = sphi 0, %s232
      %s250 = sphi 0, %s250
      %s252 = sphi 0, %s250
      %s253 = sphi 0, %s252
      %s267 = sphi 0, %s253
      %s271 = sphi 0, %s271
      %s273 = sphi 0, %s271
      %s274 = sphi 0, %s273
      %s288 = sphi 0, %s274
      %s292 = sphi 0, %s292
      %s294 = sphi 0, %s292
      %s295 = sphi 0, %s294
      %s309 = sphi 0, %s295
      %s313 = sphi 0, %s313
      %s315 = sphi 0, %s313
      %s316 = sphi 0, %s315
      %s330 = sphi 0, %s316
      %s334 = sphi 0, %s334
      %s336 = sphi 0, %s334
      %s337 = sphi 0, %s336
      %s351 = sphi 0, %s337
    $region4: #{tpu_custom_call.1} parent=1 // loop_header_branch
      %26 = sbr.rel (%p24) target = $region8
    $region5: #{tpu_custom_call.1} parent=1 // loop_body
      %s28 = ssub.s32 %s23, 1
      %s29 = ssub.s32 %s23, 2
      %s30 = sadd.s32 %s23, 1
      %s32 = sadd.s32 %s31, 1
      %p35 = scmp.eq.s32.totalorder %s23, 1
      %p36 = scmp.ne.s32.totalorder %s31, %s33
      %p37 = scmp.eq.s32.totalorder %s23, 0
      %p38 = por %p36, %p37
      %p39 = scmp.ne.s32.totalorder %s31, %s33
      %p40 = scmp.eq.s32.totalorder %s28, 1
      %p41 = por %p39, %p40
      %p42 = scmp.ne.s32.totalorder %s33, %s34
      %p43 = scmp.eq.s32.totalorder %s28, 0
      %p44 = por %p42, %p43
      %p45 = scmp.ne.s32.totalorder %s33, %s34
      %p46 = scmp.eq.s32.totalorder %s29, 1
      %p47 = por %p45, %p46
      %p49 = scmp.ne.s32.totalorder %s34, %s48
      %p50 = scmp.eq.s32.totalorder %s29, 0
      %p51 = por %p49, %p50
      %s52 = ssub.s32 %s23, %s30
      %p53 = scmp.eq.s32.totalorder %s52, 0
      %s55 = sadd.s32 %s54, 1
      %s56 = scalar_select %p53, %s54, %s55
      %p59 = pneg %p53
      %p60 = scmp.eq.s32.totalorder %s23, 1
      %p61 = por %p59, %p60
      %p62 = scmp.ne.s32.totalorder %s54, %s57
      %p63 = scmp.eq.s32.totalorder %s23, 0
      %p64 = por %p62, %p63
      %p65 = scmp.ne.s32.totalorder %s54, %s57
      %p66 = scmp.eq.s32.totalorder %s28, 1
      %p67 = por %p65, %p66
      %p68 = scmp.ne.s32.totalorder %s57, %s58
      %p69 = scmp.eq.s32.totalorder %s28, 0
      %p70 = por %p68, %p69
      %p71 = scmp.ne.s32.totalorder %s57, %s58
      %p72 = scmp.eq.s32.totalorder %s29, 1
      %p73 = por %p71, %p72
      %p75 = scmp.ne.s32.totalorder %s58, %s74
      %p76 = scmp.eq.s32.totalorder %s29, 0
      %p77 = por %p75, %p76
      %s78 = ssub.s32 %s23, %s30
      %p79 = scmp.eq.s32.totalorder %s78, 0
      %s81 = sadd.s32 %s80, 1
      %s82 = scalar_select %p79, %s80, %s81
      %p85 = pneg %p79
      %p86 = scmp.eq.s32.totalorder %s23, 1
      %p87 = por %p85, %p86
      %p88 = scmp.ne.s32.totalorder %s80, %s83
      %p89 = scmp.eq.s32.totalorder %s23, 0
      %p90 = por %p88, %p89
      %p91 = scmp.ne.s32.totalorder %s80, %s83
      %p92 = scmp.eq.s32.totalorder %s28, 1
      %p93 = por %p91, %p92
      %p94 = scmp.ne.s32.totalorder %s83, %s84
      %p95 = scmp.eq.s32.totalorder %s28, 0
      %p96 = por %p94, %p95
      %p97 = scmp.ne.s32.totalorder %s83, %s84
      %p98 = scmp.eq.s32.totalorder %s29, 1
      %p99 = por %p97, %p98
      %p101 = scmp.ne.s32.totalorder %s84, %s100
      %p102 = scmp.eq.s32.totalorder %s29, 0
      %p103 = por %p101, %p102
      %s104 = ssub.s32 %s23, %s30
      %p105 = scmp.eq.s32.totalorder %s104, 0
      %s107 = sadd.s32 %s106, 1
      %s108 = scalar_select %p105, %s106, %s107
      %p111 = pneg %p105
      %p112 = scmp.eq.s32.totalorder %s23, 1
      %p113 = por %p111, %p112
      %p114 = scmp.ne.s32.totalorder %s106, %s109
      %p115 = scmp.eq.s32.totalorder %s23, 0
      %p116 = por %p114, %p115
      %p117 = scmp.ne.s32.totalorder %s106, %s109
      %p118 = scmp.eq.s32.totalorder %s28, 1
      %p119 = por %p117, %p118
      %p120 = scmp.ne.s32.totalorder %s109, %s110
      %p121 = scmp.eq.s32.totalorder %s28, 0
      %p122 = por %p120, %p121
      %p123 = scmp.ne.s32.totalorder %s109, %s110
      %p124 = scmp.eq.s32.totalorder %s29, 1
      %p125 = por %p123, %p124
      %p127 = scmp.ne.s32.totalorder %s110, %s126
      %p128 = scmp.eq.s32.totalorder %s29, 0
      %p129 = por %p127, %p128
      %s130 = ssub.s32 %s23, %s30
      %p131 = scmp.eq.s32.totalorder %s130, 0
      %s133 = sadd.s32 %s132, 1
      %s134 = scalar_select %p131, %s132, %s133
      %p137 = pneg %p131
      %p138 = scmp.eq.s32.totalorder %s23, 1
      %p139 = por %p137, %p138
      %p140 = scmp.ne.s32.totalorder %s132, %s135
      %p141 = scmp.eq.s32.totalorder %s23, 0
      %p142 = por %p140, %p141
      %p143 = scmp.ne.s32.totalorder %s132, %s135
      %p144 = scmp.eq.s32.totalorder %s28, 1
      %p145 = por %p143, %p144
      %p146 = scmp.ne.s32.totalorder %s135, %s136
      %p147 = scmp.eq.s32.totalorder %s28, 0
      %p148 = por %p146, %p147
      %p149 = scmp.ne.s32.totalorder %s135, %s136
      %p150 = scmp.eq.s32.totalorder %s29, 1
      %p151 = por %p149, %p150
      %p153 = scmp.ne.s32.totalorder %s136, %s152
      %p154 = scmp.eq.s32.totalorder %s29, 0
      %p155 = por %p153, %p154
      %s156 = ssub.s32 %s23, %s30
      %p157 = scmp.eq.s32.totalorder %s156, 0
      %s159 = sadd.s32 %s158, 1
      %s160 = scalar_select %p157, %s158, %s159
      %p163 = pneg %p157
      %p164 = scmp.eq.s32.totalorder %s23, 1
      %p165 = por %p163, %p164
      %p166 = scmp.ne.s32.totalorder %s158, %s161
      %p167 = scmp.eq.s32.totalorder %s23, 0
      %p168 = por %p166, %p167
      %p169 = scmp.ne.s32.totalorder %s158, %s161
      %p170 = scmp.eq.s32.totalorder %s28, 1
      %p171 = por %p169, %p170
      %p172 = scmp.ne.s32.totalorder %s161, %s162
      %p173 = scmp.eq.s32.totalorder %s28, 0
      %p174 = por %p172, %p173
      %p175 = scmp.ne.s32.totalorder %s161, %s162
      %p176 = scmp.eq.s32.totalorder %s29, 1
      %p177 = por %p175, %p176
      %p179 = scmp.ne.s32.totalorder %s162, %s178
      %p180 = scmp.eq.s32.totalorder %s29, 0
      %p181 = por %p179, %p180
      %s182 = ssub.s32 %s23, %s30
      %p183 = scmp.eq.s32.totalorder %s182, 0
      %s185 = sadd.s32 %s184, 1
      %s186 = scalar_select %p183, %s184, %s185
      %p189 = pneg %p183
      %p190 = scmp.eq.s32.totalorder %s23, 1
      %p191 = por %p189, %p190
      %p192 = scmp.ne.s32.totalorder %s184, %s187
      %p193 = scmp.eq.s32.totalorder %s23, 0
      %p194 = por %p192, %p193
      %p195 = scmp.ne.s32.totalorder %s184, %s187
      %p196 = scmp.eq.s32.totalorder %s28, 1
      %p197 = por %p195, %p196
      %p198 = scmp.ne.s32.totalorder %s187, %s188
      %p199 = scmp.eq.s32.totalorder %s28, 0
      %p200 = por %p198, %p199
      %p201 = scmp.ne.s32.totalorder %s187, %s188
      %p202 = scmp.eq.s32.totalorder %s29, 1
      %p203 = por %p201, %p202
      %p205 = scmp.ne.s32.totalorder %s188, %s204
      %p206 = scmp.eq.s32.totalorder %s29, 0
      %p207 = por %p205, %p206
      %s209 = sadd.s32 %s208, 1
      %p212 = scmp.eq.s32.totalorder %s23, 1
      %p213 = scmp.ne.s32.totalorder %s208, %s210
      %p214 = scmp.eq.s32.totalorder %s23, 0
      %p215 = por %p213, %p214
      %p216 = scmp.ne.s32.totalorder %s208, %s210
      %p217 = scmp.eq.s32.totalorder %s28, 1
      %p218 = por %p216, %p217
      %p219 = scmp.ne.s32.totalorder %s210, %s211
      %p220 = scmp.eq.s32.totalorder %s28, 0
      %p221 = por %p219, %p220
      %p222 = scmp.ne.s32.totalorder %s210, %s211
      %p223 = scmp.eq.s32.totalorder %s29, 1
      %p224 = por %p222, %p223
      %p226 = scmp.ne.s32.totalorder %s211, %s225
      %p227 = scmp.eq.s32.totalorder %s29, 0
      %p228 = por %p226, %p227
      %s230 = sadd.s32 %s229, 1
      %p233 = scmp.eq.s32.totalorder %s23, 1
      %p234 = scmp.ne.s32.totalorder %s229, %s231
      %p235 = scmp.eq.s32.totalorder %s23, 0
      %p236 = por %p234, %p235
      %p237 = scmp.ne.s32.totalorder %s229, %s231
      %p238 = scmp.eq.s32.totalorder %s28, 1
      %p239 = por %p237, %p238
      %p240 = scmp.ne.s32.totalorder %s231, %s232
      %p241 = scmp.eq.s32.totalorder %s28, 0
      %p242 = por %p240, %p241
      %p243 = scmp.ne.s32.totalorder %s231, %s232
      %p244 = scmp.eq.s32.totalorder %s29, 1
      %p245 = por %p243, %p244
      %p247 = scmp.ne.s32.totalorder %s232, %s246
      %p248 = scmp.eq.s32.totalorder %s29, 0
      %p249 = por %p247, %p248
      %s251 = sadd.s32 %s250, 1
      %p254 = scmp.eq.s32.totalorder %s23, 1
      %p255 = scmp.ne.s32.totalorder %s250, %s252
      %p256 = scmp.eq.s32.totalorder %s23, 0
      %p257 = por %p255, %p256
      %p258 = scmp.ne.s32.totalorder %s250, %s252
      %p259 = scmp.eq.s32.totalorder %s28, 1
      %p260 = por %p258, %p259
      %p261 = scmp.ne.s32.totalorder %s252, %s253
      %p262 = scmp.eq.s32.totalorder %s28, 0
      %p263 = por %p261, %p262
      %p264 = scmp.ne.s32.totalorder %s252, %s253
      %p265 = scmp.eq.s32.totalorder %s29, 1
      %p266 = por %p264, %p265
      %p268 = scmp.ne.s32.totalorder %s253, %s267
      %p269 = scmp.eq.s32.totalorder %s29, 0
      %p270 = por %p268, %p269
      %s272 = sadd.s32 %s271, 1
      %p275 = scmp.eq.s32.totalorder %s23, 1
      %p276 = scmp.ne.s32.totalorder %s271, %s273
      %p277 = scmp.eq.s32.totalorder %s23, 0
      %p278 = por %p276, %p277
      %p279 = scmp.ne.s32.totalorder %s271, %s273
      %p280 = scmp.eq.s32.totalorder %s28, 1
      %p281 = por %p279, %p280
      %p282 = scmp.ne.s32.totalorder %s273, %s274
      %p283 = scmp.eq.s32.totalorder %s28, 0
      %p284 = por %p282, %p283
      %p285 = scmp.ne.s32.totalorder %s273, %s274
      %p286 = scmp.eq.s32.totalorder %s29, 1
      %p287 = por %p285, %p286
      %p289 = scmp.ne.s32.totalorder %s274, %s288
      %p290 = scmp.eq.s32.totalorder %s29, 0
      %p291 = por %p289, %p290
      %s293 = sadd.s32 %s292, 1
      %p296 = scmp.eq.s32.totalorder %s23, 1
      %p297 = scmp.ne.s32.totalorder %s292, %s294
      %p298 = scmp.eq.s32.totalorder %s23, 0
      %p299 = por %p297, %p298
      %p300 = scmp.ne.s32.totalorder %s292, %s294
      %p301 = scmp.eq.s32.totalorder %s28, 1
      %p302 = por %p300, %p301
      %p303 = scmp.ne.s32.totalorder %s294, %s295
      %p304 = scmp.eq.s32.totalorder %s28, 0
      %p305 = por %p303, %p304
      %p306 = scmp.ne.s32.totalorder %s294, %s295
      %p307 = scmp.eq.s32.totalorder %s29, 1
      %p308 = por %p306, %p307
      %p310 = scmp.ne.s32.totalorder %s295, %s309
      %p311 = scmp.eq.s32.totalorder %s29, 0
      %p312 = por %p310, %p311
      %s314 = sadd.s32 %s313, 1
      %p317 = scmp.eq.s32.totalorder %s23, 1
      %p318 = scmp.ne.s32.totalorder %s313, %s315
      %p319 = scmp.eq.s32.totalorder %s23, 0
      %p320 = por %p318, %p319
      %p321 = scmp.ne.s32.totalorder %s313, %s315
      %p322 = scmp.eq.s32.totalorder %s28, 1
      %p323 = por %p321, %p322
      %p324 = scmp.ne.s32.totalorder %s315, %s316
      %p325 = scmp.eq.s32.totalorder %s28, 0
      %p326 = por %p324, %p325
      %p327 = scmp.ne.s32.totalorder %s315, %s316
      %p328 = scmp.eq.s32.totalorder %s29, 1
      %p329 = por %p327, %p328
      %p331 = scmp.ne.s32.totalorder %s316, %s330
      %p332 = scmp.eq.s32.totalorder %s29, 0
      %p333 = por %p331, %p332
      %s335 = sadd.s32 %s334, 1
      %p338 = scmp.eq.s32.totalorder %s23, 1
      %p339 = scmp.ne.s32.totalorder %s334, %s336
      %p340 = scmp.eq.s32.totalorder %s23, 0
      %p341 = por %p339, %p340
      %p342 = scmp.ne.s32.totalorder %s334, %s336
      %p343 = scmp.eq.s32.totalorder %s28, 1
      %p344 = por %p342, %p343
      %p345 = scmp.ne.s32.totalorder %s336, %s337
      %p346 = scmp.eq.s32.totalorder %s28, 0
      %p347 = por %p345, %p346
      %p348 = scmp.ne.s32.totalorder %s336, %s337
      %p349 = scmp.eq.s32.totalorder %s29, 1
      %p350 = por %p348, %p349
      %p352 = scmp.ne.s32.totalorder %s337, %s351
      %p353 = scmp.eq.s32.totalorder %s29, 0
      %p354 = por %p352, %p353
      %p355 = scmp.le.s32.totalorder 1, %s23
      %p356 = scmp.lt.s32.totalorder %s23, 3
      %p357 = pnand %p355, %p356
      %p358 = pneg %p357
      // Predicated region
      $region9: #{tpu_custom_call.1} parent=5 // pred_check
        _
      $region10: #{tpu_custom_call.1} parent=5 // pred_check_branch
        %360 = sbr.rel (%p357) target = $region12
      $region11: #{tpu_custom_call.1} parent=5 // pred_region
        %s361 = ssub.s32 %s23, 1
        // Predicated region
        $region13: #{tpu_custom_call.1} parent=11 // pred_check
          %p362 = pneg %p44
        $region14: #{tpu_custom_call.1} parent=11 // pred_check_branch
          %364 = sbr.rel (%p362) target = $region16
        $region15: #{tpu_custom_call.1} parent=11 // pred_region
          _
        $region16: #{tpu_custom_call.1} parent=11 // pred_fallthru
          _
        // Predicated region
        $region17: #{tpu_custom_call.1} parent=11 // pred_check
          %p365 = pneg %p221
        $region18: #{tpu_custom_call.1} parent=11 // pred_check_branch
          %367 = sbr.rel (%p365) target = $region20
        $region19: #{tpu_custom_call.1} parent=11 // pred_region
          _
        $region20: #{tpu_custom_call.1} parent=11 // pred_fallthru
          _
        // Predicated region
        $region21: #{tpu_custom_call.1} parent=11 // pred_check
          %p368 = pneg %p242
        $region22: #{tpu_custom_call.1} parent=11 // pred_check_branch
          %370 = sbr.rel (%p368) target = $region24
        $region23: #{tpu_custom_call.1} parent=11 // pred_region
          _
        $region24: #{tpu_custom_call.1} parent=11 // pred_fallthru
          _
        // Predicated region
        $region25: #{tpu_custom_call.1} parent=11 // pred_check
          %p371 = pneg %p263
        $region26: #{tpu_custom_call.1} parent=11 // pred_check_branch
          %373 = sbr.rel (%p371) target = $region28
        $region27: #{tpu_custom_call.1} parent=11 // pred_region
          _
        $region28: #{tpu_custom_call.1} parent=11 // pred_fallthru
          _
        // Predicated region
        $region29: #{tpu_custom_call.1} parent=11 // pred_check
          %p374 = pneg %p284
        $region30: #{tpu_custom_call.1} parent=11 // pred_check_branch
          %376 = sbr.rel (%p374) target = $region32
        $region31: #{tpu_custom_call.1} parent=11 // pred_region
          _
        $region32: #{tpu_custom_call.1} parent=11 // pred_fallthru
          _
        // Predicated region
        $region33: #{tpu_custom_call.1} parent=11 // pred_check
          %p377 = pneg %p305
        $region34: #{tpu_custom_call.1} parent=11 // pred_check_branch
          %379 = sbr.rel (%p377) target = $region36
        $region35: #{tpu_custom_call.1} parent=11 // pred_region
          _
        $region36: #{tpu_custom_call.1} parent=11 // pred_fallthru
          _
        // Predicated region
        $region37: #{tpu_custom_call.1} parent=11 // pred_check
          %p380 = pneg %p326
        $region38: #{tpu_custom_call.1} parent=11 // pred_check_branch
          %382 = sbr.rel (%p380) target = $region40
        $region39: #{tpu_custom_call.1} parent=11 // pred_region
          _
        $region40: #{tpu_custom_call.1} parent=11 // pred_fallthru
          _
      $region12: #{tpu_custom_call.1} parent=5 // pred_fallthru
        _
      %p383 = scmp.lt.s32.totalorder %s23, 2
      // Predicated region
      $region41: #{tpu_custom_call.1} parent=5 // pred_check
        %p384 = pneg %p383
      $region42: #{tpu_custom_call.1} parent=5 // pred_check_branch
        %386 = sbr.rel (%p384) target = $region44
      $region43: #{tpu_custom_call.1} parent=5 // pred_region
        // Predicated region
        $region45: #{tpu_custom_call.1} parent=43 // pred_check
          %p387 = pneg %p64
        $region46: #{tpu_custom_call.1} parent=43 // pred_check_branch
          %389 = sbr.rel (%p387) target = $region48
        $region47: #{tpu_custom_call.1} parent=43 // pred_region
          %p390 = scmp.lt.s32.totalorder %s23, 1
          %s391 = scalar_select %p390, %s23, 1
          %s392 = smul.addr %s391, 24
          %s393 = smul.addr %s392, 8
          %s394 = scalar_lea.vmem %s1, %s393
        $region48: #{tpu_custom_call.1} parent=43 // pred_fallthru
          _
        // Predicated region
        $region49: #{tpu_custom_call.1} parent=43 // pred_check
          %p395 = pneg %p90
        $region50: #{tpu_custom_call.1} parent=43 // pred_check_branch
          %397 = sbr.rel (%p395) target = $region52
        $region51: #{tpu_custom_call.1} parent=43 // pred_region
          %p398 = scmp.lt.s32.totalorder %s23, 1
          %s399 = scalar_select %p398, %s23, 1
          %s400 = smul.addr %s399, 8
          %s401 = smul.addr %s400, 8
          %s402 = scalar_lea.vmem %s2, %s401
        $region52: #{tpu_custom_call.1} parent=43 // pred_fallthru
          _
        // Predicated region
        $region53: #{tpu_custom_call.1} parent=43 // pred_check
          %p403 = pneg %p116
        $region54: #{tpu_custom_call.1} parent=43 // pred_check_branch
          %405 = sbr.rel (%p403) target = $region56
        $region55: #{tpu_custom_call.1} parent=43 // pred_region
          %s406 = sand.u32 %s106, 1
          %s407 = scalar_lea.sflag [#allocation5], %s406
          %s408 = sand.u32 %s106, 1
          %s409 = smul.addr %s408, 192
          %s410 = scalar_lea.vmem [#allocation4], %s409
          %s412 = ssub.s32 3072, 3072
          %413 = vsyncadd %s407, %s412
          %s414 = smul.addr %s23, 24
          %s415 = smul.addr %s414, 128
          %s416 = scalar_lea.hbm %s3, %s415
          %s417 = sshll.u32 %s410, 4
          %s418 = int_to_ptr.vmem [resolvable:$true] %s417
          %423 = dma.hbm_to_vmem [thread:$0]  %s416, 3072, %s418, %s407, 384, 384, 24
        $region56: #{tpu_custom_call.1} parent=43 // pred_fallthru
          _
        // Predicated region
        $region57: #{tpu_custom_call.1} parent=43 // pred_check
          %p424 = pneg %p142
        $region58: #{tpu_custom_call.1} parent=43 // pred_check_branch
          %426 = sbr.rel (%p424) target = $region60
        $region59: #{tpu_custom_call.1} parent=43 // pred_region
          %p427 = scmp.lt.s32.totalorder %s23, 1
          %s428 = scalar_select %p427, %s23, 1
          %s429 = smul.addr %s428, 24
          %s430 = smul.addr %s429, 8
          %s431 = scalar_lea.vmem %s4, %s430
        $region60: #{tpu_custom_call.1} parent=43 // pred_fallthru
          _
        // Predicated region
        $region61: #{tpu_custom_call.1} parent=43 // pred_check
          %p432 = pneg %p168
        $region62: #{tpu_custom_call.1} parent=43 // pred_check_branch
          %434 = sbr.rel (%p432) target = $region64
        $region63: #{tpu_custom_call.1} parent=43 // pred_region
          %p435 = scmp.lt.s32.totalorder %s23, 1
          %s436 = scalar_select %p435, %s23, 1
          %s437 = scalar_lea.vmem %s5, %s436
        $region64: #{tpu_custom_call.1} parent=43 // pred_fallthru
          _
        // Predicated region
        $region65: #{tpu_custom_call.1} parent=43 // pred_check
          %p438 = pneg %p194
        $region66: #{tpu_custom_call.1} parent=43 // pred_check_branch
          %440 = sbr.rel (%p438) target = $region68
        $region67: #{tpu_custom_call.1} parent=43 // pred_region
          %p441 = scmp.lt.s32.totalorder %s23, 1
          %s442 = scalar_select %p441, %s23, 1
          %s443 = scalar_lea.vmem %s6, %s442
        $region68: #{tpu_custom_call.1} parent=43 // pred_fallthru
          _
      $region44: #{tpu_custom_call.1} parent=5 // pred_fallthru
        _
      %p444 = scmp.le.s32.totalorder 1, %s23
      %p445 = scmp.lt.s32.totalorder %s23, 3
      %p446 = pnand %p444, %p445
      %p447 = pneg %p446
      // Predicated region
      $region69: #{tpu_custom_call.1} parent=5 // pred_check
        _
      $region70: #{tpu_custom_call.1} parent=5 // pred_check_branch
        %449 = sbr.rel (%p446) target = $region72
      $region71: #{tpu_custom_call.1} parent=5 // pred_region
        %s450 = ssub.s32 %s23, 1
        %s451 = sand.u32 %s109, 1
        %s452 = scalar_lea.sflag [#allocation5], %s451
        %s453 = sand.u32 %s109, 1
        %s454 = smul.addr %s453, 192
        %s455 = scalar_lea.vmem [#allocation4], %s454
        // Predicated region
        $region73: #{tpu_custom_call.1} parent=71 // pred_check
          %p456 = pneg %p122
        $region74: #{tpu_custom_call.1} parent=71 // pred_check_branch
          %458 = sbr.rel (%p456) target = $region76
        $region75: #{tpu_custom_call.1} parent=71 // pred_region
          %459 = dma.done %s452, 3072
        $region76: #{tpu_custom_call.1} parent=71 // pred_fallthru
          _
        %p460 = pneg %p44
        %p461 = pneg %p41
        %p462 = scmp.lt.s32.totalorder %s28, 1
        %s463 = scalar_select %p462, %s28, 1
        %s464 = smul.addr %s463, 24
        %s465 = smul.addr %s464, 8
        %s466 = scalar_lea.vmem %s1, %s465
        %p467 = pneg %p70
        %p468 = pneg %p67
        %p469 = scmp.lt.s32.totalorder %s28, 1
        %s470 = scalar_select %p469, %s28, 1
        %s471 = smul.addr %s470, 8
        %s472 = smul.addr %s471, 8
        %s473 = scalar_lea.vmem %s2, %s472
        %p474 = pneg %p96
        %p475 = pneg %p93
        %s476 = sand.u32 %s109, 1
        %s477 = scalar_lea.sflag [#allocation5], %s476
        %s478 = sand.u32 %s109, 1
        %s479 = smul.addr %s478, 192
        %s480 = scalar_lea.vmem [#allocation4], %s479
        %p481 = pneg %p122
        %p482 = pneg %p119
        %p483 = scmp.lt.s32.totalorder %s28, 1
        %s484 = scalar_select %p483, %s28, 1
        %s485 = smul.addr %s484, 24
        %s486 = smul.addr %s485, 8
        %s487 = scalar_lea.vmem %s4, %s486
        %p488 = pneg %p148
        %p489 = pneg %p145
        %p490 = scmp.lt.s32.totalorder %s28, 1
        %s491 = scalar_select %p490, %s28, 1
        %s492 = scalar_lea.vmem %s5, %s491
        %p493 = pneg %p174
        %p494 = pneg %p171
        %p495 = scmp.lt.s32.totalorder %s28, 1
        %s496 = scalar_select %p495, %s28, 1
        %s497 = scalar_lea.vmem %s6, %s496
        %p498 = pneg %p200
        %p499 = pneg %p197
        %p500 = pneg %p221
        %p501 = pneg %p218
        %p502 = pneg %p242
        %p503 = pneg %p239
        %p504 = pneg %p263
        %p505 = pneg %p260
        %p506 = pneg %p284
        %p507 = pneg %p281
        %p508 = pneg %p305
        %p509 = pneg %p302
        %p510 = pneg %p326
        %p511 = pneg %p323
        %p512 = pneg %p347
        %p513 = pneg %p344
        %p514 = scmp.lt.s32.totalorder %s28, 1
        %s515 = scalar_select %p514, %s28, 1
        %s516 = smul.addr %s515, 24
        %s517 = smul.addr %s516, 8
        %s518 = scalar_lea.vmem %s1, %s517
        %p519 = scmp.lt.s32.totalorder %s28, 1
        %s520 = scalar_select %p519, %s28, 1
        %s521 = smul.addr %s520, 8
        %s522 = smul.addr %s521, 8
        %s523 = scalar_lea.vmem %s2, %s522
        %p524 = scmp.lt.s32.totalorder %s28, 1
        %s525 = scalar_select %p524, %s28, 1
        %s526 = smul.addr %s525, 24
        %s527 = smul.addr %s526, 8
        %s528 = scalar_lea.vmem %s4, %s527
        %p529 = scmp.lt.s32.totalorder %s28, 1
        %s530 = scalar_select %p529, %s28, 1
        %s531 = scalar_lea.vmem %s5, %s530
        %p532 = scmp.lt.s32.totalorder %s28, 1
        %s533 = scalar_select %p532, %s28, 1
        %s534 = scalar_lea.vmem %s6, %s533
        %p535 = scmp.eq.s32.totalorder %s28, 0
        // Predicated region
        $region77: #{tpu_custom_call.1} parent=71 // pred_check
          %p536 = pneg %p535
        $region78: #{tpu_custom_call.1} parent=71 // pred_check_branch
          %538 = sbr.rel (%p536) target = $region80
        $region79: #{tpu_custom_call.1} parent=71 // pred_region
          %v539 = vld [vmem:[%s0] sm:$0xff]
          %v540 = vld [vmem:[%s0 + $0x8] sm:$0xff]
          %vm541 = vcmask 523264
          %542 = vst.msk [vmem:[#allocation2] sm:$0xff] %vm541, %v539
          %543 = vst.msk [vmem:[#allocation2 + $0x8] sm:$0xff] %vm541, %v540
          %v544 = vlaneseq
          %v545 = vshrl.u32 %v544, 7
          %v546 = vadd.s32 %v545, 8
          %v547 = vlaneseq
          %v548 = vand.u32 %v547, 127
          %vm549 = vcmp.ge.s32.totalorder %v545, %v548
          %vm550 = vcmp.ge.s32.totalorder %v546, %v548
          %v551 = vld [vmem:[%s9] sm:$0xff]
          %v552 = vld [vmem:[%s9 + $0x8] sm:$0xff]
          %v553 = vld [vmem:[%s10] sm:$0x1]
          %554 = vset.pattern.permute.xlu0 0
          %555 = vperm.xlu0 %554, %v551
          %v556 = vpop.permute.xlu0 %555
          %557 = vset.pattern.permute.xlu0 0
          %558 = vperm.xlu0 %557, %v552
          %v559 = vpop.permute.xlu0 %558
          %v560 = vlaneseq
          %v561 = vshrl.u32 %v560, 7
          %v562 = vsub.s32 0, %v561
          %v563 = vrot.slane %v553, %v562
          %vm564 = vcmp.eq.s32.totalorder %v556, %v563
          %vm565 = vcmp.eq.s32.totalorder %v559, %v563
          %vm566 = vmand %vm549, %vm564
          %vm567 = vmand %vm550, %vm565
          %v568 = vsel %vm566, 0.0, -1e+30
          %v569 = vsel %vm567, 0.0, -1e+30
          %vm570 = vcmask 130048
          %571 = vst.msk [vmem:[#allocation3] sm:$0xff] %vm570, %v568
          %572 = vst.msk [vmem:[#allocation3 + $0x8] sm:$0xff] %vm570, %v569
        $region80: #{tpu_custom_call.1} parent=71 // pred_fallthru
          _
        %v573 = vld [vmem:[#allocation2] sm:$0xff]
        %v574 = vld [vmem:[#allocation2 + $0x8] sm:$0xff]
        %v575 = vld [vmem:[%s531] sm:$0x1]
        %v576 = vmul.f32 %v573, %v573
        %v577 = vmul.f32 %v574, %v574
        %vm578 = vcmask 523264
        %v579 = vsel %vm578, %v576, 0.0
        %580 = vadd.xlane.f32.xlu0 %v579
        %v581 = vpop.xlane.xlu0 %580
        %v582 = vsel %vm578, %v577, 0.0
        %583 = vadd.xlane.f32.xlu0 %v582
        %v584 = vpop.xlane.xlu0 %583
        %v585 = vrcp.pop 64.0
        %v586 = vmul.f32 %v581, %v585
        %v587 = vmul.f32 %v584, %v585
        %v588 = vadd.f32 %v586, 1e-05
        %v589 = vadd.f32 %v587, 1e-05
        %v590 = vrsqrt.pop %v588
        %v591 = vrsqrt.pop %v589
        %v592 = vmul.f32 %v573, %v590
        %v593 = vmul.f32 %v574, %v591
        %v595 = vlaneseq
        %v596 = vshrl.u32 %v595, 7
        %v597 = vsub.s32 0, %v596
        %v598 = vrot.slane %v575, %v597
        %v600 = vmul.f32 %v592, %v598
        %v601 = vmul.f32 %v593, %v598
        %v602 = vld [vmem:[%s518] sm:$0xff]
        %v603 = vld [vmem:[%s518 + $0x8] sm:$0xff]
        %v604 = vld [vmem:[%s518 + $0x10] sm:$0xff]
        %v605 = vld [vmem:[%s518 + $0x18] sm:$0xff]
        %v606 = vld [vmem:[%s518 + $0x20] sm:$0xff]
        %v607 = vld [vmem:[%s518 + $0x28] sm:$0xff]
        %v608 = vld [vmem:[%s518 + $0x30] sm:$0xff]
        %v609 = vld [vmem:[%s518 + $0x38] sm:$0xff]
        %v610 = vld [vmem:[%s518 + $0x40] sm:$0xff]
        %v611 = vld [vmem:[%s518 + $0x48] sm:$0xff]
        %v612 = vld [vmem:[%s518 + $0x50] sm:$0xff]
        %v613 = vld [vmem:[%s518 + $0x58] sm:$0xff]
        %v614 = vld [vmem:[%s518 + $0x60] sm:$0xff]
        %v615 = vld [vmem:[%s518 + $0x68] sm:$0xff]
        %v616 = vld [vmem:[%s518 + $0x70] sm:$0xff]
        %v617 = vld [vmem:[%s518 + $0x78] sm:$0xff]
        %v618 = vld [vmem:[%s518 + $0x80] sm:$0xff]
        %v619 = vld [vmem:[%s518 + $0x88] sm:$0xff]
        %v620 = vld [vmem:[%s518 + $0x90] sm:$0xff]
        %v621 = vld [vmem:[%s518 + $0x98] sm:$0xff]
        %v622 = vld [vmem:[%s518 + $0xa0] sm:$0xff]
        %v623 = vld [vmem:[%s518 + $0xa8] sm:$0xff]
        %v624 = vld [vmem:[%s518 + $0xb0] sm:$0xff]
        %v625 = vld [vmem:[%s518 + $0xb8] sm:$0xff]
        %v627 = vsel %vm578, %v600, 0
        %v630 = vsel %vm578, %v601, 0
        %632 = vmatprep.subr.mxu0 0.0
        %633 = vmatpush1.msra.mxu0 0.0
        %634 = vmatprep.subr.mxu0 0.0
        %635 = vmatpush1.msra.mxu0 0.0
        %636 = vmatprep.subr.mxu0 0.0
        %637 = vmatpush1.msra.mxu0 0.0
        %638 = vmatprep.subr.mxu0 0.0
        %639 = vmatpush1.msra.mxu0 0.0
        %640 = vmatprep.subr.mxu0 0.0
        %641 = vmatpush1.msra.mxu0 0.0
        %642 = vmatprep.subr.mxu0 0.0
        %643 = vmatpush1.msra.mxu0 0.0
        %644 = vmatprep.subr.mxu0 0.0
        %645 = vmatpush1.msra.mxu0 0.0
        %646 = vmatprep.subr.mxu0 0.0
        %647 = vmatpush1.msra.mxu0 0.0
        %648 = vmatprep.subr.mxu0 %v624
        %649 = vmatpush1.msra.mxu0 %v623
        %650 = vmatprep.subr.mxu0 %v621
        %651 = vmatpush1.msra.mxu0 %v620
        %652 = vmatprep.subr.mxu0 %v618
        %653 = vmatpush1.msra.mxu0 %v617
        %654 = vmatprep.subr.mxu0 %v615
        %655 = vmatpush1.msra.mxu0 %v614
        %656 = vmatprep.subr.mxu0 %v612
        %657 = vmatpush1.msra.mxu0 %v611
        %658 = vmatprep.subr.mxu0 %v609
        %659 = vmatpush1.msra.mxu0 %v608
        %660 = vmatprep.subr.mxu0 %v606
        %661 = vmatpush1.msra.mxu0 %v605
        %662 = vmatprep.subr.mxu0 %v603
        %663 = vmatpush1.msra.mxu0 %v602
        %664 = vmatprep.subr.mxu0 0.0
        %665 = vmatpush2.msra.mxu0 0.0
        %666 = vmatprep.subr.mxu0 0.0
        %667 = vmatpush2.msra.mxu0 0.0
        %668 = vmatprep.subr.mxu0 0.0
        %669 = vmatpush2.msra.mxu0 0.0
        %670 = vmatprep.subr.mxu0 0.0
        %671 = vmatpush2.msra.mxu0 0.0
        %672 = vmatprep.subr.mxu0 0.0
        %673 = vmatpush2.msra.mxu0 0.0
        %674 = vmatprep.subr.mxu0 0.0
        %675 = vmatpush2.msra.mxu0 0.0
        %676 = vmatprep.subr.mxu0 0.0
        %677 = vmatpush2.msra.mxu0 0.0
        %678 = vmatprep.subr.mxu0 0.0
        %679 = vmatpush2.msra.mxu0 0.0
        %680 = vmatprep.subr.mxu0 0.0
        %681 = vmatpush2.msra.mxu0 0.0
        %682 = vmatprep.subr.mxu0 0.0
        %683 = vmatpush2.msra.mxu0 0.0
        %684 = vmatprep.subr.mxu0 0.0
        %685 = vmatpush2.msra.mxu0 0.0
        %686 = vmatprep.subr.mxu0 0.0
        %687 = vmatpush2.msra.mxu0 0.0
        %688 = vmatprep.subr.mxu0 0.0
        %689 = vmatpush2.msra.mxu0 0.0
        %690 = vmatprep.subr.mxu0 0.0
        %691 = vmatpush2.msra.mxu0 0.0
        %692 = vmatprep.subr.mxu0 0.0
        %693 = vmatpush2.msra.mxu0 0.0
        %694 = vmatprep.subr.mxu0 0.0
        %695 = vmatpush2.msra.mxu0 0.0
        %696 = vmatprep.mubr.f32.mxu0 0.0
        %697 = vmatmul.mubr.f32.gmra.mxu0 %v627
        %v698 = vpop.f32.mrf.mxu0
        %v699 = vadd.f32 0.0, %v698
        %v700 = vpop.f32.mrf.mxu0
        %v701 = vadd.f32 0.0, %v700
        %702 = vmatprep.mubr.f32.mxu0 0.0
        %703 = vmatmul.mubr.f32.gmra.mxu0 %v630
        %v704 = vpop.f32.mrf.mxu0
        %v705 = vadd.f32 0.0, %v704
        %v706 = vpop.f32.mrf.mxu0
        %v707 = vadd.f32 0.0, %v706
        %708 = vdwg.mxu0
        %709 = vmatprep.subr.mxu0 0.0
        %710 = vmatpush1.msra.mxu0 0.0
        %711 = vmatprep.subr.mxu0 0.0
        %712 = vmatpush1.msra.mxu0 0.0
        %713 = vmatprep.subr.mxu0 0.0
        %714 = vmatpush1.msra.mxu0 0.0
        %715 = vmatprep.subr.mxu0 0.0
        %716 = vmatpush1.msra.mxu0 0.0
        %717 = vmatprep.subr.mxu0 0.0
        %718 = vmatpush1.msra.mxu0 0.0
        %719 = vmatprep.subr.mxu0 0.0
        %720 = vmatpush1.msra.mxu0 0.0
        %721 = vmatprep.subr.mxu0 0.0
        %722 = vmatpush1.msra.mxu0 0.0
        %723 = vmatprep.subr.mxu0 0.0
        %724 = vmatpush1.msra.mxu0 0.0
        %725 = vmatprep.subr.mxu0 0.0
        %726 = vmatpush1.msra.mxu0 %v625
        %727 = vmatprep.subr.mxu0 0.0
        %728 = vmatpush1.msra.mxu0 %v622
        %729 = vmatprep.subr.mxu0 0.0
        %730 = vmatpush1.msra.mxu0 %v619
        %731 = vmatprep.subr.mxu0 0.0
        %732 = vmatpush1.msra.mxu0 %v616
        %733 = vmatprep.subr.mxu0 0.0
        %734 = vmatpush1.msra.mxu0 %v613
        %735 = vmatprep.subr.mxu0 0.0
        %736 = vmatpush1.msra.mxu0 %v610
        %737 = vmatprep.subr.mxu0 0.0
        %738 = vmatpush1.msra.mxu0 %v607
        %739 = vmatprep.subr.mxu0 0.0
        %740 = vmatpush1.msra.mxu0 %v604
        %741 = vmatprep.subr.mxu0 0.0
        %742 = vmatpush2.msra.mxu0 0.0
        %743 = vmatprep.subr.mxu0 0.0
        %744 = vmatpush2.msra.mxu0 0.0
        %745 = vmatprep.subr.mxu0 0.0
        %746 = vmatpush2.msra.mxu0 0.0
        %747 = vmatprep.subr.mxu0 0.0
        %748 = vmatpush2.msra.mxu0 0.0
        %749 = vmatprep.subr.mxu0 0.0
        %750 = vmatpush2.msra.mxu0 0.0
        %751 = vmatprep.subr.mxu0 0.0
        %752 = vmatpush2.msra.mxu0 0.0
        %753 = vmatprep.subr.mxu0 0.0
        %754 = vmatpush2.msra.mxu0 0.0
        %755 = vmatprep.subr.mxu0 0.0
        %756 = vmatpush2.msra.mxu0 0.0
        %757 = vmatprep.subr.mxu0 0.0
        %758 = vmatpush2.msra.mxu0 0.0
        %759 = vmatprep.subr.mxu0 0.0
        %760 = vmatpush2.msra.mxu0 0.0
        %761 = vmatprep.subr.mxu0 0.0
        %762 = vmatpush2.msra.mxu0 0.0
        %763 = vmatprep.subr.mxu0 0.0
        %764 = vmatpush2.msra.mxu0 0.0
        %765 = vmatprep.subr.mxu0 0.0
        %766 = vmatpush2.msra.mxu0 0.0
        %767 = vmatprep.subr.mxu0 0.0
        %768 = vmatpush2.msra.mxu0 0.0
        %769 = vmatprep.subr.mxu0 0.0
        %770 = vmatpush2.msra.mxu0 0.0
        %771 = vmatprep.subr.mxu0 0.0
        %772 = vmatpush2.msra.mxu0 0.0
        %773 = vmatprep.mubr.f32.mxu0 0.0
        %774 = vmatmul.mubr.f32.gmra.mxu0 %v627
        %v775 = vpop.f32.mrf.mxu0
        %v776 = vadd.f32 0.0, %v775
        %v777 = vpop.f32.mrf.mxu0
        %778 = vmatprep.mubr.f32.mxu0 0.0
        %779 = vmatmul.mubr.f32.gmra.mxu0 %v630
        %v780 = vpop.f32.mrf.mxu0
        %v781 = vadd.f32 0.0, %v780
        %v782 = vpop.f32.mrf.mxu0
        %783 = vdwg.mxu0
        %v784 = vld [vmem:[%s7] sm:$0xff]
        %v785 = vld [vmem:[%s7 + $0x8] sm:$0xff]
        %v786 = vld [vmem:[%s8] sm:$0xff]
        %v787 = vld [vmem:[%s8 + $0x8] sm:$0xff]
        %v788 = vmul.f32 %v699, %v784
        %v789 = vmul.f32 %v705, %v785
        %792 = vrot.lane.b32.xlu0 %v786, 64
        %v793 = vpop.permute.xlu0 %792
        %794 = vrot.lane.b32.xlu0 %v787, 64
        %v795 = vpop.permute.xlu0 %794
        %v798 = vmul.f32 %v701, %v793
        %v799 = vmul.f32 %v707, %v795
        %802 = vrot.lane.b32.xlu0 %v798, 64
        %v803 = vpop.permute.xlu0 %802
        %804 = vrot.lane.b32.xlu0 %v799, 64
        %v805 = vpop.permute.xlu0 %804
        %v808 = vadd.f32 %v788, %v803
        %v809 = vadd.f32 %v789, %v805
        %812 = vrot.lane.b32.xlu0 %v784, 64
        %v813 = vpop.permute.xlu0 %812
        %814 = vrot.lane.b32.xlu0 %v785, 64
        %v815 = vpop.permute.xlu0 %814
        %v818 = vmul.f32 %v699, %v813
        %v819 = vmul.f32 %v705, %v815
        %v820 = vmul.f32 %v776, %v786
        %v821 = vmul.f32 %v781, %v787
        %824 = vrot.lane.b32.xlu0 %v820, 64
        %v825 = vpop.permute.xlu0 %824
        %826 = vrot.lane.b32.xlu0 %v821, 64
        %v827 = vpop.permute.xlu0 %826
        %v830 = vadd.f32 %v818, %v825
        %v831 = vadd.f32 %v819, %v827
        %834 = vrot.lane.b32.xlu0 %v808, 112
        %v835 = vpop.permute.xlu0 %834
        %836 = vrot.lane.b32.xlu0 %v809, 112
        %v837 = vpop.permute.xlu0 %836
        %838 = vrot.lane.b32.xlu0 %v808, 96
        %v839 = vpop.permute.xlu0 %838
        %840 = vrot.lane.b32.xlu0 %v809, 96
        %v841 = vpop.permute.xlu0 %840
        %842 = vrot.lane.b32.xlu0 %v808, 80
        %v843 = vpop.permute.xlu0 %842
        %844 = vrot.lane.b32.xlu0 %v809, 80
        %v845 = vpop.permute.xlu0 %844
        %848 = vrot.lane.b32.xlu0 %v830, 112
        %v849 = vpop.permute.xlu0 %848
        %850 = vrot.lane.b32.xlu0 %v831, 112
        %v851 = vpop.permute.xlu0 %850
        %852 = vrot.lane.b32.xlu0 %v830, 96
        %v853 = vpop.permute.xlu0 %852
        %854 = vrot.lane.b32.xlu0 %v831, 96
        %v855 = vpop.permute.xlu0 %854
        %856 = vrot.lane.b32.xlu0 %v830, 80
        %v857 = vpop.permute.xlu0 %856
        %858 = vrot.lane.b32.xlu0 %v831, 80
        %v859 = vpop.permute.xlu0 %858
        %862 = vrot.lane.b32.xlu0 %v701, 112
        %v863 = vpop.permute.xlu0 %862
        %864 = vrot.lane.b32.xlu0 %v707, 112
        %v865 = vpop.permute.xlu0 %864
        %868 = vrot.lane.b32.xlu0 %v701, 96
        %v869 = vpop.permute.xlu0 %868
        %870 = vrot.lane.b32.xlu0 %v707, 96
        %v871 = vpop.permute.xlu0 %870
        %874 = vrot.lane.b32.xlu0 %v701, 80
        %v875 = vpop.permute.xlu0 %874
        %876 = vrot.lane.b32.xlu0 %v707, 80
        %v877 = vpop.permute.xlu0 %876
        %v880 = vld [vmem:[#allocation3] sm:$0xff]
        %v881 = vld [vmem:[#allocation3 + $0x8] sm:$0xff]
        %882 = vrot.lane.b32.xlu0 %v830, 64
        %v883 = vpop.permute.xlu0 %882
        %884 = vrot.lane.b32.xlu0 %v831, 64
        %v885 = vpop.permute.xlu0 %884
        %886 = vrot.lane.b32.xlu0 %v849, 64
        %v887 = vpop.permute.xlu0 %886
        %888 = vrot.lane.b32.xlu0 %v851, 64
        %v889 = vpop.permute.xlu0 %888
        %890 = vrot.lane.b32.xlu0 %v853, 64
        %v891 = vpop.permute.xlu0 %890
        %892 = vrot.lane.b32.xlu0 %v855, 64
        %v893 = vpop.permute.xlu0 %892
        %894 = vrot.lane.b32.xlu0 %v857, 64
        %v895 = vpop.permute.xlu0 %894
        %896 = vrot.lane.b32.xlu0 %v859, 64
        %v897 = vpop.permute.xlu0 %896
        %906 = vxpose.xlu0.b32.start [1/16] %v883, 128
        %907 = vxpose.xlu0.b32.cont [2/16] %v885, 128
        %908 = vxpose.xlu0.b32.cont [3/16] 0.0, 128
        %909 = vxpose.xlu0.b32.cont [4/16] 0.0, 128
        %910 = vxpose.xlu0.b32.cont [5/16] 0.0, 128
        %911 = vxpose.xlu0.b32.cont [6/16] 0.0, 128
        %912 = vxpose.xlu0.b32.cont [7/16] 0.0, 128
        %913 = vxpose.xlu0.b32.cont [8/16] 0.0, 128
        %914 = vxpose.xlu0.b32.cont [9/16] 0.0, 128
        %915 = vxpose.xlu0.b32.cont [10/16] 0.0, 128
        %916 = vxpose.xlu0.b32.cont [11/16] 0.0, 128
        %917 = vxpose.xlu0.b32.cont [12/16] 0.0, 128
        %918 = vxpose.xlu0.b32.cont [13/16] 0.0, 128
        %919 = vxpose.xlu0.b32.cont [14/16] 0.0, 128
        %920 = vxpose.xlu0.b32.cont [15/16] 0.0, 128
        %921 = vxpose.xlu0.b32.end [16/16] 0.0, 128
        %v922 = vpop.trf.xlu0
        %v923 = vpop.trf.xlu0
        %v924 = vpop.trf.xlu0
        %v925 = vpop.trf.xlu0
        %v926 = vpop.trf.xlu0
        %v927 = vpop.trf.xlu0
        %v928 = vpop.trf.xlu0
        %v929 = vpop.trf.xlu0
        %v930 = vpop.trf.xlu0
        %v931 = vpop.trf.xlu0
        %v932 = vpop.trf.xlu0
        %v933 = vpop.trf.xlu0
        %v934 = vpop.trf.xlu0
        %v935 = vpop.trf.xlu0
        %v936 = vpop.trf.xlu0
        %v937 = vpop.trf.xlu0
        %938 = vxpose.xlu0.b32.start [1/16] %v887, 128
        %939 = vxpose.xlu0.b32.cont [2/16] %v889, 128
        %940 = vxpose.xlu0.b32.cont [3/16] 0.0, 128
        %941 = vxpose.xlu0.b32.cont [4/16] 0.0, 128
        %942 = vxpose.xlu0.b32.cont [5/16] 0.0, 128
        %943 = vxpose.xlu0.b32.cont [6/16] 0.0, 128
        %944 = vxpose.xlu0.b32.cont [7/16] 0.0, 128
        %945 = vxpose.xlu0.b32.cont [8/16] 0.0, 128
        %946 = vxpose.xlu0.b32.cont [9/16] 0.0, 128
        %947 = vxpose.xlu0.b32.cont [10/16] 0.0, 128
        %948 = vxpose.xlu0.b32.cont [11/16] 0.0, 128
        %949 = vxpose.xlu0.b32.cont [12/16] 0.0, 128
        %950 = vxpose.xlu0.b32.cont [13/16] 0.0, 128
        %951 = vxpose.xlu0.b32.cont [14/16] 0.0, 128
        %952 = vxpose.xlu0.b32.cont [15/16] 0.0, 128
        %953 = vxpose.xlu0.b32.end [16/16] 0.0, 128
        %v954 = vpop.trf.xlu0
        %v955 = vpop.trf.xlu0
        %v956 = vpop.trf.xlu0
        %v957 = vpop.trf.xlu0
        %v958 = vpop.trf.xlu0
        %v959 = vpop.trf.xlu0
        %v960 = vpop.trf.xlu0
        %v961 = vpop.trf.xlu0
        %v962 = vpop.trf.xlu0
        %v963 = vpop.trf.xlu0
        %v964 = vpop.trf.xlu0
        %v965 = vpop.trf.xlu0
        %v966 = vpop.trf.xlu0
        %v967 = vpop.trf.xlu0
        %v968 = vpop.trf.xlu0
        %v969 = vpop.trf.xlu0
        %970 = vxpose.xlu0.b32.start [1/16] %v891, 128
        %971 = vxpose.xlu0.b32.cont [2/16] %v893, 128
        %972 = vxpose.xlu0.b32.cont [3/16] 0.0, 128
        %973 = vxpose.xlu0.b32.cont [4/16] 0.0, 128
        %974 = vxpose.xlu0.b32.cont [5/16] 0.0, 128
        %975 = vxpose.xlu0.b32.cont [6/16] 0.0, 128
        %976 = vxpose.xlu0.b32.cont [7/16] 0.0, 128
        %977 = vxpose.xlu0.b32.cont [8/16] 0.0, 128
        %978 = vxpose.xlu0.b32.cont [9/16] 0.0, 128
        %979 = vxpose.xlu0.b32.cont [10/16] 0.0, 128
        %980 = vxpose.xlu0.b32.cont [11/16] 0.0, 128
        %981 = vxpose.xlu0.b32.cont [12/16] 0.0, 128
        %982 = vxpose.xlu0.b32.cont [13/16] 0.0, 128
        %983 = vxpose.xlu0.b32.cont [14/16] 0.0, 128
        %984 = vxpose.xlu0.b32.cont [15/16] 0.0, 128
        %985 = vxpose.xlu0.b32.end [16/16] 0.0, 128
        %v986 = vpop.trf.xlu0
        %v987 = vpop.trf.xlu0
        %v988 = vpop.trf.xlu0
        %v989 = vpop.trf.xlu0
        %v990 = vpop.trf.xlu0
        %v991 = vpop.trf.xlu0
        %v992 = vpop.trf.xlu0
        %v993 = vpop.trf.xlu0
        %v994 = vpop.trf.xlu0
        %v995 = vpop.trf.xlu0
        %v996 = vpop.trf.xlu0
        %v997 = vpop.trf.xlu0
        %v998 = vpop.trf.xlu0
        %v999 = vpop.trf.xlu0
        %v1000 = vpop.trf.xlu0
        %v1001 = vpop.trf.xlu0
        %1002 = vxpose.xlu0.b32.start [1/16] %v895, 128
        %1003 = vxpose.xlu0.b32.cont [2/16] %v897, 128
        %1004 = vxpose.xlu0.b32.cont [3/16] 0.0, 128
        %1005 = vxpose.xlu0.b32.cont [4/16] 0.0, 128
        %1006 = vxpose.xlu0.b32.cont [5/16] 0.0, 128
        %1007 = vxpose.xlu0.b32.cont [6/16] 0.0, 128
        %1008 = vxpose.xlu0.b32.cont [7/16] 0.0, 128
        %1009 = vxpose.xlu0.b32.cont [8/16] 0.0, 128
        %1010 = vxpose.xlu0.b32.cont [9/16] 0.0, 128
        %1011 = vxpose.xlu0.b32.cont [10/16] 0.0, 128
        %1012 = vxpose.xlu0.b32.cont [11/16] 0.0, 128
        %1013 = vxpose.xlu0.b32.cont [12/16] 0.0, 128
        %1014 = vxpose.xlu0.b32.cont [13/16] 0.0, 128
        %1015 = vxpose.xlu0.b32.cont [14/16] 0.0, 128
        %1016 = vxpose.xlu0.b32.cont [15/16] 0.0, 128
        %1017 = vxpose.xlu0.b32.end [16/16] 0.0, 128
        %v1018 = vpop.trf.xlu0
        %v1019 = vpop.trf.xlu0
        %v1020 = vpop.trf.xlu0
        %v1021 = vpop.trf.xlu0
        %v1022 = vpop.trf.xlu0
        %v1023 = vpop.trf.xlu0
        %v1024 = vpop.trf.xlu0
        %v1025 = vpop.trf.xlu0
        %v1026 = vpop.trf.xlu0
        %v1027 = vpop.trf.xlu0
        %v1028 = vpop.trf.xlu0
        %v1029 = vpop.trf.xlu0
        %v1030 = vpop.trf.xlu0
        %v1031 = vpop.trf.xlu0
        %v1032 = vpop.trf.xlu0
        %v1033 = vpop.trf.xlu0
        %vm1034 = vcmask 130048
        %v1035 = vsel %vm1034, %v808, 0
        %v1037 = vsel %vm1034, %v809, 0
        %1039 = vmatprep.subr.mxu0 0.0
        %1040 = vmatpush1.msra.mxu0 0.0
        %1041 = vmatprep.subr.mxu0 0.0
        %1042 = vmatpush1.msra.mxu0 0.0
        %1043 = vmatprep.subr.mxu0 0.0
        %1044 = vmatpush1.msra.mxu0 0.0
        %1045 = vmatprep.subr.mxu0 0.0
        %1046 = vmatpush1.msra.mxu0 0.0
        %1047 = vmatprep.subr.mxu0 0.0
        %1048 = vmatpush1.msra.mxu0 0.0
        %1049 = vmatprep.subr.mxu0 0.0
        %1050 = vmatpush1.msra.mxu0 0.0
        %1051 = vmatprep.subr.mxu0 0.0
        %1052 = vmatpush1.msra.mxu0 0.0
        %1053 = vmatprep.subr.mxu0 0.0
        %1054 = vmatpush1.msra.mxu0 0.0
        %1055 = vmatprep.subr.mxu0 0.0
        %1056 = vmatpush1.msra.mxu0 0.0
        %1057 = vmatprep.subr.mxu0 0.0
        %1058 = vmatpush1.msra.mxu0 0.0
        %1059 = vmatprep.subr.mxu0 0.0
        %1060 = vmatpush1.msra.mxu0 0.0
        %1061 = vmatprep.subr.mxu0 0.0
        %1062 = vmatpush1.msra.mxu0 0.0
        %1063 = vmatprep.subr.mxu0 0.0
        %1064 = vmatpush1.msra.mxu0 0.0
        %1065 = vmatprep.subr.mxu0 0.0
        %1066 = vmatpush1.msra.mxu0 0.0
        %1067 = vmatprep.subr.mxu0 0.0
        %1068 = vmatpush1.msra.mxu0 %v923
        %1069 = vmatprep.subr.mxu0 0.0
        %1070 = vmatpush1.msra.mxu0 %v922
        %1071 = vmatprep.subr.mxu0 0.0
        %1072 = vmatpush2.msra.mxu0 0.0
        %1073 = vmatprep.subr.mxu0 0.0
        %1074 = vmatpush2.msra.mxu0 0.0
        %1075 = vmatprep.subr.mxu0 0.0
        %1076 = vmatpush2.msra.mxu0 0.0
        %1077 = vmatprep.subr.mxu0 0.0
        %1078 = vmatpush2.msra.mxu0 0.0
        %1079 = vmatprep.subr.mxu0 0.0
        %1080 = vmatpush2.msra.mxu0 0.0
        %1081 = vmatprep.subr.mxu0 0.0
        %1082 = vmatpush2.msra.mxu0 0.0
        %1083 = vmatprep.subr.mxu0 0.0
        %1084 = vmatpush2.msra.mxu0 0.0
        %1085 = vmatprep.subr.mxu0 0.0
        %1086 = vmatpush2.msra.mxu0 0.0
        %1087 = vmatprep.subr.mxu0 0.0
        %1088 = vmatpush2.msra.mxu0 0.0
        %1089 = vmatprep.subr.mxu0 0.0
        %1090 = vmatpush2.msra.mxu0 0.0
        %1091 = vmatprep.subr.mxu0 0.0
        %1092 = vmatpush2.msra.mxu0 0.0
        %1093 = vmatprep.subr.mxu0 0.0
        %1094 = vmatpush2.msra.mxu0 0.0
        %1095 = vmatprep.subr.mxu0 0.0
        %1096 = vmatpush2.msra.mxu0 0.0
        %1097 = vmatprep.subr.mxu0 0.0
        %1098 = vmatpush2.msra.mxu0 0.0
        %1099 = vmatprep.subr.mxu0 0.0
        %1100 = vmatpush2.msra.mxu0 0.0
        %1101 = vmatprep.subr.mxu0 0.0
        %1102 = vmatpush2.msra.mxu0 0.0
        %1103 = vmatprep.mubr.f32.mxu0 0.0
        %1104 = vmatmul.mubr.f32.gmra.mxu0 %v1035
        %v1105 = vpop.f32.mrf.mxu0
        %v1106 = vadd.f32 %v880, %v1105
        %v1107 = vpop.f32.mrf.mxu0
        %1108 = vmatprep.mubr.f32.mxu0 0.0
        %1109 = vmatmul.mubr.f32.gmra.mxu0 %v1037
        %v1110 = vpop.f32.mrf.mxu0
        %v1111 = vadd.f32 %v881, %v1110
        %v1112 = vpop.f32.mrf.mxu0
        %1113 = vdwg.mxu0
        %v1114 = vsel %vm1034, %v835, 0
        %v1116 = vsel %vm1034, %v837, 0
        %1118 = vmatprep.subr.mxu0 0.0
        %1119 = vmatpush1.msra.mxu0 0.0
        %1120 = vmatprep.subr.mxu0 0.0
        %1121 = vmatpush1.msra.mxu0 0.0
        %1122 = vmatprep.subr.mxu0 0.0
        %1123 = vmatpush1.msra.mxu0 0.0
        %1124 = vmatprep.subr.mxu0 0.0
        %1125 = vmatpush1.msra.mxu0 0.0
        %1126 = vmatprep.subr.mxu0 0.0
        %1127 = vmatpush1.msra.mxu0 0.0
        %1128 = vmatprep.subr.mxu0 0.0
        %1129 = vmatpush1.msra.mxu0 0.0
        %1130 = vmatprep.subr.mxu0 0.0
        %1131 = vmatpush1.msra.mxu0 0.0
        %1132 = vmatprep.subr.mxu0 0.0
        %1133 = vmatpush1.msra.mxu0 0.0
        %1134 = vmatprep.subr.mxu0 0.0
        %1135 = vmatpush1.msra.mxu0 0.0
        %1136 = vmatprep.subr.mxu0 0.0
        %1137 = vmatpush1.msra.mxu0 0.0
        %1138 = vmatprep.subr.mxu0 0.0
        %1139 = vmatpush1.msra.mxu0 0.0
        %1140 = vmatprep.subr.mxu0 0.0
        %1141 = vmatpush1.msra.mxu0 0.0
        %1142 = vmatprep.subr.mxu0 0.0
        %1143 = vmatpush1.msra.mxu0 0.0
        %1144 = vmatprep.subr.mxu0 0.0
        %1145 = vmatpush1.msra.mxu0 0.0
        %1146 = vmatprep.subr.mxu0 0.0
        %1147 = vmatpush1.msra.mxu0 %v955
        %1148 = vmatprep.subr.mxu0 0.0
        %1149 = vmatpush1.msra.mxu0 %v954
        %1150 = vmatprep.subr.mxu0 0.0
        %1151 = vmatpush2.msra.mxu0 0.0
        %1152 = vmatprep.subr.mxu0 0.0
        %1153 = vmatpush2.msra.mxu0 0.0
        %1154 = vmatprep.subr.mxu0 0.0
        %1155 = vmatpush2.msra.mxu0 0.0
        %1156 = vmatprep.subr.mxu0 0.0
        %1157 = vmatpush2.msra.mxu0 0.0
        %1158 = vmatprep.subr.mxu0 0.0
        %1159 = vmatpush2.msra.mxu0 0.0
        %1160 = vmatprep.subr.mxu0 0.0
        %1161 = vmatpush2.msra.mxu0 0.0
        %1162 = vmatprep.subr.mxu0 0.0
        %1163 = vmatpush2.msra.mxu0 0.0
        %1164 = vmatprep.subr.mxu0 0.0
        %1165 = vmatpush2.msra.mxu0 0.0
        %1166 = vmatprep.subr.mxu0 0.0
        %1167 = vmatpush2.msra.mxu0 0.0
        %1168 = vmatprep.subr.mxu0 0.0
        %1169 = vmatpush2.msra.mxu0 0.0
        %1170 = vmatprep.subr.mxu0 0.0
        %1171 = vmatpush2.msra.mxu0 0.0
        %1172 = vmatprep.subr.mxu0 0.0
        %1173 = vmatpush2.msra.mxu0 0.0
        %1174 = vmatprep.subr.mxu0 0.0
        %1175 = vmatpush2.msra.mxu0 0.0
        %1176 = vmatprep.subr.mxu0 0.0
        %1177 = vmatpush2.msra.mxu0 0.0
        %1178 = vmatprep.subr.mxu0 0.0
        %1179 = vmatpush2.msra.mxu0 0.0
        %1180 = vmatprep.subr.mxu0 0.0
        %1181 = vmatpush2.msra.mxu0 0.0
        %1182 = vmatprep.mubr.f32.mxu0 0.0
        %1183 = vmatmul.mubr.f32.gmra.mxu0 %v1114
        %v1184 = vpop.f32.mrf.mxu0
        %v1185 = vadd.f32 %v880, %v1184
        %v1186 = vpop.f32.mrf.mxu0
        %1187 = vmatprep.mubr.f32.mxu0 0.0
        %1188 = vmatmul.mubr.f32.gmra.mxu0 %v1116
        %v1189 = vpop.f32.mrf.mxu0
        %v1190 = vadd.f32 %v881, %v1189
        %v1191 = vpop.f32.mrf.mxu0
        %1192 = vdwg.mxu0
        %v1193 = vsel %vm1034, %v839, 0
        %v1195 = vsel %vm1034, %v841, 0
        %1197 = vmatprep.subr.mxu0 0.0
        %1198 = vmatpush1.msra.mxu0 0.0
        %1199 = vmatprep.subr.mxu0 0.0
        %1200 = vmatpush1.msra.mxu0 0.0
        %1201 = vmatprep.subr.mxu0 0.0
        %1202 = vmatpush1.msra.mxu0 0.0
        %1203 = vmatprep.subr.mxu0 0.0
        %1204 = vmatpush1.msra.mxu0 0.0
        %1205 = vmatprep.subr.mxu0 0.0
        %1206 = vmatpush1.msra.mxu0 0.0
        %1207 = vmatprep.subr.mxu0 0.0
        %1208 = vmatpush1.msra.mxu0 0.0
        %1209 = vmatprep.subr.mxu0 0.0
        %1210 = vmatpush1.msra.mxu0 0.0
        %1211 = vmatprep.subr.mxu0 0.0
        %1212 = vmatpush1.msra.mxu0 0.0
        %1213 = vmatprep.subr.mxu0 0.0
        %1214 = vmatpush1.msra.mxu0 0.0
        %1215 = vmatprep.subr.mxu0 0.0
        %1216 = vmatpush1.msra.mxu0 0.0
        %1217 = vmatprep.subr.mxu0 0.0
        %1218 = vmatpush1.msra.mxu0 0.0
        %1219 = vmatprep.subr.mxu0 0.0
        %1220 = vmatpush1.msra.mxu0 0.0
        %1221 = vmatprep.subr.mxu0 0.0
        %1222 = vmatpush1.msra.mxu0 0.0
        %1223 = vmatprep.subr.mxu0 0.0
        %1224 = vmatpush1.msra.mxu0 0.0
        %1225 = vmatprep.subr.mxu0 0.0
        %1226 = vmatpush1.msra.mxu0 %v987
        %1227 = vmatprep.subr.mxu0 0.0
        %1228 = vmatpush1.msra.mxu0 %v986
        %1229 = vmatprep.subr.mxu0 0.0
        %1230 = vmatpush2.msra.mxu0 0.0
        %1231 = vmatprep.subr.mxu0 0.0
        %1232 = vmatpush2.msra.mxu0 0.0
        %1233 = vmatprep.subr.mxu0 0.0
        %1234 = vmatpush2.msra.mxu0 0.0
        %1235 = vmatprep.subr.mxu0 0.0
        %1236 = vmatpush2.msra.mxu0 0.0
        %1237 = vmatprep.subr.mxu0 0.0
        %1238 = vmatpush2.msra.mxu0 0.0
        %1239 = vmatprep.subr.mxu0 0.0
        %1240 = vmatpush2.msra.mxu0 0.0
        %1241 = vmatprep.subr.mxu0 0.0
        %1242 = vmatpush2.msra.mxu0 0.0
        %1243 = vmatprep.subr.mxu0 0.0
        %1244 = vmatpush2.msra.mxu0 0.0
        %1245 = vmatprep.subr.mxu0 0.0
        %1246 = vmatpush2.msra.mxu0 0.0
        %1247 = vmatprep.subr.mxu0 0.0
        %1248 = vmatpush2.msra.mxu0 0.0
        %1249 = vmatprep.subr.mxu0 0.0
        %1250 = vmatpush2.msra.mxu0 0.0
        %1251 = vmatprep.subr.mxu0 0.0
        %1252 = vmatpush2.msra.mxu0 0.0
        %1253 = vmatprep.subr.mxu0 0.0
        %1254 = vmatpush2.msra.mxu0 0.0
        %1255 = vmatprep.subr.mxu0 0.0
        %1256 = vmatpush2.msra.mxu0 0.0
        %1257 = vmatprep.subr.mxu0 0.0
        %1258 = vmatpush2.msra.mxu0 0.0
        %1259 = vmatprep.subr.mxu0 0.0
        %1260 = vmatpush2.msra.mxu0 0.0
        %1261 = vmatprep.mubr.f32.mxu0 0.0
        %1262 = vmatmul.mubr.f32.gmra.mxu0 %v1193
        %v1263 = vpop.f32.mrf.mxu0
        %v1264 = vadd.f32 %v880, %v1263
        %v1265 = vpop.f32.mrf.mxu0
        %1266 = vmatprep.mubr.f32.mxu0 0.0
        %1267 = vmatmul.mubr.f32.gmra.mxu0 %v1195
        %v1268 = vpop.f32.mrf.mxu0
        %v1269 = vadd.f32 %v881, %v1268
        %v1270 = vpop.f32.mrf.mxu0
        %1271 = vdwg.mxu0
        %v1272 = vsel %vm1034, %v843, 0
        %v1274 = vsel %vm1034, %v845, 0
        %1276 = vmatprep.subr.mxu0 0.0
        %1277 = vmatpush1.msra.mxu0 0.0
        %1278 = vmatprep.subr.mxu0 0.0
        %1279 = vmatpush1.msra.mxu0 0.0
        %1280 = vmatprep.subr.mxu0 0.0
        %1281 = vmatpush1.msra.mxu0 0.0
        %1282 = vmatprep.subr.mxu0 0.0
        %1283 = vmatpush1.msra.mxu0 0.0
        %1284 = vmatprep.subr.mxu0 0.0
        %1285 = vmatpush1.msra.mxu0 0.0
        %1286 = vmatprep.subr.mxu0 0.0
        %1287 = vmatpush1.msra.mxu0 0.0
        %1288 = vmatprep.subr.mxu0 0.0
        %1289 = vmatpush1.msra.mxu0 0.0
        %1290 = vmatprep.subr.mxu0 0.0
        %1291 = vmatpush1.msra.mxu0 0.0
        %1292 = vmatprep.subr.mxu0 0.0
        %1293 = vmatpush1.msra.mxu0 0.0
        %1294 = vmatprep.subr.mxu0 0.0
        %1295 = vmatpush1.msra.mxu0 0.0
        %1296 = vmatprep.subr.mxu0 0.0
        %1297 = vmatpush1.msra.mxu0 0.0
        %1298 = vmatprep.subr.mxu0 0.0
        %1299 = vmatpush1.msra.mxu0 0.0
        %1300 = vmatprep.subr.mxu0 0.0
        %1301 = vmatpush1.msra.mxu0 0.0
        %1302 = vmatprep.subr.mxu0 0.0
        %1303 = vmatpush1.msra.mxu0 0.0
        %1304 = vmatprep.subr.mxu0 0.0
        %1305 = vmatpush1.msra.mxu0 %v1019
        %1306 = vmatprep.subr.mxu0 0.0
        %1307 = vmatpush1.msra.mxu0 %v1018
        %1308 = vmatprep.subr.mxu0 0.0
        %1309 = vmatpush2.msra.mxu0 0.0
        %1310 = vmatprep.subr.mxu0 0.0
        %1311 = vmatpush2.msra.mxu0 0.0
        %1312 = vmatprep.subr.mxu0 0.0
        %1313 = vmatpush2.msra.mxu0 0.0
        %1314 = vmatprep.subr.mxu0 0.0
        %1315 = vmatpush2.msra.mxu0 0.0
        %1316 = vmatprep.subr.mxu0 0.0
        %1317 = vmatpush2.msra.mxu0 0.0
        %1318 = vmatprep.subr.mxu0 0.0
        %1319 = vmatpush2.msra.mxu0 0.0
        %1320 = vmatprep.subr.mxu0 0.0
        %1321 = vmatpush2.msra.mxu0 0.0
        %1322 = vmatprep.subr.mxu0 0.0
        %1323 = vmatpush2.msra.mxu0 0.0
        %1324 = vmatprep.subr.mxu0 0.0
        %1325 = vmatpush2.msra.mxu0 0.0
        %1326 = vmatprep.subr.mxu0 0.0
        %1327 = vmatpush2.msra.mxu0 0.0
        %1328 = vmatprep.subr.mxu0 0.0
        %1329 = vmatpush2.msra.mxu0 0.0
        %1330 = vmatprep.subr.mxu0 0.0
        %1331 = vmatpush2.msra.mxu0 0.0
        %1332 = vmatprep.subr.mxu0 0.0
        %1333 = vmatpush2.msra.mxu0 0.0
        %1334 = vmatprep.subr.mxu0 0.0
        %1335 = vmatpush2.msra.mxu0 0.0
        %1336 = vmatprep.subr.mxu0 0.0
        %1337 = vmatpush2.msra.mxu0 0.0
        %1338 = vmatprep.subr.mxu0 0.0
        %1339 = vmatpush2.msra.mxu0 0.0
        %1340 = vmatprep.mubr.f32.mxu0 0.0
        %1341 = vmatmul.mubr.f32.gmra.mxu0 %v1272
        %v1342 = vpop.f32.mrf.mxu0
        %v1343 = vadd.f32 %v880, %v1342
        %v1344 = vpop.f32.mrf.mxu0
        %1345 = vmatprep.mubr.f32.mxu0 0.0
        %1346 = vmatmul.mubr.f32.gmra.mxu0 %v1274
        %v1347 = vpop.f32.mrf.mxu0
        %v1348 = vadd.f32 %v881, %v1347
        %v1349 = vpop.f32.mrf.mxu0
        %1350 = vdwg.mxu0
        %v1351 = vsel %vm1034, %v1106, -inf
        %1352 = vmax.xlane.f32.xlu0 %v1351
        %v1353 = vpop.xlane.xlu0 %1352
        %v1354 = vsel %vm1034, %v1111, -inf
        %1355 = vmax.xlane.f32.xlu0 %v1354
        %v1356 = vpop.xlane.xlu0 %1355
        %v1357 = vsel %vm1034, %v1185, -inf
        %1358 = vmax.xlane.f32.xlu0 %v1357
        %v1359 = vpop.xlane.xlu0 %1358
        %v1360 = vsel %vm1034, %v1190, -inf
        %1361 = vmax.xlane.f32.xlu0 %v1360
        %v1362 = vpop.xlane.xlu0 %1361
        %v1363 = vsel %vm1034, %v1264, -inf
        %1364 = vmax.xlane.f32.xlu0 %v1363
        %v1365 = vpop.xlane.xlu0 %1364
        %v1366 = vsel %vm1034, %v1269, -inf
        %1367 = vmax.xlane.f32.xlu0 %v1366
        %v1368 = vpop.xlane.xlu0 %1367
        %v1369 = vsel %vm1034, %v1343, -inf
        %1370 = vmax.xlane.f32.xlu0 %v1369
        %v1371 = vpop.xlane.xlu0 %1370
        %v1372 = vsel %vm1034, %v1348, -inf
        %1373 = vmax.xlane.f32.xlu0 %v1372
        %v1374 = vpop.xlane.xlu0 %1373
        %v1375 = vsub.f32 %v1106, %v1353
        %v1376 = vsub.f32 %v1111, %v1356
        %v1377 = vsub.f32 %v1185, %v1359
        %v1378 = vsub.f32 %v1190, %v1362
        %v1379 = vsub.f32 %v1264, %v1365
        %v1380 = vsub.f32 %v1269, %v1368
        %v1381 = vsub.f32 %v1343, %v1371
        %v1382 = vsub.f32 %v1348, %v1374
        %v1383 = vmul.f32 %v1375, 1.442695
        %v1384 = vpow.pop %v1383
        %v1385 = vmul.f32 %v1376, 1.442695
        %v1386 = vpow.pop %v1385
        %v1387 = vmul.f32 %v1377, 1.442695
        %v1388 = vpow.pop %v1387
        %v1389 = vmul.f32 %v1378, 1.442695
        %v1390 = vpow.pop %v1389
        %v1391 = vmul.f32 %v1379, 1.442695
        %v1392 = vpow.pop %v1391
        %v1393 = vmul.f32 %v1380, 1.442695
        %v1394 = vpow.pop %v1393
        %v1395 = vmul.f32 %v1381, 1.442695
        %v1396 = vpow.pop %v1395
        %v1397 = vmul.f32 %v1382, 1.442695
        %v1398 = vpow.pop %v1397
        %v1399 = vsel %vm1034, %v1384, 0.0
        %1400 = vadd.xlane.f32.xlu0 %v1399
        %v1401 = vpop.xlane.xlu0 %1400
        %v1402 = vsel %vm1034, %v1386, 0.0
        %1403 = vadd.xlane.f32.xlu0 %v1402
        %v1404 = vpop.xlane.xlu0 %1403
        %v1405 = vsel %vm1034, %v1388, 0.0
        %1406 = vadd.xlane.f32.xlu0 %v1405
        %v1407 = vpop.xlane.xlu0 %1406
        %v1408 = vsel %vm1034, %v1390, 0.0
        %1409 = vadd.xlane.f32.xlu0 %v1408
        %v1410 = vpop.xlane.xlu0 %1409
        %v1411 = vsel %vm1034, %v1392, 0.0
        %1412 = vadd.xlane.f32.xlu0 %v1411
        %v1413 = vpop.xlane.xlu0 %1412
        %v1414 = vsel %vm1034, %v1394, 0.0
        %1415 = vadd.xlane.f32.xlu0 %v1414
        %v1416 = vpop.xlane.xlu0 %1415
        %v1417 = vsel %vm1034, %v1396, 0.0
        %1418 = vadd.xlane.f32.xlu0 %v1417
        %v1419 = vpop.xlane.xlu0 %1418
        %v1420 = vsel %vm1034, %v1398, 0.0
        %1421 = vadd.xlane.f32.xlu0 %v1420
        %v1422 = vpop.xlane.xlu0 %1421
        %v1423 = vrcp.pop %v1401
        %v1424 = vrcp.pop %v1404
        %v1425 = vrcp.pop %v1407
        %v1426 = vrcp.pop %v1410
        %v1427 = vrcp.pop %v1413
        %v1428 = vrcp.pop %v1416
        %v1429 = vrcp.pop %v1419
        %v1430 = vrcp.pop %v1422
        %v1431 = vmul.f32 %v1384, %v1423
        %v1432 = vmul.f32 %v1386, %v1424
        %v1433 = vmul.f32 %v1388, %v1425
        %v1434 = vmul.f32 %v1390, %v1426
        %v1435 = vmul.f32 %v1392, %v1427
        %v1436 = vmul.f32 %v1394, %v1428
        %v1437 = vmul.f32 %v1396, %v1429
        %v1438 = vmul.f32 %v1398, %v1430
        %1439 = vxpose.xlu0.b32.start [1/16] %v701, 128
        %1440 = vxpose.xlu0.b32.cont [2/16] %v707, 128
        %1441 = vxpose.xlu0.b32.cont [3/16] 0.0, 128
        %1442 = vxpose.xlu0.b32.cont [4/16] 0.0, 128
        %1443 = vxpose.xlu0.b32.cont [5/16] 0.0, 128
        %1444 = vxpose.xlu0.b32.cont [6/16] 0.0, 128
        %1445 = vxpose.xlu0.b32.cont [7/16] 0.0, 128
        %1446 = vxpose.xlu0.b32.cont [8/16] 0.0, 128
        %1447 = vxpose.xlu0.b32.cont [9/16] 0.0, 128
        %1448 = vxpose.xlu0.b32.cont [10/16] 0.0, 128
        %1449 = vxpose.xlu0.b32.cont [11/16] 0.0, 128
        %1450 = vxpose.xlu0.b32.cont [12/16] 0.0, 128
        %1451 = vxpose.xlu0.b32.cont [13/16] 0.0, 128
        %1452 = vxpose.xlu0.b32.cont [14/16] 0.0, 128
        %1453 = vxpose.xlu0.b32.cont [15/16] 0.0, 128
        %1454 = vxpose.xlu0.b32.end [16/16] 0.0, 128
        %v1455 = vpop.trf.xlu0
        %v1456 = vpop.trf.xlu0
        %v1457 = vpop.trf.xlu0
        %v1458 = vpop.trf.xlu0
        %v1459 = vpop.trf.xlu0
        %v1460 = vpop.trf.xlu0
        %v1461 = vpop.trf.xlu0
        %v1462 = vpop.trf.xlu0
        %v1463 = vpop.trf.xlu0
        %v1464 = vpop.trf.xlu0
        %v1465 = vpop.trf.xlu0
        %v1466 = vpop.trf.xlu0
        %v1467 = vpop.trf.xlu0
        %v1468 = vpop.trf.xlu0
        %v1469 = vpop.trf.xlu0
        %v1470 = vpop.trf.xlu0
        %1471 = vxpose.xlu0.b32.start [1/16] %v863, 128
        %1472 = vxpose.xlu0.b32.cont [2/16] %v865, 128
        %1473 = vxpose.xlu0.b32.cont [3/16] 0.0, 128
        %1474 = vxpose.xlu0.b32.cont [4/16] 0.0, 128
        %1475 = vxpose.xlu0.b32.cont [5/16] 0.0, 128
        %1476 = vxpose.xlu0.b32.cont [6/16] 0.0, 128
        %1477 = vxpose.xlu0.b32.cont [7/16] 0.0, 128
        %1478 = vxpose.xlu0.b32.cont [8/16] 0.0, 128
        %1479 = vxpose.xlu0.b32.cont [9/16] 0.0, 128
        %1480 = vxpose.xlu0.b32.cont [10/16] 0.0, 128
        %1481 = vxpose.xlu0.b32.cont [11/16] 0.0, 128
        %1482 = vxpose.xlu0.b32.cont [12/16] 0.0, 128
        %1483 = vxpose.xlu0.b32.cont [13/16] 0.0, 128
        %1484 = vxpose.xlu0.b32.cont [14/16] 0.0, 128
        %1485 = vxpose.xlu0.b32.cont [15/16] 0.0, 128
        %1486 = vxpose.xlu0.b32.end [16/16] 0.0, 128
        %v1487 = vpop.trf.xlu0
        %v1488 = vpop.trf.xlu0
        %v1489 = vpop.trf.xlu0
        %v1490 = vpop.trf.xlu0
        %v1491 = vpop.trf.xlu0
        %v1492 = vpop.trf.xlu0
        %v1493 = vpop.trf.xlu0
        %v1494 = vpop.trf.xlu0
        %v1495 = vpop.trf.xlu0
        %v1496 = vpop.trf.xlu0
        %v1497 = vpop.trf.xlu0
        %v1498 = vpop.trf.xlu0
        %v1499 = vpop.trf.xlu0
        %v1500 = vpop.trf.xlu0
        %v1501 = vpop.trf.xlu0
        %v1502 = vpop.trf.xlu0
        %1503 = vxpose.xlu0.b32.start [1/16] %v869, 128
        %1504 = vxpose.xlu0.b32.cont [2/16] %v871, 128
        %1505 = vxpose.xlu0.b32.cont [3/16] 0.0, 128
        %1506 = vxpose.xlu0.b32.cont [4/16] 0.0, 128
        %1507 = vxpose.xlu0.b32.cont [5/16] 0.0, 128
        %1508 = vxpose.xlu0.b32.cont [6/16] 0.0, 128
        %1509 = vxpose.xlu0.b32.cont [7/16] 0.0, 128
        %1510 = vxpose.xlu0.b32.cont [8/16] 0.0, 128
        %1511 = vxpose.xlu0.b32.cont [9/16] 0.0, 128
        %1512 = vxpose.xlu0.b32.cont [10/16] 0.0, 128
        %1513 = vxpose.xlu0.b32.cont [11/16] 0.0, 128
        %1514 = vxpose.xlu0.b32.cont [12/16] 0.0, 128
        %1515 = vxpose.xlu0.b32.cont [13/16] 0.0, 128
        %1516 = vxpose.xlu0.b32.cont [14/16] 0.0, 128
        %1517 = vxpose.xlu0.b32.cont [15/16] 0.0, 128
        %1518 = vxpose.xlu0.b32.end [16/16] 0.0, 128
        %v1519 = vpop.trf.xlu0
        %v1520 = vpop.trf.xlu0
        %v1521 = vpop.trf.xlu0
        %v1522 = vpop.trf.xlu0
        %v1523 = vpop.trf.xlu0
        %v1524 = vpop.trf.xlu0
        %v1525 = vpop.trf.xlu0
        %v1526 = vpop.trf.xlu0
        %v1527 = vpop.trf.xlu0
        %v1528 = vpop.trf.xlu0
        %v1529 = vpop.trf.xlu0
        %v1530 = vpop.trf.xlu0
        %v1531 = vpop.trf.xlu0
        %v1532 = vpop.trf.xlu0
        %v1533 = vpop.trf.xlu0
        %v1534 = vpop.trf.xlu0
        %1535 = vxpose.xlu0.b32.start [1/16] %v875, 128
        %1536 = vxpose.xlu0.b32.cont [2/16] %v877, 128
        %1537 = vxpose.xlu0.b32.cont [3/16] 0.0, 128
        %1538 = vxpose.xlu0.b32.cont [4/16] 0.0, 128
        %1539 = vxpose.xlu0.b32.cont [5/16] 0.0, 128
        %1540 = vxpose.xlu0.b32.cont [6/16] 0.0, 128
        %1541 = vxpose.xlu0.b32.cont [7/16] 0.0, 128
        %1542 = vxpose.xlu0.b32.cont [8/16] 0.0, 128
        %1543 = vxpose.xlu0.b32.cont [9/16] 0.0, 128
        %1544 = vxpose.xlu0.b32.cont [10/16] 0.0, 128
        %1545 = vxpose.xlu0.b32.cont [11/16] 0.0, 128
        %1546 = vxpose.xlu0.b32.cont [12/16] 0.0, 128
        %1547 = vxpose.xlu0.b32.cont [13/16] 0.0, 128
        %1548 = vxpose.xlu0.b32.cont [14/16] 0.0, 128
        %1549 = vxpose.xlu0.b32.cont [15/16] 0.0, 128
        %1550 = vxpose.xlu0.b32.end [16/16] 0.0, 128
        %v1551 = vpop.trf.xlu0
        %v1552 = vpop.trf.xlu0
        %v1553 = vpop.trf.xlu0
        %v1554 = vpop.trf.xlu0
        %v1555 = vpop.trf.xlu0
        %v1556 = vpop.trf.xlu0
        %v1557 = vpop.trf.xlu0
        %v1558 = vpop.trf.xlu0
        %v1559 = vpop.trf.xlu0
        %v1560 = vpop.trf.xlu0
        %v1561 = vpop.trf.xlu0
        %v1562 = vpop.trf.xlu0
        %v1563 = vpop.trf.xlu0
        %v1564 = vpop.trf.xlu0
        %v1565 = vpop.trf.xlu0
        %v1566 = vpop.trf.xlu0
        %v1568 = vsel %vm1034, %v1455, 0
        %v1571 = vsel %vm1034, %v1456, 0
        %v1574 = vsel %vm1034, %v1431, 0
        %v1577 = vsel %vm1034, %v1432, 0
        %1579 = vmatprep.subr.mxu0 0.0
        %1580 = vmatpush1.xpose.msra.mxu0 0.0
        %1581 = vmatprep.subr.mxu0 0.0
        %1582 = vmatpush1.xpose.msra.mxu0 0.0
        %1583 = vmatprep.subr.mxu0 0.0
        %1584 = vmatpush1.xpose.msra.mxu0 0.0
        %1585 = vmatprep.subr.mxu0 0.0
        %1586 = vmatpush1.xpose.msra.mxu0 0.0
        %1587 = vmatprep.subr.mxu0 0.0
        %1588 = vmatpush1.xpose.msra.mxu0 0.0
        %1589 = vmatprep.subr.mxu0 0.0
        %1590 = vmatpush1.xpose.msra.mxu0 0.0
        %1591 = vmatprep.subr.mxu0 0.0
        %1592 = vmatpush1.xpose.msra.mxu0 0.0
        %1593 = vmatprep.subr.mxu0 0.0
        %1594 = vmatpush1.xpose.msra.mxu0 0.0
        %1595 = vmatprep.subr.mxu0 0.0
        %1596 = vmatpush1.xpose.msra.mxu0 0.0
        %1597 = vmatprep.subr.mxu0 0.0
        %1598 = vmatpush1.xpose.msra.mxu0 0.0
        %1599 = vmatprep.subr.mxu0 0.0
        %1600 = vmatpush1.xpose.msra.mxu0 0.0
        %1601 = vmatprep.subr.mxu0 0.0
        %1602 = vmatpush1.xpose.msra.mxu0 0.0
        %1603 = vmatprep.subr.mxu0 0.0
        %1604 = vmatpush1.xpose.msra.mxu0 0.0
        %1605 = vmatprep.subr.mxu0 0.0
        %1606 = vmatpush1.xpose.msra.mxu0 0.0
        %1607 = vmatprep.subr.mxu0 0.0
        %1608 = vmatpush1.xpose.msra.mxu0 %v1577
        %1609 = vmatprep.subr.mxu0 0.0
        %1610 = vmatpush1.xpose.msra.mxu0 %v1574
        %1611 = vmatprep.subr.mxu0 0.0
        %1612 = vmatpush2.xpose.msra.mxu0 0.0
        %1613 = vmatprep.subr.mxu0 0.0
        %1614 = vmatpush2.xpose.msra.mxu0 0.0
        %1615 = vmatprep.subr.mxu0 0.0
        %1616 = vmatpush2.xpose.msra.mxu0 0.0
        %1617 = vmatprep.subr.mxu0 0.0
        %1618 = vmatpush2.xpose.msra.mxu0 0.0
        %1619 = vmatprep.subr.mxu0 0.0
        %1620 = vmatpush2.xpose.msra.mxu0 0.0
        %1621 = vmatprep.subr.mxu0 0.0
        %1622 = vmatpush2.xpose.msra.mxu0 0.0
        %1623 = vmatprep.subr.mxu0 0.0
        %1624 = vmatpush2.xpose.msra.mxu0 0.0
        %1625 = vmatprep.subr.mxu0 0.0
        %1626 = vmatpush2.xpose.msra.mxu0 0.0
        %1627 = vmatprep.subr.mxu0 0.0
        %1628 = vmatpush2.xpose.msra.mxu0 0.0
        %1629 = vmatprep.subr.mxu0 0.0
        %1630 = vmatpush2.xpose.msra.mxu0 0.0
        %1631 = vmatprep.subr.mxu0 0.0
        %1632 = vmatpush2.xpose.msra.mxu0 0.0
        %1633 = vmatprep.subr.mxu0 0.0
        %1634 = vmatpush2.xpose.msra.mxu0 0.0
        %1635 = vmatprep.subr.mxu0 0.0
        %1636 = vmatpush2.xpose.msra.mxu0 0.0
        %1637 = vmatprep.subr.mxu0 0.0
        %1638 = vmatpush2.xpose.msra.mxu0 0.0
        %1639 = vmatprep.subr.mxu0 0.0
        %1640 = vmatpush2.xpose.msra.mxu0 0.0
        %1641 = vmatprep.subr.mxu0 0.0
        %1642 = vmatpush2.xpose.msra.mxu0 0.0
        %1643 = vmatprep.mubr.f32.mxu0 0.0
        %1644 = vmatmul.mubr.f32.gmra.mxu0 %v1568
        %v1645 = vpop.f32.mrf.mxu0
        %v1646 = vadd.f32 0.0, %v1645
        %v1647 = vpop.f32.mrf.mxu0
        %1648 = vmatprep.mubr.f32.mxu0 0.0
        %1649 = vmatmul.mubr.f32.gmra.mxu0 %v1571
        %v1650 = vpop.f32.mrf.mxu0
        %v1651 = vadd.f32 0.0, %v1650
        %v1652 = vpop.f32.mrf.mxu0
        %1653 = vdwg.mxu0
        %v1655 = vsel %vm1034, %v1487, 0
        %v1658 = vsel %vm1034, %v1488, 0
        %v1661 = vsel %vm1034, %v1433, 0
        %v1664 = vsel %vm1034, %v1434, 0
        %1666 = vmatprep.subr.mxu0 0.0
        %1667 = vmatpush1.xpose.msra.mxu0 0.0
        %1668 = vmatprep.subr.mxu0 0.0
        %1669 = vmatpush1.xpose.msra.mxu0 0.0
        %1670 = vmatprep.subr.mxu0 0.0
        %1671 = vmatpush1.xpose.msra.mxu0 0.0
        %1672 = vmatprep.subr.mxu0 0.0
        %1673 = vmatpush1.xpose.msra.mxu0 0.0
        %1674 = vmatprep.subr.mxu0 0.0
        %1675 = vmatpush1.xpose.msra.mxu0 0.0
        %1676 = vmatprep.subr.mxu0 0.0
        %1677 = vmatpush1.xpose.msra.mxu0 0.0
        %1678 = vmatprep.subr.mxu0 0.0
        %1679 = vmatpush1.xpose.msra.mxu0 0.0
        %1680 = vmatprep.subr.mxu0 0.0
        %1681 = vmatpush1.xpose.msra.mxu0 0.0
        %1682 = vmatprep.subr.mxu0 0.0
        %1683 = vmatpush1.xpose.msra.mxu0 0.0
        %1684 = vmatprep.subr.mxu0 0.0
        %1685 = vmatpush1.xpose.msra.mxu0 0.0
        %1686 = vmatprep.subr.mxu0 0.0
        %1687 = vmatpush1.xpose.msra.mxu0 0.0
        %1688 = vmatprep.subr.mxu0 0.0
        %1689 = vmatpush1.xpose.msra.mxu0 0.0
        %1690 = vmatprep.subr.mxu0 0.0
        %1691 = vmatpush1.xpose.msra.mxu0 0.0
        %1692 = vmatprep.subr.mxu0 0.0
        %1693 = vmatpush1.xpose.msra.mxu0 0.0
        %1694 = vmatprep.subr.mxu0 0.0
        %1695 = vmatpush1.xpose.msra.mxu0 %v1664
        %1696 = vmatprep.subr.mxu0 0.0
        %1697 = vmatpush1.xpose.msra.mxu0 %v1661
        %1698 = vmatprep.subr.mxu0 0.0
        %1699 = vmatpush2.xpose.msra.mxu0 0.0
        %1700 = vmatprep.subr.mxu0 0.0
        %1701 = vmatpush2.xpose.msra.mxu0 0.0
        %1702 = vmatprep.subr.mxu0 0.0
        %1703 = vmatpush2.xpose.msra.mxu0 0.0
        %1704 = vmatprep.subr.mxu0 0.0
        %1705 = vmatpush2.xpose.msra.mxu0 0.0
        %1706 = vmatprep.subr.mxu0 0.0
        %1707 = vmatpush2.xpose.msra.mxu0 0.0
        %1708 = vmatprep.subr.mxu0 0.0
        %1709 = vmatpush2.xpose.msra.mxu0 0.0
        %1710 = vmatprep.subr.mxu0 0.0
        %1711 = vmatpush2.xpose.msra.mxu0 0.0
        %1712 = vmatprep.subr.mxu0 0.0
        %1713 = vmatpush2.xpose.msra.mxu0 0.0
        %1714 = vmatprep.subr.mxu0 0.0
        %1715 = vmatpush2.xpose.msra.mxu0 0.0
        %1716 = vmatprep.subr.mxu0 0.0
        %1717 = vmatpush2.xpose.msra.mxu0 0.0
        %1718 = vmatprep.subr.mxu0 0.0
        %1719 = vmatpush2.xpose.msra.mxu0 0.0
        %1720 = vmatprep.subr.mxu0 0.0
        %1721 = vmatpush2.xpose.msra.mxu0 0.0
        %1722 = vmatprep.subr.mxu0 0.0
        %1723 = vmatpush2.xpose.msra.mxu0 0.0
        %1724 = vmatprep.subr.mxu0 0.0
        %1725 = vmatpush2.xpose.msra.mxu0 0.0
        %1726 = vmatprep.subr.mxu0 0.0
        %1727 = vmatpush2.xpose.msra.mxu0 0.0
        %1728 = vmatprep.subr.mxu0 0.0
        %1729 = vmatpush2.xpose.msra.mxu0 0.0
        %1730 = vmatprep.mubr.f32.mxu0 0.0
        %1731 = vmatmul.mubr.f32.gmra.mxu0 %v1655
        %v1732 = vpop.f32.mrf.mxu0
        %v1733 = vadd.f32 0.0, %v1732
        %v1734 = vpop.f32.mrf.mxu0
        %1735 = vmatprep.mubr.f32.mxu0 0.0
        %1736 = vmatmul.mubr.f32.gmra.mxu0 %v1658
        %v1737 = vpop.f32.mrf.mxu0
        %v1738 = vadd.f32 0.0, %v1737
        %v1739 = vpop.f32.mrf.mxu0
        %1740 = vdwg.mxu0
        %v1742 = vsel %vm1034, %v1519, 0
        %v1745 = vsel %vm1034, %v1520, 0
        %v1748 = vsel %vm1034, %v1435, 0
        %v1751 = vsel %vm1034, %v1436, 0
        %1753 = vmatprep.subr.mxu0 0.0
        %1754 = vmatpush1.xpose.msra.mxu0 0.0
        %1755 = vmatprep.subr.mxu0 0.0
        %1756 = vmatpush1.xpose.msra.mxu0 0.0
        %1757 = vmatprep.subr.mxu0 0.0
        %1758 = vmatpush1.xpose.msra.mxu0 0.0
        %1759 = vmatprep.subr.mxu0 0.0
        %1760 = vmatpush1.xpose.msra.mxu0 0.0
        %1761 = vmatprep.subr.mxu0 0.0
        %1762 = vmatpush1.xpose.msra.mxu0 0.0
        %1763 = vmatprep.subr.mxu0 0.0
        %1764 = vmatpush1.xpose.msra.mxu0 0.0
        %1765 = vmatprep.subr.mxu0 0.0
        %1766 = vmatpush1.xpose.msra.mxu0 0.0
        %1767 = vmatprep.subr.mxu0 0.0
        %1768 = vmatpush1.xpose.msra.mxu0 0.0
        %1769 = vmatprep.subr.mxu0 0.0
        %1770 = vmatpush1.xpose.msra.mxu0 0.0
        %1771 = vmatprep.subr.mxu0 0.0
        %1772 = vmatpush1.xpose.msra.mxu0 0.0
        %1773 = vmatprep.subr.mxu0 0.0
        %1774 = vmatpush1.xpose.msra.mxu0 0.0
        %1775 = vmatprep.subr.mxu0 0.0
        %1776 = vmatpush1.xpose.msra.mxu0 0.0
        %1777 = vmatprep.subr.mxu0 0.0
        %1778 = vmatpush1.xpose.msra.mxu0 0.0
        %1779 = vmatprep.subr.mxu0 0.0
        %1780 = vmatpush1.xpose.msra.mxu0 0.0
        %1781 = vmatprep.subr.mxu0 0.0
        %1782 = vmatpush1.xpose.msra.mxu0 %v1751
        %1783 = vmatprep.subr.mxu0 0.0
        %1784 = vmatpush1.xpose.msra.mxu0 %v1748
        %1785 = vmatprep.subr.mxu0 0.0
        %1786 = vmatpush2.xpose.msra.mxu0 0.0
        %1787 = vmatprep.subr.mxu0 0.0
        %1788 = vmatpush2.xpose.msra.mxu0 0.0
        %1789 = vmatprep.subr.mxu0 0.0
        %1790 = vmatpush2.xpose.msra.mxu0 0.0
        %1791 = vmatprep.subr.mxu0 0.0
        %1792 = vmatpush2.xpose.msra.mxu0 0.0
        %1793 = vmatprep.subr.mxu0 0.0
        %1794 = vmatpush2.xpose.msra.mxu0 0.0
        %1795 = vmatprep.subr.mxu0 0.0
        %1796 = vmatpush2.xpose.msra.mxu0 0.0
        %1797 = vmatprep.subr.mxu0 0.0
        %1798 = vmatpush2.xpose.msra.mxu0 0.0
        %1799 = vmatprep.subr.mxu0 0.0
        %1800 = vmatpush2.xpose.msra.mxu0 0.0
        %1801 = vmatprep.subr.mxu0 0.0
        %1802 = vmatpush2.xpose.msra.mxu0 0.0
        %1803 = vmatprep.subr.mxu0 0.0
        %1804 = vmatpush2.xpose.msra.mxu0 0.0
        %1805 = vmatprep.subr.mxu0 0.0
        %1806 = vmatpush2.xpose.msra.mxu0 0.0
        %1807 = vmatprep.subr.mxu0 0.0
        %1808 = vmatpush2.xpose.msra.mxu0 0.0
        %1809 = vmatprep.subr.mxu0 0.0
        %1810 = vmatpush2.xpose.msra.mxu0 0.0
        %1811 = vmatprep.subr.mxu0 0.0
        %1812 = vmatpush2.xpose.msra.mxu0 0.0
        %1813 = vmatprep.subr.mxu0 0.0
        %1814 = vmatpush2.xpose.msra.mxu0 0.0
        %1815 = vmatprep.subr.mxu0 0.0
        %1816 = vmatpush2.xpose.msra.mxu0 0.0
        %1817 = vmatprep.mubr.f32.mxu0 0.0
        %1818 = vmatmul.mubr.f32.gmra.mxu0 %v1742
        %v1819 = vpop.f32.mrf.mxu0
        %v1820 = vadd.f32 0.0, %v1819
        %v1821 = vpop.f32.mrf.mxu0
        %1822 = vmatprep.mubr.f32.mxu0 0.0
        %1823 = vmatmul.mubr.f32.gmra.mxu0 %v1745
        %v1824 = vpop.f32.mrf.mxu0
        %v1825 = vadd.f32 0.0, %v1824
        %v1826 = vpop.f32.mrf.mxu0
        %1827 = vdwg.mxu0
        %v1829 = vsel %vm1034, %v1551, 0
        %v1832 = vsel %vm1034, %v1552, 0
        %v1835 = vsel %vm1034, %v1437, 0
        %v1838 = vsel %vm1034, %v1438, 0
        %1840 = vmatprep.subr.mxu0 0.0
        %1841 = vmatpush1.xpose.msra.mxu0 0.0
        %1842 = vmatprep.subr.mxu0 0.0
        %1843 = vmatpush1.xpose.msra.mxu0 0.0
        %1844 = vmatprep.subr.mxu0 0.0
        %1845 = vmatpush1.xpose.msra.mxu0 0.0
        %1846 = vmatprep.subr.mxu0 0.0
        %1847 = vmatpush1.xpose.msra.mxu0 0.0
        %1848 = vmatprep.subr.mxu0 0.0
        %1849 = vmatpush1.xpose.msra.mxu0 0.0
        %1850 = vmatprep.subr.mxu0 0.0
        %1851 = vmatpush1.xpose.msra.mxu0 0.0
        %1852 = vmatprep.subr.mxu0 0.0
        %1853 = vmatpush1.xpose.msra.mxu0 0.0
        %1854 = vmatprep.subr.mxu0 0.0
        %1855 = vmatpush1.xpose.msra.mxu0 0.0
        %1856 = vmatprep.subr.mxu0 0.0
        %1857 = vmatpush1.xpose.msra.mxu0 0.0
        %1858 = vmatprep.subr.mxu0 0.0
        %1859 = vmatpush1.xpose.msra.mxu0 0.0
        %1860 = vmatprep.subr.mxu0 0.0
        %1861 = vmatpush1.xpose.msra.mxu0 0.0
        %1862 = vmatprep.subr.mxu0 0.0
        %1863 = vmatpush1.xpose.msra.mxu0 0.0
        %1864 = vmatprep.subr.mxu0 0.0
        %1865 = vmatpush1.xpose.msra.mxu0 0.0
        %1866 = vmatprep.subr.mxu0 0.0
        %1867 = vmatpush1.xpose.msra.mxu0 0.0
        %1868 = vmatprep.subr.mxu0 0.0
        %1869 = vmatpush1.xpose.msra.mxu0 %v1838
        %1870 = vmatprep.subr.mxu0 0.0
        %1871 = vmatpush1.xpose.msra.mxu0 %v1835
        %1872 = vmatprep.subr.mxu0 0.0
        %1873 = vmatpush2.xpose.msra.mxu0 0.0
        %1874 = vmatprep.subr.mxu0 0.0
        %1875 = vmatpush2.xpose.msra.mxu0 0.0
        %1876 = vmatprep.subr.mxu0 0.0
        %1877 = vmatpush2.xpose.msra.mxu0 0.0
        %1878 = vmatprep.subr.mxu0 0.0
        %1879 = vmatpush2.xpose.msra.mxu0 0.0
        %1880 = vmatprep.subr.mxu0 0.0
        %1881 = vmatpush2.xpose.msra.mxu0 0.0
        %1882 = vmatprep.subr.mxu0 0.0
        %1883 = vmatpush2.xpose.msra.mxu0 0.0
        %1884 = vmatprep.subr.mxu0 0.0
        %1885 = vmatpush2.xpose.msra.mxu0 0.0
        %1886 = vmatprep.subr.mxu0 0.0
        %1887 = vmatpush2.xpose.msra.mxu0 0.0
        %1888 = vmatprep.subr.mxu0 0.0
        %1889 = vmatpush2.xpose.msra.mxu0 0.0
        %1890 = vmatprep.subr.mxu0 0.0
        %1891 = vmatpush2.xpose.msra.mxu0 0.0
        %1892 = vmatprep.subr.mxu0 0.0
        %1893 = vmatpush2.xpose.msra.mxu0 0.0
        %1894 = vmatprep.subr.mxu0 0.0
        %1895 = vmatpush2.xpose.msra.mxu0 0.0
        %1896 = vmatprep.subr.mxu0 0.0
        %1897 = vmatpush2.xpose.msra.mxu0 0.0
        %1898 = vmatprep.subr.mxu0 0.0
        %1899 = vmatpush2.xpose.msra.mxu0 0.0
        %1900 = vmatprep.subr.mxu0 0.0
        %1901 = vmatpush2.xpose.msra.mxu0 0.0
        %1902 = vmatprep.subr.mxu0 0.0
        %1903 = vmatpush2.xpose.msra.mxu0 0.0
        %1904 = vmatprep.mubr.f32.mxu0 0.0
        %1905 = vmatmul.mubr.f32.gmra.mxu0 %v1829
        %v1906 = vpop.f32.mrf.mxu0
        %v1907 = vadd.f32 0.0, %v1906
        %v1908 = vpop.f32.mrf.mxu0
        %1909 = vmatprep.mubr.f32.mxu0 0.0
        %1910 = vmatmul.mubr.f32.gmra.mxu0 %v1832
        %v1911 = vpop.f32.mrf.mxu0
        %v1912 = vadd.f32 0.0, %v1911
        %v1913 = vpop.f32.mrf.mxu0
        %1914 = vdwg.mxu0
        %1915 = vxpose.xlu0.b32.start [1/16] %v1646, 128
        %1916 = vxpose.xlu0.b32.cont [2/16] %v1651, 128
        %1917 = vxpose.xlu0.b32.cont [3/16] 0.0, 128
        %1918 = vxpose.xlu0.b32.cont [4/16] 0.0, 128
        %1919 = vxpose.xlu0.b32.cont [5/16] 0.0, 128
        %1920 = vxpose.xlu0.b32.cont [6/16] 0.0, 128
        %1921 = vxpose.xlu0.b32.cont [7/16] 0.0, 128
        %1922 = vxpose.xlu0.b32.cont [8/16] 0.0, 128
        %1923 = vxpose.xlu0.b32.cont [9/16] 0.0, 128
        %1924 = vxpose.xlu0.b32.cont [10/16] 0.0, 128
        %1925 = vxpose.xlu0.b32.cont [11/16] 0.0, 128
        %1926 = vxpose.xlu0.b32.cont [12/16] 0.0, 128
        %1927 = vxpose.xlu0.b32.cont [13/16] 0.0, 128
        %1928 = vxpose.xlu0.b32.cont [14/16] 0.0, 128
        %1929 = vxpose.xlu0.b32.cont [15/16] 0.0, 128
        %1930 = vxpose.xlu0.b32.end [16/16] 0.0, 128
        %v1931 = vpop.trf.xlu0
        %v1932 = vpop.trf.xlu0
        %v1933 = vpop.trf.xlu0
        %v1934 = vpop.trf.xlu0
        %v1935 = vpop.trf.xlu0
        %v1936 = vpop.trf.xlu0
        %v1937 = vpop.trf.xlu0
        %v1938 = vpop.trf.xlu0
        %v1939 = vpop.trf.xlu0
        %v1940 = vpop.trf.xlu0
        %v1941 = vpop.trf.xlu0
        %v1942 = vpop.trf.xlu0
        %v1943 = vpop.trf.xlu0
        %v1944 = vpop.trf.xlu0
        %v1945 = vpop.trf.xlu0
        %v1946 = vpop.trf.xlu0
        %1947 = vxpose.xlu0.b32.start [1/16] %v1733, 128
        %1948 = vxpose.xlu0.b32.cont [2/16] %v1738, 128
        %1949 = vxpose.xlu0.b32.cont [3/16] 0.0, 128
        %1950 = vxpose.xlu0.b32.cont [4/16] 0.0, 128
        %1951 = vxpose.xlu0.b32.cont [5/16] 0.0, 128
        %1952 = vxpose.xlu0.b32.cont [6/16] 0.0, 128
        %1953 = vxpose.xlu0.b32.cont [7/16] 0.0, 128
        %1954 = vxpose.xlu0.b32.cont [8/16] 0.0, 128
        %1955 = vxpose.xlu0.b32.cont [9/16] 0.0, 128
        %1956 = vxpose.xlu0.b32.cont [10/16] 0.0, 128
        %1957 = vxpose.xlu0.b32.cont [11/16] 0.0, 128
        %1958 = vxpose.xlu0.b32.cont [12/16] 0.0, 128
        %1959 = vxpose.xlu0.b32.cont [13/16] 0.0, 128
        %1960 = vxpose.xlu0.b32.cont [14/16] 0.0, 128
        %1961 = vxpose.xlu0.b32.cont [15/16] 0.0, 128
        %1962 = vxpose.xlu0.b32.end [16/16] 0.0, 128
        %v1963 = vpop.trf.xlu0
        %v1964 = vpop.trf.xlu0
        %v1965 = vpop.trf.xlu0
        %v1966 = vpop.trf.xlu0
        %v1967 = vpop.trf.xlu0
        %v1968 = vpop.trf.xlu0
        %v1969 = vpop.trf.xlu0
        %v1970 = vpop.trf.xlu0
        %v1971 = vpop.trf.xlu0
        %v1972 = vpop.trf.xlu0
        %v1973 = vpop.trf.xlu0
        %v1974 = vpop.trf.xlu0
        %v1975 = vpop.trf.xlu0
        %v1976 = vpop.trf.xlu0
        %v1977 = vpop.trf.xlu0
        %v1978 = vpop.trf.xlu0
        %1979 = vxpose.xlu0.b32.start [1/16] %v1820, 128
        %1980 = vxpose.xlu0.b32.cont [2/16] %v1825, 128
        %1981 = vxpose.xlu0.b32.cont [3/16] 0.0, 128
        %1982 = vxpose.xlu0.b32.cont [4/16] 0.0, 128
        %1983 = vxpose.xlu0.b32.cont [5/16] 0.0, 128
        %1984 = vxpose.xlu0.b32.cont [6/16] 0.0, 128
        %1985 = vxpose.xlu0.b32.cont [7/16] 0.0, 128
        %1986 = vxpose.xlu0.b32.cont [8/16] 0.0, 128
        %1987 = vxpose.xlu0.b32.cont [9/16] 0.0, 128
        %1988 = vxpose.xlu0.b32.cont [10/16] 0.0, 128
        %1989 = vxpose.xlu0.b32.cont [11/16] 0.0, 128
        %1990 = vxpose.xlu0.b32.cont [12/16] 0.0, 128
        %1991 = vxpose.xlu0.b32.cont [13/16] 0.0, 128
        %1992 = vxpose.xlu0.b32.cont [14/16] 0.0, 128
        %1993 = vxpose.xlu0.b32.cont [15/16] 0.0, 128
        %1994 = vxpose.xlu0.b32.end [16/16] 0.0, 128
        %v1995 = vpop.trf.xlu0
        %v1996 = vpop.trf.xlu0
        %v1997 = vpop.trf.xlu0
        %v1998 = vpop.trf.xlu0
        %v1999 = vpop.trf.xlu0
        %v2000 = vpop.trf.xlu0
        %v2001 = vpop.trf.xlu0
        %v2002 = vpop.trf.xlu0
        %v2003 = vpop.trf.xlu0
        %v2004 = vpop.trf.xlu0
        %v2005 = vpop.trf.xlu0
        %v2006 = vpop.trf.xlu0
        %v2007 = vpop.trf.xlu0
        %v2008 = vpop.trf.xlu0
        %v2009 = vpop.trf.xlu0
        %v2010 = vpop.trf.xlu0
        %2011 = vxpose.xlu0.b32.start [1/16] %v1907, 128
        %2012 = vxpose.xlu0.b32.cont [2/16] %v1912, 128
        %2013 = vxpose.xlu0.b32.cont [3/16] 0.0, 128
        %2014 = vxpose.xlu0.b32.cont [4/16] 0.0, 128
        %2015 = vxpose.xlu0.b32.cont [5/16] 0.0, 128
        %2016 = vxpose.xlu0.b32.cont [6/16] 0.0, 128
        %2017 = vxpose.xlu0.b32.cont [7/16] 0.0, 128
        %2018 = vxpose.xlu0.b32.cont [8/16] 0.0, 128
        %2019 = vxpose.xlu0.b32.cont [9/16] 0.0, 128
        %2020 = vxpose.xlu0.b32.cont [10/16] 0.0, 128
        %2021 = vxpose.xlu0.b32.cont [11/16] 0.0, 128
        %2022 = vxpose.xlu0.b32.cont [12/16] 0.0, 128
        %2023 = vxpose.xlu0.b32.cont [13/16] 0.0, 128
        %2024 = vxpose.xlu0.b32.cont [14/16] 0.0, 128
        %2025 = vxpose.xlu0.b32.cont [15/16] 0.0, 128
        %2026 = vxpose.xlu0.b32.end [16/16] 0.0, 128
        %v2027 = vpop.trf.xlu0
        %v2028 = vpop.trf.xlu0
        %v2029 = vpop.trf.xlu0
        %v2030 = vpop.trf.xlu0
        %v2031 = vpop.trf.xlu0
        %v2032 = vpop.trf.xlu0
        %v2033 = vpop.trf.xlu0
        %v2034 = vpop.trf.xlu0
        %v2035 = vpop.trf.xlu0
        %v2036 = vpop.trf.xlu0
        %v2037 = vpop.trf.xlu0
        %v2038 = vpop.trf.xlu0
        %v2039 = vpop.trf.xlu0
        %v2040 = vpop.trf.xlu0
        %v2041 = vpop.trf.xlu0
        %v2042 = vpop.trf.xlu0
        %v2043 = vcombine.low %v1931, %v1995
        %v2044 = vcombine.high %v1931, %v1995
        %v2046 = vunpack.c.l.s4 1983009808
        %v2047 = vunpack.c.0.s8 %v2046
        %v2048 = vlaneseq
        %v2049 = vshrl.u32 %v2048, 7
        %v2050 = vsub.s32 %v2047, %v2049
        %v2051 = vrot.slane %v2043, %v2050
        %v2053 = vunpack.c.l.s4 1983009808
        %v2054 = vunpack.c.0.s8 %v2053
        %v2055 = vlaneseq
        %v2056 = vshrl.u32 %v2055, 7
        %v2057 = vsub.s32 %v2054, %v2056
        %v2058 = vrot.slane %v2044, %v2057
        %v2059 = vcombine.low %v1963, %v2027
        %v2060 = vcombine.high %v1963, %v2027
        %v2062 = vunpack.c.l.s4 1983009808
        %v2063 = vunpack.c.0.s8 %v2062
        %v2064 = vlaneseq
        %v2065 = vshrl.u32 %v2064, 7
        %v2066 = vsub.s32 %v2063, %v2065
        %v2067 = vrot.slane %v2059, %v2066
        %v2069 = vunpack.c.l.s4 1983009808
        %v2070 = vunpack.c.0.s8 %v2069
        %v2071 = vlaneseq
        %v2072 = vshrl.u32 %v2071, 7
        %v2073 = vsub.s32 %v2070, %v2072
        %v2074 = vrot.slane %v2060, %v2073
        %v2075 = vcombine.low %v2051, %v2067
        %v2076 = vcombine.high %v2051, %v2067
        %v2078 = vunpack.c.l.s4 1934713408
        %v2079 = vunpack.c.0.s8 %v2078
        %v2080 = vlaneseq
        %v2081 = vshrl.u32 %v2080, 7
        %v2082 = vsub.s32 %v2079, %v2081
        %v2083 = vrot.slane %v2075, %v2082
        %v2085 = vunpack.c.l.s4 1934713408
        %v2086 = vunpack.c.0.s8 %v2085
        %v2087 = vlaneseq
        %v2088 = vshrl.u32 %v2087, 7
        %v2089 = vsub.s32 %v2086, %v2088
        %v2090 = vrot.slane %v2076, %v2089
        %v2091 = vcombine.low %v2058, %v2074
        %v2092 = vcombine.high %v2058, %v2074
        %v2094 = vunpack.c.l.s4 1934713408
        %v2095 = vunpack.c.0.s8 %v2094
        %v2096 = vlaneseq
        %v2097 = vshrl.u32 %v2096, 7
        %v2098 = vsub.s32 %v2095, %v2097
        %v2099 = vrot.slane %v2091, %v2098
        %v2101 = vunpack.c.l.s4 1934713408
        %v2102 = vunpack.c.0.s8 %v2101
        %v2103 = vlaneseq
        %v2104 = vshrl.u32 %v2103, 7
        %v2105 = vsub.s32 %v2102, %v2104
        %v2106 = vrot.slane %v2092, %v2105
        %v2107 = vcombine.high %v2083, 0.0
        %v2108 = vcombine.high %v2090, 0.0
        %v2109 = vcombine.high %v2099, 0.0
        %v2110 = vcombine.high %v2106, 0.0
        %v2111 = vcombine.low %v1932, %v1996
        %v2112 = vcombine.high %v1932, %v1996
        %v2114 = vunpack.c.l.s4 1983009808
        %v2115 = vunpack.c.0.s8 %v2114
        %v2116 = vlaneseq
        %v2117 = vshrl.u32 %v2116, 7
        %v2118 = vsub.s32 %v2115, %v2117
        %v2119 = vrot.slane %v2111, %v2118
        %v2121 = vunpack.c.l.s4 1983009808
        %v2122 = vunpack.c.0.s8 %v2121
        %v2123 = vlaneseq
        %v2124 = vshrl.u32 %v2123, 7
        %v2125 = vsub.s32 %v2122, %v2124
        %v2126 = vrot.slane %v2112, %v2125
        %v2127 = vcombine.low %v1964, %v2028
        %v2128 = vcombine.high %v1964, %v2028
        %v2130 = vunpack.c.l.s4 1983009808
        %v2131 = vunpack.c.0.s8 %v2130
        %v2132 = vlaneseq
        %v2133 = vshrl.u32 %v2132, 7
        %v2134 = vsub.s32 %v2131, %v2133
        %v2135 = vrot.slane %v2127, %v2134
        %v2137 = vunpack.c.l.s4 1983009808
        %v2138 = vunpack.c.0.s8 %v2137
        %v2139 = vlaneseq
        %v2140 = vshrl.u32 %v2139, 7
        %v2141 = vsub.s32 %v2138, %v2140
        %v2142 = vrot.slane %v2128, %v2141
        %v2143 = vcombine.low %v2119, %v2135
        %v2144 = vcombine.high %v2119, %v2135
        %v2146 = vunpack.c.l.s4 1934713408
        %v2147 = vunpack.c.0.s8 %v2146
        %v2148 = vlaneseq
        %v2149 = vshrl.u32 %v2148, 7
        %v2150 = vsub.s32 %v2147, %v2149
        %v2151 = vrot.slane %v2143, %v2150
        %v2153 = vunpack.c.l.s4 1934713408
        %v2154 = vunpack.c.0.s8 %v2153
        %v2155 = vlaneseq
        %v2156 = vshrl.u32 %v2155, 7
        %v2157 = vsub.s32 %v2154, %v2156
        %v2158 = vrot.slane %v2144, %v2157
        %v2159 = vcombine.low %v2126, %v2142
        %v2160 = vcombine.high %v2126, %v2142
        %v2162 = vunpack.c.l.s4 1934713408
        %v2163 = vunpack.c.0.s8 %v2162
        %v2164 = vlaneseq
        %v2165 = vshrl.u32 %v2164, 7
        %v2166 = vsub.s32 %v2163, %v2165
        %v2167 = vrot.slane %v2159, %v2166
        %v2169 = vunpack.c.l.s4 1934713408
        %v2170 = vunpack.c.0.s8 %v2169
        %v2171 = vlaneseq
        %v2172 = vshrl.u32 %v2171, 7
        %v2173 = vsub.s32 %v2170, %v2172
        %v2174 = vrot.slane %v2160, %v2173
        %v2175 = vcombine.high %v2151, 0.0
        %v2176 = vcombine.high %v2158, 0.0
        %v2177 = vcombine.high %v2167, 0.0
        %v2178 = vcombine.high %v2174, 0.0
        %v2179 = vcombine.low %v2083, %v2090
        %v2181 = vunpack.c.l.s4 1983009808
        %v2182 = vunpack.c.0.s8 %v2181
        %v2183 = vlaneseq
        %v2184 = vshrl.u32 %v2183, 7
        %v2185 = vsub.s32 %v2182, %v2184
        %v2186 = vrot.slane %v2179, %v2185
        %v2187 = vcombine.low %v2107, %v2108
        %v2189 = vunpack.c.l.s4 1983009808
        %v2190 = vunpack.c.0.s8 %v2189
        %v2191 = vlaneseq
        %v2192 = vshrl.u32 %v2191, 7
        %v2193 = vsub.s32 %v2190, %v2192
        %v2194 = vrot.slane %v2187, %v2193
        %v2195 = vcombine.low %v2099, %v2106
        %v2197 = vunpack.c.l.s4 1983009808
        %v2198 = vunpack.c.0.s8 %v2197
        %v2199 = vlaneseq
        %v2200 = vshrl.u32 %v2199, 7
        %v2201 = vsub.s32 %v2198, %v2200
        %v2202 = vrot.slane %v2195, %v2201
        %v2203 = vcombine.low %v2109, %v2110
        %v2205 = vunpack.c.l.s4 1983009808
        %v2206 = vunpack.c.0.s8 %v2205
        %v2207 = vlaneseq
        %v2208 = vshrl.u32 %v2207, 7
        %v2209 = vsub.s32 %v2206, %v2208
        %v2210 = vrot.slane %v2203, %v2209
        %v2211 = vcombine.low %v2186, %v2194
        %v2212 = vcombine.high %v2186, %v2194
        %v2214 = vunpack.c.l.s4 1934713408
        %v2215 = vunpack.c.0.s8 %v2214
        %v2216 = vlaneseq
        %v2217 = vshrl.u32 %v2216, 7
        %v2218 = vsub.s32 %v2215, %v2217
        %v2219 = vrot.slane %v2211, %v2218
        %v2221 = vunpack.c.l.s4 1934713408
        %v2222 = vunpack.c.0.s8 %v2221
        %v2223 = vlaneseq
        %v2224 = vshrl.u32 %v2223, 7
        %v2225 = vsub.s32 %v2222, %v2224
        %v2226 = vrot.slane %v2212, %v2225
        %v2227 = vcombine.low %v2202, %v2210
        %v2228 = vcombine.high %v2202, %v2210
        %v2230 = vunpack.c.l.s4 1934713408
        %v2231 = vunpack.c.0.s8 %v2230
        %v2232 = vlaneseq
        %v2233 = vshrl.u32 %v2232, 7
        %v2234 = vsub.s32 %v2231, %v2233
        %v2235 = vrot.slane %v2227, %v2234
        %v2237 = vunpack.c.l.s4 1934713408
        %v2238 = vunpack.c.0.s8 %v2237
        %v2239 = vlaneseq
        %v2240 = vshrl.u32 %v2239, 7
        %v2241 = vsub.s32 %v2238, %v2240
        %v2242 = vrot.slane %v2228, %v2241
        %v2243 = vcombine.low %v2219, %v2235
        %v2244 = vcombine.high %v2219, %v2235
        %v2245 = vcombine.low %v2226, %v2242
        %v2246 = vcombine.high %v2226, %v2242
        %v2247 = vcombine.low %v2151, %v2158
        %v2249 = vunpack.c.l.s4 1983009808
        %v2250 = vunpack.c.0.s8 %v2249
        %v2251 = vlaneseq
        %v2252 = vshrl.u32 %v2251, 7
        %v2253 = vsub.s32 %v2250, %v2252
        %v2254 = vrot.slane %v2247, %v2253
        %v2255 = vcombine.low %v2175, %v2176
        %v2257 = vunpack.c.l.s4 1983009808
        %v2258 = vunpack.c.0.s8 %v2257
        %v2259 = vlaneseq
        %v2260 = vshrl.u32 %v2259, 7
        %v2261 = vsub.s32 %v2258, %v2260
        %v2262 = vrot.slane %v2255, %v2261
        %v2263 = vcombine.low %v2167, %v2174
        %v2265 = vunpack.c.l.s4 1983009808
        %v2266 = vunpack.c.0.s8 %v2265
        %v2267 = vlaneseq
        %v2268 = vshrl.u32 %v2267, 7
        %v2269 = vsub.s32 %v2266, %v2268
        %v2270 = vrot.slane %v2263, %v2269
        %v2271 = vcombine.low %v2177, %v2178
        %v2273 = vunpack.c.l.s4 1983009808
        %v2274 = vunpack.c.0.s8 %v2273
        %v2275 = vlaneseq
        %v2276 = vshrl.u32 %v2275, 7
        %v2277 = vsub.s32 %v2274, %v2276
        %v2278 = vrot.slane %v2271, %v2277
        %v2279 = vcombine.low %v2254, %v2262
        %v2280 = vcombine.high %v2254, %v2262
        %v2282 = vunpack.c.l.s4 1934713408
        %v2283 = vunpack.c.0.s8 %v2282
        %v2284 = vlaneseq
        %v2285 = vshrl.u32 %v2284, 7
        %v2286 = vsub.s32 %v2283, %v2285
        %v2287 = vrot.slane %v2279, %v2286
        %v2289 = vunpack.c.l.s4 1934713408
        %v2290 = vunpack.c.0.s8 %v2289
        %v2291 = vlaneseq
        %v2292 = vshrl.u32 %v2291, 7
        %v2293 = vsub.s32 %v2290, %v2292
        %v2294 = vrot.slane %v2280, %v2293
        %v2295 = vcombine.low %v2270, %v2278
        %v2296 = vcombine.high %v2270, %v2278
        %v2298 = vunpack.c.l.s4 1934713408
        %v2299 = vunpack.c.0.s8 %v2298
        %v2300 = vlaneseq
        %v2301 = vshrl.u32 %v2300, 7
        %v2302 = vsub.s32 %v2299, %v2301
        %v2303 = vrot.slane %v2295, %v2302
        %v2305 = vunpack.c.l.s4 1934713408
        %v2306 = vunpack.c.0.s8 %v2305
        %v2307 = vlaneseq
        %v2308 = vshrl.u32 %v2307, 7
        %v2309 = vsub.s32 %v2306, %v2308
        %v2310 = vrot.slane %v2296, %v2309
        %v2311 = vcombine.low %v2287, %v2303
        %v2312 = vcombine.high %v2287, %v2303
        %v2313 = vcombine.low %v2294, %v2310
        %v2314 = vcombine.high %v2294, %v2310
        %2317 = vrot.lane.b32.xlu0 %v2244, 16
        %v2318 = vpop.permute.xlu0 %2317
        %2319 = vrot.lane.b32.xlu0 %v2312, 16
        %v2320 = vpop.permute.xlu0 %2319
        %2325 = vrot.lane.b32.xlu0 %v2245, 32
        %v2326 = vpop.permute.xlu0 %2325
        %2327 = vrot.lane.b32.xlu0 %v2313, 32
        %v2328 = vpop.permute.xlu0 %2327
        %2333 = vrot.lane.b32.xlu0 %v2246, 48
        %v2334 = vpop.permute.xlu0 %2333
        %2335 = vrot.lane.b32.xlu0 %v2314, 48
        %v2336 = vpop.permute.xlu0 %2335
        %v2339 = vsel %vm1034, %v2243, %v2318
        %v2340 = vsel %vm1034, %v2311, %v2320
        %vm2341 = vcmask 261120
        %v2342 = vsel %vm2341, %v2339, %v2326
        %v2343 = vsel %vm2341, %v2340, %v2328
        %vm2344 = vcmask 392192
        %v2345 = vsel %vm2344, %v2342, %v2334
        %v2346 = vsel %vm2344, %v2343, %v2336
        %v2347 = vld [vmem:[%s523] sm:$0xff]
        %v2348 = vld [vmem:[%s523 + $0x8] sm:$0xff]
        %v2349 = vld [vmem:[%s523 + $0x10] sm:$0xff]
        %v2350 = vld [vmem:[%s523 + $0x18] sm:$0xff]
        %v2351 = vld [vmem:[%s523 + $0x20] sm:$0xff]
        %v2352 = vld [vmem:[%s523 + $0x28] sm:$0xff]
        %v2353 = vld [vmem:[%s523 + $0x30] sm:$0xff]
        %v2354 = vld [vmem:[%s523 + $0x38] sm:$0xff]
        %v2356 = vsel %vm578, %v2345, 0
        %v2359 = vsel %vm578, %v2346, 0
        %2361 = vmatprep.subr.mxu0 0.0
        %2362 = vmatpush1.msra.mxu0 0.0
        %2363 = vmatprep.subr.mxu0 0.0
        %2364 = vmatpush1.msra.mxu0 0.0
        %2365 = vmatprep.subr.mxu0 0.0
        %2366 = vmatpush1.msra.mxu0 0.0
        %2367 = vmatprep.subr.mxu0 0.0
        %2368 = vmatpush1.msra.mxu0 0.0
        %2369 = vmatprep.subr.mxu0 0.0
        %2370 = vmatpush1.msra.mxu0 0.0
        %2371 = vmatprep.subr.mxu0 0.0
        %2372 = vmatpush1.msra.mxu0 0.0
        %2373 = vmatprep.subr.mxu0 0.0
        %2374 = vmatpush1.msra.mxu0 0.0
        %2375 = vmatprep.subr.mxu0 0.0
        %2376 = vmatpush1.msra.mxu0 0.0
        %2377 = vmatprep.subr.mxu0 0.0
        %2378 = vmatpush1.msra.mxu0 %v2354
        %2379 = vmatprep.subr.mxu0 0.0
        %2380 = vmatpush1.msra.mxu0 %v2353
        %2381 = vmatprep.subr.mxu0 0.0
        %2382 = vmatpush1.msra.mxu0 %v2352
        %2383 = vmatprep.subr.mxu0 0.0
        %2384 = vmatpush1.msra.mxu0 %v2351
        %2385 = vmatprep.subr.mxu0 0.0
        %2386 = vmatpush1.msra.mxu0 %v2350
        %2387 = vmatprep.subr.mxu0 0.0
        %2388 = vmatpush1.msra.mxu0 %v2349
        %2389 = vmatprep.subr.mxu0 0.0
        %2390 = vmatpush1.msra.mxu0 %v2348
        %2391 = vmatprep.subr.mxu0 0.0
        %2392 = vmatpush1.msra.mxu0 %v2347
        %2393 = vmatprep.subr.mxu0 0.0
        %2394 = vmatpush2.msra.mxu0 0.0
        %2395 = vmatprep.subr.mxu0 0.0
        %2396 = vmatpush2.msra.mxu0 0.0
        %2397 = vmatprep.subr.mxu0 0.0
        %2398 = vmatpush2.msra.mxu0 0.0
        %2399 = vmatprep.subr.mxu0 0.0
        %2400 = vmatpush2.msra.mxu0 0.0
        %2401 = vmatprep.subr.mxu0 0.0
        %2402 = vmatpush2.msra.mxu0 0.0
        %2403 = vmatprep.subr.mxu0 0.0
        %2404 = vmatpush2.msra.mxu0 0.0
        %2405 = vmatprep.subr.mxu0 0.0
        %2406 = vmatpush2.msra.mxu0 0.0
        %2407 = vmatprep.subr.mxu0 0.0
        %2408 = vmatpush2.msra.mxu0 0.0
        %2409 = vmatprep.subr.mxu0 0.0
        %2410 = vmatpush2.msra.mxu0 0.0
        %2411 = vmatprep.subr.mxu0 0.0
        %2412 = vmatpush2.msra.mxu0 0.0
        %2413 = vmatprep.subr.mxu0 0.0
        %2414 = vmatpush2.msra.mxu0 0.0
        %2415 = vmatprep.subr.mxu0 0.0
        %2416 = vmatpush2.msra.mxu0 0.0
        %2417 = vmatprep.subr.mxu0 0.0
        %2418 = vmatpush2.msra.mxu0 0.0
        %2419 = vmatprep.subr.mxu0 0.0
        %2420 = vmatpush2.msra.mxu0 0.0
        %2421 = vmatprep.subr.mxu0 0.0
        %2422 = vmatpush2.msra.mxu0 0.0
        %2423 = vmatprep.subr.mxu0 0.0
        %2424 = vmatpush2.msra.mxu0 0.0
        %2425 = vmatprep.mubr.f32.mxu0 0.0
        %2426 = vmatmul.mubr.f32.gmra.mxu0 %v2356
        %v2427 = vpop.f32.mrf.mxu0
        %v2428 = vadd.f32 0.0, %v2427
        %v2429 = vpop.f32.mrf.mxu0
        %2430 = vmatprep.mubr.f32.mxu0 0.0
        %2431 = vmatmul.mubr.f32.gmra.mxu0 %v2359
        %v2432 = vpop.f32.mrf.mxu0
        %v2433 = vadd.f32 0.0, %v2432
        %v2434 = vpop.f32.mrf.mxu0
        %2435 = vdwg.mxu0
        %v2436 = vadd.f32 %v573, %v2428
        %v2437 = vadd.f32 %v574, %v2433
        %v2438 = vld [vmem:[%s534] sm:$0x1]
        %v2439 = vmul.f32 %v2436, %v2436
        %v2440 = vmul.f32 %v2437, %v2437
        %v2441 = vsel %vm578, %v2439, 0.0
        %2442 = vadd.xlane.f32.xlu0 %v2441
        %v2443 = vpop.xlane.xlu0 %2442
        %v2444 = vsel %vm578, %v2440, 0.0
        %2445 = vadd.xlane.f32.xlu0 %v2444
        %v2446 = vpop.xlane.xlu0 %2445
        %v2447 = vmul.f32 %v2443, %v585
        %v2448 = vmul.f32 %v2446, %v585
        %v2449 = vadd.f32 %v2447, 1e-05
        %v2450 = vadd.f32 %v2448, 1e-05
        %v2451 = vrsqrt.pop %v2449
        %v2452 = vrsqrt.pop %v2450
        %v2453 = vmul.f32 %v2436, %v2451
        %v2454 = vmul.f32 %v2437, %v2452
        %v2456 = vlaneseq
        %v2457 = vshrl.u32 %v2456, 7
        %v2458 = vsub.s32 0, %v2457
        %v2459 = vrot.slane %v2438, %v2458
        %v2461 = vmul.f32 %v2453, %v2459
        %v2462 = vmul.f32 %v2454, %v2459
        %v2463 = vld [vmem:[%s455] sm:$0xff]
        %v2464 = vld [vmem:[%s455 + $0x8] sm:$0xff]
        %v2465 = vld [vmem:[%s455 + $0x10] sm:$0xff]
        %v2466 = vld [vmem:[%s455 + $0x18] sm:$0xff]
        %v2467 = vld [vmem:[%s455 + $0x20] sm:$0xff]
        %v2468 = vld [vmem:[%s455 + $0x28] sm:$0xff]
        %v2469 = vld [vmem:[%s455 + $0x30] sm:$0xff]
        %v2470 = vld [vmem:[%s455 + $0x38] sm:$0xff]
        %v2471 = vld [vmem:[%s455 + $0x40] sm:$0xff]
        %v2472 = vld [vmem:[%s455 + $0x48] sm:$0xff]
        %v2473 = vld [vmem:[%s455 + $0x50] sm:$0xff]
        %v2474 = vld [vmem:[%s455 + $0x58] sm:$0xff]
        %v2475 = vld [vmem:[%s455 + $0x60] sm:$0xff]
        %v2476 = vld [vmem:[%s455 + $0x68] sm:$0xff]
        %v2477 = vld [vmem:[%s455 + $0x70] sm:$0xff]
        %v2478 = vld [vmem:[%s455 + $0x78] sm:$0xff]
        %v2479 = vld [vmem:[%s455 + $0x80] sm:$0xff]
        %v2480 = vld [vmem:[%s455 + $0x88] sm:$0xff]
        %v2481 = vld [vmem:[%s455 + $0x90] sm:$0xff]
        %v2482 = vld [vmem:[%s455 + $0x98] sm:$0xff]
        %v2483 = vld [vmem:[%s455 + $0xa0] sm:$0xff]
        %v2484 = vld [vmem:[%s455 + $0xa8] sm:$0xff]
        %v2485 = vld [vmem:[%s455 + $0xb0] sm:$0xff]
        %v2486 = vld [vmem:[%s455 + $0xb8] sm:$0xff]
        %v2488 = vsel %vm578, %v2461, 0
        %v2491 = vsel %vm578, %v2462, 0
        %2493 = vmatprep.subr.mxu0 0.0
        %2494 = vmatpush1.msra.mxu0 0.0
        %2495 = vmatprep.subr.mxu0 0.0
        %2496 = vmatpush1.msra.mxu0 0.0
        %2497 = vmatprep.subr.mxu0 0.0
        %2498 = vmatpush1.msra.mxu0 0.0
        %2499 = vmatprep.subr.mxu0 0.0
        %2500 = vmatpush1.msra.mxu0 0.0
        %2501 = vmatprep.subr.mxu0 0.0
        %2502 = vmatpush1.msra.mxu0 0.0
        %2503 = vmatprep.subr.mxu0 0.0
        %2504 = vmatpush1.msra.mxu0 0.0
        %2505 = vmatprep.subr.mxu0 0.0
        %2506 = vmatpush1.msra.mxu0 0.0
        %2507 = vmatprep.subr.mxu0 0.0
        %2508 = vmatpush1.msra.mxu0 0.0
        %2509 = vmatprep.subr.mxu0 %v2485
        %2510 = vmatpush1.msra.mxu0 %v2484
        %2511 = vmatprep.subr.mxu0 %v2482
        %2512 = vmatpush1.msra.mxu0 %v2481
        %2513 = vmatprep.subr.mxu0 %v2479
        %2514 = vmatpush1.msra.mxu0 %v2478
        %2515 = vmatprep.subr.mxu0 %v2476
        %2516 = vmatpush1.msra.mxu0 %v2475
        %2517 = vmatprep.subr.mxu0 %v2473
        %2518 = vmatpush1.msra.mxu0 %v2472
        %2519 = vmatprep.subr.mxu0 %v2470
        %2520 = vmatpush1.msra.mxu0 %v2469
        %2521 = vmatprep.subr.mxu0 %v2467
        %2522 = vmatpush1.msra.mxu0 %v2466
        %2523 = vmatprep.subr.mxu0 %v2464
        %2524 = vmatpush1.msra.mxu0 %v2463
        %2525 = vmatprep.subr.mxu0 0.0
        %2526 = vmatpush2.msra.mxu0 0.0
        %2527 = vmatprep.subr.mxu0 0.0
        %2528 = vmatpush2.msra.mxu0 0.0
        %2529 = vmatprep.subr.mxu0 0.0
        %2530 = vmatpush2.msra.mxu0 0.0
        %2531 = vmatprep.subr.mxu0 0.0
        %2532 = vmatpush2.msra.mxu0 0.0
        %2533 = vmatprep.subr.mxu0 0.0
        %2534 = vmatpush2.msra.mxu0 0.0
        %2535 = vmatprep.subr.mxu0 0.0
        %2536 = vmatpush2.msra.mxu0 0.0
        %2537 = vmatprep.subr.mxu0 0.0
        %2538 = vmatpush2.msra.mxu0 0.0
        %2539 = vmatprep.subr.mxu0 0.0
        %2540 = vmatpush2.msra.mxu0 0.0
        %2541 = vmatprep.subr.mxu0 0.0
        %2542 = vmatpush2.msra.mxu0 0.0
        %2543 = vmatprep.subr.mxu0 0.0
        %2544 = vmatpush2.msra.mxu0 0.0
        %2545 = vmatprep.subr.mxu0 0.0
        %2546 = vmatpush2.msra.mxu0 0.0
        %2547 = vmatprep.subr.mxu0 0.0
        %2548 = vmatpush2.msra.mxu0 0.0
        %2549 = vmatprep.subr.mxu0 0.0
        %2550 = vmatpush2.msra.mxu0 0.0
        %2551 = vmatprep.subr.mxu0 0.0
        %2552 = vmatpush2.msra.mxu0 0.0
        %2553 = vmatprep.subr.mxu0 0.0
        %2554 = vmatpush2.msra.mxu0 0.0
        %2555 = vmatprep.subr.mxu0 0.0
        %2556 = vmatpush2.msra.mxu0 0.0
        %2557 = vmatprep.mubr.f32.mxu0 0.0
        %2558 = vmatmul.mubr.f32.gmra.mxu0 %v2488
        %v2559 = vpop.f32.mrf.mxu0
        %v2560 = vadd.f32 0.0, %v2559
        %v2561 = vpop.f32.mrf.mxu0
        %v2562 = vadd.f32 0.0, %v2561
        %2563 = vmatprep.mubr.f32.mxu0 0.0
        %2564 = vmatmul.mubr.f32.gmra.mxu0 %v2491
        %v2565 = vpop.f32.mrf.mxu0
        %v2566 = vadd.f32 0.0, %v2565
        %v2567 = vpop.f32.mrf.mxu0
        %v2568 = vadd.f32 0.0, %v2567
        %2569 = vdwg.mxu0
        %2570 = vmatprep.subr.mxu0 0.0
        %2571 = vmatpush1.msra.mxu0 0.0
        %2572 = vmatprep.subr.mxu0 0.0
        %2573 = vmatpush1.msra.mxu0 0.0
        %2574 = vmatprep.subr.mxu0 0.0
        %2575 = vmatpush1.msra.mxu0 0.0
        %2576 = vmatprep.subr.mxu0 0.0
        %2577 = vmatpush1.msra.mxu0 0.0
        %2578 = vmatprep.subr.mxu0 0.0
        %2579 = vmatpush1.msra.mxu0 0.0
        %2580 = vmatprep.subr.mxu0 0.0
        %2581 = vmatpush1.msra.mxu0 0.0
        %2582 = vmatprep.subr.mxu0 0.0
        %2583 = vmatpush1.msra.mxu0 0.0
        %2584 = vmatprep.subr.mxu0 0.0
        %2585 = vmatpush1.msra.mxu0 0.0
        %2586 = vmatprep.subr.mxu0 0.0
        %2587 = vmatpush1.msra.mxu0 %v2486
        %2588 = vmatprep.subr.mxu0 0.0
        %2589 = vmatpush1.msra.mxu0 %v2483
        %2590 = vmatprep.subr.mxu0 0.0
        %2591 = vmatpush1.msra.mxu0 %v2480
        %2592 = vmatprep.subr.mxu0 0.0
        %2593 = vmatpush1.msra.mxu0 %v2477
        %2594 = vmatprep.subr.mxu0 0.0
        %2595 = vmatpush1.msra.mxu0 %v2474
        %2596 = vmatprep.subr.mxu0 0.0
        %2597 = vmatpush1.msra.mxu0 %v2471
        %2598 = vmatprep.subr.mxu0 0.0
        %2599 = vmatpush1.msra.mxu0 %v2468
        %2600 = vmatprep.subr.mxu0 0.0
        %2601 = vmatpush1.msra.mxu0 %v2465
        %2602 = vmatprep.subr.mxu0 0.0
        %2603 = vmatpush2.msra.mxu0 0.0
        %2604 = vmatprep.subr.mxu0 0.0
        %2605 = vmatpush2.msra.mxu0 0.0
        %2606 = vmatprep.subr.mxu0 0.0
        %2607 = vmatpush2.msra.mxu0 0.0
        %2608 = vmatprep.subr.mxu0 0.0
        %2609 = vmatpush2.msra.mxu0 0.0
        %2610 = vmatprep.subr.mxu0 0.0
        %2611 = vmatpush2.msra.mxu0 0.0
        %2612 = vmatprep.subr.mxu0 0.0
        %2613 = vmatpush2.msra.mxu0 0.0
        %2614 = vmatprep.subr.mxu0 0.0
        %2615 = vmatpush2.msra.mxu0 0.0
        %2616 = vmatprep.subr.mxu0 0.0
        %2617 = vmatpush2.msra.mxu0 0.0
        %2618 = vmatprep.subr.mxu0 0.0
        %2619 = vmatpush2.msra.mxu0 0.0
        %2620 = vmatprep.subr.mxu0 0.0
        %2621 = vmatpush2.msra.mxu0 0.0
        %2622 = vmatprep.subr.mxu0 0.0
        %2623 = vmatpush2.msra.mxu0 0.0
        %2624 = vmatprep.subr.mxu0 0.0
        %2625 = vmatpush2.msra.mxu0 0.0
        %2626 = vmatprep.subr.mxu0 0.0
        %2627 = vmatpush2.msra.mxu0 0.0
        %2628 = vmatprep.subr.mxu0 0.0
        %2629 = vmatpush2.msra.mxu0 0.0
        %2630 = vmatprep.subr.mxu0 0.0
        %2631 = vmatpush2.msra.mxu0 0.0
        %2632 = vmatprep.subr.mxu0 0.0
        %2633 = vmatpush2.msra.mxu0 0.0
        %2634 = vmatprep.mubr.f32.mxu0 0.0
        %2635 = vmatmul.mubr.f32.gmra.mxu0 %v2488
        %v2636 = vpop.f32.mrf.mxu0
        %v2637 = vadd.f32 0.0, %v2636
        %v2638 = vpop.f32.mrf.mxu0
        %2639 = vmatprep.mubr.f32.mxu0 0.0
        %2640 = vmatmul.mubr.f32.gmra.mxu0 %v2491
        %v2641 = vpop.f32.mrf.mxu0
        %v2642 = vadd.f32 0.0, %v2641
        %v2643 = vpop.f32.mrf.mxu0
        %2644 = vdwg.mxu0
        %v2645 = vxor.u32 %v2560, 2147483648
        %v2646 = vxor.u32 %v2562, 2147483648
        %v2647 = vxor.u32 %v2566, 2147483648
        %v2648 = vxor.u32 %v2568, 2147483648
        %v2649 = vmul.f32 %v2645, 1.442695
        %v2650 = vpow.pop %v2649
        %v2651 = vmul.f32 %v2646, 1.442695
        %v2652 = vpow.pop %v2651
        %v2653 = vmul.f32 %v2647, 1.442695
        %v2654 = vpow.pop %v2653
        %v2655 = vmul.f32 %v2648, 1.442695
        %v2656 = vpow.pop %v2655
        %v2657 = vadd.f32 %v2650, 1.0
        %v2658 = vadd.f32 %v2652, 1.0
        %v2659 = vadd.f32 %v2654, 1.0
        %v2660 = vadd.f32 %v2656, 1.0
        %v2661 = vrcp.pop %v2657
        %v2662 = vmul.f32 1.0, %v2661
        %v2663 = vrcp.pop %v2658
        %v2664 = vmul.f32 1.0, %v2663
        %v2665 = vrcp.pop %v2659
        %v2666 = vmul.f32 1.0, %v2665
        %v2667 = vrcp.pop %v2660
        %v2668 = vmul.f32 1.0, %v2667
        %v2669 = vmul.f32 %v2560, %v2662
        %v2670 = vmul.f32 %v2562, %v2664
        %v2671 = vmul.f32 %v2566, %v2666
        %v2672 = vmul.f32 %v2568, %v2668
        %2677 = vrot.lane.b32.xlu0 %v2562, 64
        %v2678 = vpop.permute.xlu0 %2677
        %2679 = vrot.lane.b32.xlu0 %v2637, 64
        %v2680 = vpop.permute.xlu0 %2679
        %2681 = vrot.lane.b32.xlu0 %v2568, 64
        %v2682 = vpop.permute.xlu0 %2681
        %2683 = vrot.lane.b32.xlu0 %v2642, 64
        %v2684 = vpop.permute.xlu0 %2683
        %v2685 = vsel %vm578, %v2678, %v2680
        %v2686 = vsel %vm578, %v2682, %v2684
        %v2691 = vmul.f32 %v2669, %v2685
        %v2692 = vmul.f32 %v2670, %v2680
        %v2693 = vmul.f32 %v2671, %v2686
        %v2694 = vmul.f32 %v2672, %v2684
        %v2695 = vld [vmem:[%s528] sm:$0xff]
        %v2696 = vld [vmem:[%s528 + $0x8] sm:$0xff]
        %v2697 = vld [vmem:[%s528 + $0x10] sm:$0xff]
        %v2698 = vld [vmem:[%s528 + $0x18] sm:$0xff]
        %v2699 = vld [vmem:[%s528 + $0x20] sm:$0xff]
        %v2700 = vld [vmem:[%s528 + $0x28] sm:$0xff]
        %v2701 = vld [vmem:[%s528 + $0x30] sm:$0xff]
        %v2702 = vld [vmem:[%s528 + $0x38] sm:$0xff]
        %v2703 = vld [vmem:[%s528 + $0x40] sm:$0xff]
        %v2704 = vld [vmem:[%s528 + $0x48] sm:$0xff]
        %v2705 = vld [vmem:[%s528 + $0x50] sm:$0xff]
        %v2706 = vld [vmem:[%s528 + $0x58] sm:$0xff]
        %v2707 = vld [vmem:[%s528 + $0x60] sm:$0xff]
        %v2708 = vld [vmem:[%s528 + $0x68] sm:$0xff]
        %v2709 = vld [vmem:[%s528 + $0x70] sm:$0xff]
        %v2710 = vld [vmem:[%s528 + $0x78] sm:$0xff]
        %v2711 = vld [vmem:[%s528 + $0x80] sm:$0xff]
        %v2712 = vld [vmem:[%s528 + $0x88] sm:$0xff]
        %v2713 = vld [vmem:[%s528 + $0x90] sm:$0xff]
        %v2714 = vld [vmem:[%s528 + $0x98] sm:$0xff]
        %v2715 = vld [vmem:[%s528 + $0xa0] sm:$0xff]
        %v2716 = vld [vmem:[%s528 + $0xa8] sm:$0xff]
        %v2717 = vld [vmem:[%s528 + $0xb0] sm:$0xff]
        %v2718 = vld [vmem:[%s528 + $0xb8] sm:$0xff]
        %v2720 = vsel %vm578, %v2692, 0
        %v2723 = vsel %vm578, %v2694, 0
        %2725 = vmatprep.subr.mxu0 0.0
        %2726 = vmatpush1.msra.mxu0 %v2710
        %2727 = vmatprep.subr.mxu0 0.0
        %2728 = vmatpush1.msra.mxu0 %v2709
        %2729 = vmatprep.subr.mxu0 0.0
        %2730 = vmatpush1.msra.mxu0 %v2708
        %2731 = vmatprep.subr.mxu0 0.0
        %2732 = vmatpush1.msra.mxu0 %v2707
        %2733 = vmatprep.subr.mxu0 0.0
        %2734 = vmatpush1.msra.mxu0 %v2706
        %2735 = vmatprep.subr.mxu0 0.0
        %2736 = vmatpush1.msra.mxu0 %v2705
        %2737 = vmatprep.subr.mxu0 0.0
        %2738 = vmatpush1.msra.mxu0 %v2704
        %2739 = vmatprep.subr.mxu0 0.0
        %2740 = vmatpush1.msra.mxu0 %v2703
        %2741 = vmatprep.subr.mxu0 0.0
        %2742 = vmatpush1.msra.mxu0 %v2702
        %2743 = vmatprep.subr.mxu0 0.0
        %2744 = vmatpush1.msra.mxu0 %v2701
        %2745 = vmatprep.subr.mxu0 0.0
        %2746 = vmatpush1.msra.mxu0 %v2700
        %2747 = vmatprep.subr.mxu0 0.0
        %2748 = vmatpush1.msra.mxu0 %v2699
        %2749 = vmatprep.subr.mxu0 0.0
        %2750 = vmatpush1.msra.mxu0 %v2698
        %2751 = vmatprep.subr.mxu0 0.0
        %2752 = vmatpush1.msra.mxu0 %v2697
        %2753 = vmatprep.subr.mxu0 0.0
        %2754 = vmatpush1.msra.mxu0 %v2696
        %2755 = vmatprep.subr.mxu0 0.0
        %2756 = vmatpush1.msra.mxu0 %v2695
        %2757 = vmatprep.subr.mxu0 0.0
        %2758 = vmatpush2.msra.mxu0 0.0
        %2759 = vmatprep.subr.mxu0 0.0
        %2760 = vmatpush2.msra.mxu0 0.0
        %2761 = vmatprep.subr.mxu0 0.0
        %2762 = vmatpush2.msra.mxu0 0.0
        %2763 = vmatprep.subr.mxu0 0.0
        %2764 = vmatpush2.msra.mxu0 0.0
        %2765 = vmatprep.subr.mxu0 0.0
        %2766 = vmatpush2.msra.mxu0 0.0
        %2767 = vmatprep.subr.mxu0 0.0
        %2768 = vmatpush2.msra.mxu0 0.0
        %2769 = vmatprep.subr.mxu0 0.0
        %2770 = vmatpush2.msra.mxu0 0.0
        %2771 = vmatprep.subr.mxu0 0.0
        %2772 = vmatpush2.msra.mxu0 0.0
        %2773 = vmatprep.subr.mxu0 0.0
        %2774 = vmatpush2.msra.mxu0 %v2718
        %2775 = vmatprep.subr.mxu0 0.0
        %2776 = vmatpush2.msra.mxu0 %v2717
        %2777 = vmatprep.subr.mxu0 0.0
        %2778 = vmatpush2.msra.mxu0 %v2716
        %2779 = vmatprep.subr.mxu0 0.0
        %2780 = vmatpush2.msra.mxu0 %v2715
        %2781 = vmatprep.subr.mxu0 0.0
        %2782 = vmatpush2.msra.mxu0 %v2714
        %2783 = vmatprep.subr.mxu0 0.0
        %2784 = vmatpush2.msra.mxu0 %v2713
        %2785 = vmatprep.subr.mxu0 0.0
        %2786 = vmatpush2.msra.mxu0 %v2712
        %2787 = vmatprep.subr.mxu0 0.0
        %2788 = vmatpush2.msra.mxu0 %v2711
        %2789 = vmatprep.mubr.f32.mxu0 %v2720
        %2790 = vmatmul.mubr.f32.gmra.mxu0 %v2691
        %v2791 = vpop.f32.mrf.mxu0
        %v2792 = vadd.f32 0.0, %v2791
        %v2793 = vpop.f32.mrf.mxu0
        %2794 = vmatprep.mubr.f32.mxu0 %v2723
        %2795 = vmatmul.mubr.f32.gmra.mxu0 %v2693
        %v2796 = vpop.f32.mrf.mxu0
        %v2797 = vadd.f32 0.0, %v2796
        %v2798 = vpop.f32.mrf.mxu0
        %2799 = vdwg.mxu0
        %v2800 = vadd.f32 %v2436, %v2792
        %v2801 = vadd.f32 %v2437, %v2797
        %2802 = vst.msk [vmem:[#allocation2] sm:$0xff] %vm578, %v2800
        %2803 = vst.msk [vmem:[#allocation2 + $0x8] sm:$0xff] %vm578, %v2801
        %p2804 = scmp.eq.s32.totalorder %s28, 1
        // Predicated region
        $region81: #{tpu_custom_call.1} parent=71 // pred_check
          %p2805 = pneg %p2804
        $region82: #{tpu_custom_call.1} parent=71 // pred_check_branch
          %2807 = sbr.rel (%p2805) target = $region84
        $region83: #{tpu_custom_call.1} parent=71 // pred_region
          %v2808 = vld [vmem:[%s11] sm:$0x1]
          %v2809 = vmul.f32 %v2800, %v2800
          %v2810 = vmul.f32 %v2801, %v2801
          %v2811 = vsel %vm578, %v2809, 0.0
          %2812 = vadd.xlane.f32.xlu0 %v2811
          %v2813 = vpop.xlane.xlu0 %2812
          %v2814 = vsel %vm578, %v2810, 0.0
          %2815 = vadd.xlane.f32.xlu0 %v2814
          %v2816 = vpop.xlane.xlu0 %2815
          %v2817 = vmul.f32 %v2813, %v585
          %v2818 = vmul.f32 %v2816, %v585
          %v2819 = vadd.f32 %v2817, 1e-05
          %v2820 = vadd.f32 %v2818, 1e-05
          %v2821 = vrsqrt.pop %v2819
          %v2822 = vrsqrt.pop %v2820
          %v2823 = vmul.f32 %v2800, %v2821
          %v2824 = vmul.f32 %v2801, %v2822
          %v2826 = vlaneseq
          %v2827 = vshrl.u32 %v2826, 7
          %v2828 = vsub.s32 0, %v2827
          %v2829 = vrot.slane %v2808, %v2828
          %v2831 = vmul.f32 %v2823, %v2829
          %v2832 = vmul.f32 %v2824, %v2829
          %v2833 = vld [vmem:[%s12] sm:$0xff]
          %v2834 = vld [vmem:[%s12 + $0x8] sm:$0xff]
          %v2835 = vld [vmem:[%s12 + $0x10] sm:$0xff]
          %v2836 = vld [vmem:[%s12 + $0x18] sm:$0xff]
          %v2837 = vld [vmem:[%s12 + $0x20] sm:$0xff]
          %v2838 = vld [vmem:[%s12 + $0x28] sm:$0xff]
          %v2839 = vld [vmem:[%s12 + $0x30] sm:$0xff]
          %v2840 = vld [vmem:[%s12 + $0x38] sm:$0xff]
          %v2842 = vsel %vm578, %v2831, 0
          %v2845 = vsel %vm578, %v2832, 0
          %2847 = vmatprep.subr.mxu0 0.0
          %2848 = vmatpush1.msra.mxu0 0.0
          %2849 = vmatprep.subr.mxu0 0.0
          %2850 = vmatpush1.msra.mxu0 0.0
          %2851 = vmatprep.subr.mxu0 0.0
          %2852 = vmatpush1.msra.mxu0 0.0
          %2853 = vmatprep.subr.mxu0 0.0
          %2854 = vmatpush1.msra.mxu0 0.0
          %2855 = vmatprep.subr.mxu0 0.0
          %2856 = vmatpush1.msra.mxu0 0.0
          %2857 = vmatprep.subr.mxu0 0.0
          %2858 = vmatpush1.msra.mxu0 0.0
          %2859 = vmatprep.subr.mxu0 0.0
          %2860 = vmatpush1.msra.mxu0 0.0
          %2861 = vmatprep.subr.mxu0 0.0
          %2862 = vmatpush1.msra.mxu0 0.0
          %2863 = vmatprep.subr.mxu0 0.0
          %2864 = vmatpush1.msra.mxu0 %v2840
          %2865 = vmatprep.subr.mxu0 0.0
          %2866 = vmatpush1.msra.mxu0 %v2839
          %2867 = vmatprep.subr.mxu0 0.0
          %2868 = vmatpush1.msra.mxu0 %v2838
          %2869 = vmatprep.subr.mxu0 0.0
          %2870 = vmatpush1.msra.mxu0 %v2837
          %2871 = vmatprep.subr.mxu0 0.0
          %2872 = vmatpush1.msra.mxu0 %v2836
          %2873 = vmatprep.subr.mxu0 0.0
          %2874 = vmatpush1.msra.mxu0 %v2835
          %2875 = vmatprep.subr.mxu0 0.0
          %2876 = vmatpush1.msra.mxu0 %v2834
          %2877 = vmatprep.subr.mxu0 0.0
          %2878 = vmatpush1.msra.mxu0 %v2833
          %2879 = vmatprep.subr.mxu0 0.0
          %2880 = vmatpush2.msra.mxu0 0.0
          %2881 = vmatprep.subr.mxu0 0.0
          %2882 = vmatpush2.msra.mxu0 0.0
          %2883 = vmatprep.subr.mxu0 0.0
          %2884 = vmatpush2.msra.mxu0 0.0
          %2885 = vmatprep.subr.mxu0 0.0
          %2886 = vmatpush2.msra.mxu0 0.0
          %2887 = vmatprep.subr.mxu0 0.0
          %2888 = vmatpush2.msra.mxu0 0.0
          %2889 = vmatprep.subr.mxu0 0.0
          %2890 = vmatpush2.msra.mxu0 0.0
          %2891 = vmatprep.subr.mxu0 0.0
          %2892 = vmatpush2.msra.mxu0 0.0
          %2893 = vmatprep.subr.mxu0 0.0
          %2894 = vmatpush2.msra.mxu0 0.0
          %2895 = vmatprep.subr.mxu0 0.0
          %2896 = vmatpush2.msra.mxu0 0.0
          %2897 = vmatprep.subr.mxu0 0.0
          %2898 = vmatpush2.msra.mxu0 0.0
          %2899 = vmatprep.subr.mxu0 0.0
          %2900 = vmatpush2.msra.mxu0 0.0
          %2901 = vmatprep.subr.mxu0 0.0
          %2902 = vmatpush2.msra.mxu0 0.0
          %2903 = vmatprep.subr.mxu0 0.0
          %2904 = vmatpush2.msra.mxu0 0.0
          %2905 = vmatprep.subr.mxu0 0.0
          %2906 = vmatpush2.msra.mxu0 0.0
          %2907 = vmatprep.subr.mxu0 0.0
          %2908 = vmatpush2.msra.mxu0 0.0
          %2909 = vmatprep.subr.mxu0 0.0
          %2910 = vmatpush2.msra.mxu0 0.0
          %2911 = vmatprep.mubr.f32.mxu0 0.0
          %2912 = vmatmul.mubr.f32.gmra.mxu0 %v2842
          %v2913 = vpop.f32.mrf.mxu0
          %v2914 = vadd.f32 0.0, %v2913
          %v2915 = vpop.f32.mrf.mxu0
          %2916 = vmatprep.mubr.f32.mxu0 0.0
          %2917 = vmatmul.mubr.f32.gmra.mxu0 %v2845
          %v2918 = vpop.f32.mrf.mxu0
          %v2919 = vadd.f32 0.0, %v2918
          %v2920 = vpop.f32.mrf.mxu0
          %2921 = vdwg.mxu0
          %2922 = vst [vmem:[#allocation7] sm:$0xff] %v2914
          %2923 = vst [vmem:[#allocation7 + $0x8] sm:$0xff] %v2919
        $region84: #{tpu_custom_call.1} parent=71 // pred_fallthru
          _
        // Predicated region
        $region85: #{tpu_custom_call.1} parent=71 // pred_check
          %p2924 = pneg %p344
        $region86: #{tpu_custom_call.1} parent=71 // pred_check_branch
          %2926 = sbr.rel (%p2924) target = $region88
        $region87: #{tpu_custom_call.1} parent=71 // pred_region
          %s2928 = ssub.s32 256, 256
          %2929 = vsyncadd [#allocation6], %s2928
          %s2930 = sshll.u32 [#allocation7], 4
          %s2931 = int_to_ptr.vmem [resolvable:$true] %s2930
          %2936 = dma.vmem_to_hbm [thread:$0]  %s2931, 256, %s13, [#allocation6], 128, 128, 8
        $region88: #{tpu_custom_call.1} parent=71 // pred_fallthru
          _
        // Predicated region
        $region89: #{tpu_custom_call.1} parent=71 // pred_check
          %p2937 = pneg %p344
        $region90: #{tpu_custom_call.1} parent=71 // pred_check_branch
          %2939 = sbr.rel (%p2937) target = $region92
        $region91: #{tpu_custom_call.1} parent=71 // pred_region
          %2940 = dma.done [#allocation6], 256
        $region92: #{tpu_custom_call.1} parent=71 // pred_fallthru
          _
      $region72: #{tpu_custom_call.1} parent=5 // pred_fallthru
        _
      %p2941 = scmp.le.s32.totalorder 2, %s23
      // Predicated region
      $region93: #{tpu_custom_call.1} parent=5 // pred_check
        %p2942 = pneg %p2941
      $region94: #{tpu_custom_call.1} parent=5 // pred_check_branch
        %2944 = sbr.rel (%p2942) target = $region96
      $region95: #{tpu_custom_call.1} parent=5 // pred_region
        %s2945 = ssub.s32 %s23, 2
      $region96: #{tpu_custom_call.1} parent=5 // pred_fallthru
        _
    $region6: #{tpu_custom_call.1} parent=1 // loop_footer
      %s27 = sadd.s32 1, %s23
    $region7: #{tpu_custom_call.1} parent=1 // loop_footer_branch
      %22 = sbr.rel target = $region3
    $region8: #{tpu_custom_call.1} parent=1 // loop_exit
      _
    %2946 = vsyncpa [#allocation5], 1
    %s2947 = scalar_lea.sflag [#allocation5], 1
    %2948 = vsyncpa %s2947, 1
    %2949 = vsyncpa [#allocation6], 1
    %s2950 = scalar_lea.sflag [#allocation6], 1
    %2951 = vsyncpa %s2950, 1

</llo_original>
